<compile_context>
chip_gen: v7x
topology: tpu7x:2x2x1
jax: 0.10.0
libtpu: 0.0.40
codegen_flags: <defaults>
</compile_context>

<pallas_src>
import numpy as np
import jax
import jax.numpy as jnp
from jax.experimental import pallas as pl
from jax.experimental.pallas import tpu as pltpu


def _round_up(x, m):
    return (x + m - 1) // m * m


# --------------------------------------------------------------------------- kernels


def _pool_conv1_kernel(x_ref, w1_ref, z1_ref, s1_ref):
    """Per batch band: 2x2 max-pool + conv1 (9 per-tap MXU matmuls, f32 acc) + BN partials.

    x_ref : (1, Hp+2, Wp+2, 4*Cin) bf16  zero-bordered input with the 2x2 pool window
                                          folded into the lane dim
    w1_ref: (9, Cin, Cout_p)        bf16  conv1 taps, output channels zero-padded to 128k
    z1_ref: (1, Hp*Wp, Cout_p)      f32   conv1 output (pre-BN) for this band
    s1_ref: (1, 2, Cout_p)          f32   per-band [sum, sum-of-squares] of z1
    """
    _, Hpp, Wpp, Cin4 = x_ref.shape
    Cin = Cin4 // 4
    Hp, Wp = Hpp - 2, Wpp - 2
    Cout_p = w1_ref.shape[-1]

    # MaxPool2d(2): the 2x2 window sits in four Cin-wide lane groups.  The result keeps
    # the 1-pixel zero border the wrapper pre-padded, i.e. it IS conv1's padded input.
    x = x_ref[0]                                                # (Hp+2, Wp+2, 4*Cin) bf16
    pooled = jnp.maximum(
        jnp.maximum(x[..., 0 * Cin:1 * Cin], x[..., 1 * Cin:2 * Cin]),
        jnp.maximum(x[..., 2 * Cin:3 * Cin], x[..., 3 * Cin:4 * Cin]))

    # Conv1 3x3 (padding=1): 9 per-tap matmuls accumulated in f32 (no im2col patch buffer).
    # Conv bias omitted: exactly cancelled by the batch-stat BN that follows.
    acc = jnp.zeros((Hp * Wp, Cout_p), jnp.float32)
    for dy in range(3):
        for dx in range(3):
            tap = pooled[dy:dy + Hp, dx:dx + Wp, :].reshape(Hp * Wp, Cin)
            acc = acc + jnp.dot(tap, w1_ref[dy * 3 + dx],
                                preferred_element_type=jnp.float32)

    z1_ref[0] = acc.astype(z1_ref.dtype)
    # Single-pass per-band BN partials in f32 (global stats assembled in the next pass).
    s1_ref[0] = jnp.concatenate(
        [jnp.sum(acc, axis=0, keepdims=True),
         jnp.sum(acc * acc, axis=0, keepdims=True)], axis=0)


def _bn_conv2_kernel(s1_ref, z1_ref, w2_ref, z2_ref, s2_ref, hpad_ref):
    """Per batch band: global BN1 + ReLU, conv2 (9 per-tap matmuls), BN2 partials.

    s1_ref  : (N, 2, Cout_p)        f32   all bands' conv1 BN partials (tiny, full block)
    z1_ref  : (1, Hp*Wp, Cout_p)    f32   this band's conv1 output
    w2_ref  : (9, Cout_p, Cout_p)   bf16  conv2 taps, in/out channels zero-padded
    z2_ref  : (1, Hp*Wp, Cout_p)    f32   conv2 output (pre-BN) for this band
    s2_ref  : (1, 2, Cout_p)        f32   per-band [sum, sum-of-squares] of z2
    hpad_ref: (Hp+2, Wp+2, Cout_p)  bf16  VMEM scratch: zero-bordered h1 for conv2 taps
    """
    Nb = s1_ref.shape[0]
    HW = z1_ref.shape[1]
    Hpp, Wpp, Cout_p = hpad_ref.shape
    Hp, Wp = Hpp - 2, Wpp - 2
    eps = 1e-5
    inv_m = 1.0 / float(Nb * HW)

    # Global BN1 stats over (N, H, W): reduce the per-band partials (f32, E[x^2] - mu^2).
    stats = jnp.sum(s1_ref[...], axis=0)                        # (2, Cout_p)
    mu = stats[0:1, :] * inv_m
    var = stats[1:2, :] * inv_m - mu * mu
    inv_sd = jax.lax.rsqrt(jnp.maximum(var, 0.0) + eps)

    h1 = jnp.maximum((z1_ref[0] - mu) * inv_sd, 0.0)            # (HW, Cout_p) f32

    # Zero-bordered h1 in VMEM scratch; conv2 taps are read back as ref slices.
    # Re-zero every step (no program_id==0 gating) so the band axis stays "parallel"-safe.
    hpad_ref[...] = jnp.zeros(hpad_ref.shape, hpad_ref.dtype)
    hpad_ref[1:Hp + 1, 1:Wp + 1, :] = h1.astype(hpad_ref.dtype).reshape(Hp, Wp, Cout_p)

    acc = jnp.zeros((HW, Cout_p), jnp.float32)
    for dy in range(3):
        for dx in range(3):
            tap = hpad_ref[dy:dy + Hp, dx:dx + Wp, :].reshape(HW, Cout_p)
            acc = acc + jnp.dot(tap, w2_ref[dy * 3 + dx],
                                preferred_element_type=jnp.float32)

    z2_ref[0] = acc.astype(z2_ref.dtype)
    s2_ref[0] = jnp.concatenate(
        [jnp.sum(acc, axis=0, keepdims=True),
         jnp.sum(acc * acc, axis=0, keepdims=True)], axis=0)


def _bn_relu_out_kernel(s2_ref, z2_ref, o_ref):
    """Per batch band: global BN2 + ReLU -> lane-dense bf16 output slab."""
    Nb = s2_ref.shape[0]
    HW = z2_ref.shape[1]
    eps = 1e-5
    inv_m = 1.0 / float(Nb * HW)

    stats = jnp.sum(s2_ref[...], axis=0)
    mu = stats[0:1, :] * inv_m
    var = stats[1:2, :] * inv_m - mu * mu
    inv_sd = jax.lax.rsqrt(jnp.maximum(var, 0.0) + eps)

    o_ref[0] = jnp.maximum((z2_ref[0] - mu) * inv_sd, 0.0).astype(o_ref.dtype)


# --------------------------------------------------------------------------- wrapper


@jax.jit
def down_module(x_nchw, w1, b1, w2, b2):
    """DownModule forward. x_nchw: (N, Cin, H, W) f32 -> (N, Cout, H//2, W//2) f32.

    b1/b2 are accepted for interface parity but unused: a per-channel constant bias is
    exactly cancelled by the training-mode BatchNorm mean subtraction after each conv.
    """
    del b1, b2
    N, Cin, H, W = x_nchw.shape
    Cout = w1.shape[0]
    # PyTorch MaxPool2d(2) floors odd spatial dims; this fast path requires even H/W.
    assert H % 2 == 0 and W % 2 == 0, "down_module requires even H and W"
    Hp, Wp = H // 2, W // 2
    HW = Hp * Wp
    Cout_p = _round_up(Cout, 128)        # lane-dense channel width

    # --- layout glue (XLA, outside the kernels): NCHW -> NHWC, bf16, zero-pad H/W by 2 so
    #     the pooled array carries conv1's zero border, fold the 2x2 pool window x Cin into
    #     the lane dim.  Pure data movement, no compute hoisted.
    x = jnp.transpose(x_nchw, (0, 2, 3, 1)).astype(jnp.bfloat16)
    x = jnp.pad(x, ((0, 0), (2, 2), (2, 2), (0, 0)))
    x = x.reshape(N, Hp + 2, 2, Wp + 2, 2, Cin)
    x = jnp.transpose(x, (0, 1, 3, 2, 4, 5)).reshape(N, Hp + 2, Wp + 2, 4 * Cin)

    # torch (Cout, Cin, kh, kw) -> (kh*kw, Cin, Cout_p) bf16, output channels zero-padded.
    w1k = jnp.transpose(w1, (2, 3, 1, 0)).reshape(9, Cin, Cout)
    w1k = jnp.pad(w1k, ((0, 0), (0, 0), (0, Cout_p - Cout))).astype(jnp.bfloat16)
    w2k = jnp.transpose(w2, (2, 3, 1, 0)).reshape(9, Cout, Cout)
    w2k = jnp.pad(w2k, ((0, 0), (0, Cout_p - Cout), (0, Cout_p - Cout))).astype(jnp.bfloat16)

    cp = pltpu.CompilerParams(
        dimension_semantics=("parallel",),          # v7x: bands shard across the 2 TCs
        vmem_limit_bytes=48 * 1024 * 1024,          # headroom under v7x's 64 MiB VMEM
    )

    # --- Pass A: pool + conv1, per-band BN1 partials.
    z1, s1 = pl.pallas_call(
        _pool_conv1_kernel,
        out_shape=(jax.ShapeDtypeStruct((N, HW, Cout_p), jnp.float32),
                   jax.ShapeDtypeStruct((N, 2, Cout_p), jnp.float32)),
        grid=(N,),
        in_specs=[
            pl.BlockSpec((1, Hp + 2, Wp + 2, 4 * Cin), lambda n: (n, 0, 0, 0)),
            pl.BlockSpec((9, Cin, Cout_p), lambda n: (0, 0, 0)),
        ],
        out_specs=[
            pl.BlockSpec((1, HW, Cout_p), lambda n: (n, 0, 0)),
            pl.BlockSpec((1, 2, Cout_p), lambda n: (n, 0, 0)),
        ],
        compiler_params=cp,
    )(x, w1k)

    # --- Pass B: global BN1 + ReLU, conv2, per-band BN2 partials.
    z2, s2 = pl.pallas_call(
        _bn_conv2_kernel,
        out_shape=(jax.ShapeDtypeStruct((N, HW, Cout_p), jnp.float32),
                   jax.ShapeDtypeStruct((N, 2, Cout_p), jnp.float32)),
        grid=(N,),
        in_specs=[
            pl.BlockSpec((N, 2, Cout_p), lambda n: (0, 0, 0)),
            pl.BlockSpec((1, HW, Cout_p), lambda n: (n, 0, 0)),
            pl.BlockSpec((9, Cout_p, Cout_p), lambda n: (0, 0, 0)),
        ],
        out_specs=[
            pl.BlockSpec((1, HW, Cout_p), lambda n: (n, 0, 0)),
            pl.BlockSpec((1, 2, Cout_p), lambda n: (n, 0, 0)),
        ],
        scratch_shapes=[pltpu.VMEM((Hp + 2, Wp + 2, Cout_p), jnp.bfloat16)],
        compiler_params=cp,
    )(s1, z1, w2k)

    # --- Pass C: global BN2 + ReLU -> lane-dense bf16 slab (halved write-back).
    out_slab = pl.pallas_call(
        _bn_relu_out_kernel,
        out_shape=jax.ShapeDtypeStruct((N, HW, Cout_p), jnp.bfloat16),
        grid=(N,),
        in_specs=[
            pl.BlockSpec((N, 2, Cout_p), lambda n: (0, 0, 0)),
            pl.BlockSpec((1, HW, Cout_p), lambda n: (n, 0, 0)),
        ],
        out_specs=pl.BlockSpec((1, HW, Cout_p), lambda n: (n, 0, 0)),
        compiler_params=cp,
    )(s2, z2)

    # --- layout glue back: drop channel padding, cast f32, un-flatten, NHWC -> NCHW.
    out = out_slab[:, :, :Cout].astype(jnp.float32).reshape(N, Hp, Wp, Cout)
    return jnp.transpose(out, (0, 3, 1, 2))


# --------------------------------------------------------------------------- reference


def reference_down_module(x, w1, b1, w2, b2):
    """Pure-JAX/XLA reference in NCHW, mirroring the PyTorch forward (f32, HIGHEST)."""
    eps = 1e-5
    xp = jax.lax.reduce_window(x, -jnp.inf, jax.lax.max,
                               (1, 1, 2, 2), (1, 1, 2, 2), 'VALID')

    def conv_bn_relu(h, w, b):
        y = jax.lax.conv_general_dilated(
            h, w, window_strides=(1, 1), padding='SAME',
            dimension_numbers=('NCHW', 'OIHW', 'NCHW'),
            precision=jax.lax.Precision.HIGHEST)
        y = y + b[None, :, None, None]
        mu = jnp.mean(y, axis=(0, 2, 3), keepdims=True)
        var = jnp.mean((y - mu) ** 2, axis=(0, 2, 3), keepdims=True)
        return jnp.maximum((y - mu) / jnp.sqrt(var + eps), 0.0)

    return conv_bn_relu(conv_bn_relu(xp, w1, b1), w2, b2)


if __name__ == "__main__":
    N, Cin, Cout, H, W = 2, 4, 8, 16, 16

    key = jax.random.PRNGKey(0)
    k1, k2, k3, k4, kx = jax.random.split(key, 5)
    w1 = jax.random.normal(k1, (Cout, Cin, 3, 3), jnp.float32) * 0.2
    b1 = jax.random.normal(k2, (Cout,), jnp.float32) * 0.1
    w2 = jax.random.normal(k3, (Cout, Cout, 3, 3), jnp.float32) * 0.2
    b2 = jax.random.normal(k4, (Cout,), jnp.float32) * 0.1
    x = jax.random.normal(kx, (N, Cin, H, W), jnp.float32)

    out = jax.block_until_ready(down_module(x, w1, b1, w2, b2))
    ref = jax.block_until_ready(reference_down_module(x, w1, b1, w2, b2))

    assert out.shape == (N, Cout, H // 2, W // 2), out.shape
    # Kernel feeds the MXU bf16 (f32 accumulation) and emits a bf16 output slab;
    # reference is full-f32 HIGHEST.
    np.testing.assert_allclose(np.asarray(out), np.asarray(ref),
                               rtol=3e-2, atol=3e-2)

    print("KERNEL_OK")
</pallas_src>

<mosaic_0001>
module attributes {stable_mosaic.version = 11 : i64} {
  func.func @_pool_conv1_kernel(%arg0: i32, %arg1: memref<1x10x10x16xbf16, #tpu.memory_space<vmem>>, %arg2: memref<9x4x128xbf16, #tpu.memory_space<vmem>>, %arg3: memref<1x64x128xf32, #tpu.memory_space<vmem>>, %arg4: memref<1x2x128xf32, #tpu.memory_space<vmem>>) attributes {dimension_semantics = [#tpu.dimension_semantics<parallel>], iteration_bounds = array<i64: 2>, scalar_prefetch = 0 : i64, scratch_operands = 0 : i64, tpu.core_type = #tpu.core_type<tc>, window_params = [{transform_indices = @transform_0, window_bounds = array<i64: 1, 10, 10, 16>}, {pipeline_mode = #tpu.pipeline_mode<synchronous>, transform_indices = @transform_1, window_bounds = array<i64: 9, 4, 128>}, {transform_indices = @transform_2, window_bounds = array<i64: 1, 64, 128>}, {transform_indices = @transform_3, window_bounds = array<i64: 1, 2, 128>}]} {
    %c0 = arith.constant 0 : index
    %c0_0 = arith.constant 0 : index
    %c0_1 = arith.constant 0 : index
    %c0_2 = arith.constant 0 : index
    %0 = vector.load %arg1[%c0, %c0_0, %c0_1, %c0_2] : memref<1x10x10x16xbf16, #tpu.memory_space<vmem>>, vector<1x10x10x16xbf16>
    %1 = vector.shape_cast %0 : vector<1x10x10x16xbf16> to vector<10x10x16xbf16>
    %2 = vector.extract_strided_slice %1 {offsets = [0, 0, 0], sizes = [10, 10, 4], strides = [1, 1, 1]} : vector<10x10x16xbf16> to vector<10x10x4xbf16>
    %3 = vector.extract_strided_slice %1 {offsets = [0, 0, 4], sizes = [10, 10, 4], strides = [1, 1, 1]} : vector<10x10x16xbf16> to vector<10x10x4xbf16>
    %4 = arith.maximumf %2, %3 : vector<10x10x4xbf16>
    %5 = vector.extract_strided_slice %1 {offsets = [0, 0, 8], sizes = [10, 10, 4], strides = [1, 1, 1]} : vector<10x10x16xbf16> to vector<10x10x4xbf16>
    %6 = vector.extract_strided_slice %1 {offsets = [0, 0, 12], sizes = [10, 10, 4], strides = [1, 1, 1]} : vector<10x10x16xbf16> to vector<10x10x4xbf16>
    %7 = arith.maximumf %5, %6 : vector<10x10x4xbf16>
    %8 = arith.maximumf %4, %7 : vector<10x10x4xbf16>
    %cst = arith.constant 0.000000e+00 : f32
    %9 = vector.broadcast %cst : f32 to vector<64x128xf32>
    %10 = vector.extract_strided_slice %8 {offsets = [0, 0, 0], sizes = [8, 8, 4], strides = [1, 1, 1]} : vector<10x10x4xbf16> to vector<8x8x4xbf16>
    %11 = vector.shape_cast %10 : vector<8x8x4xbf16> to vector<64x4xbf16>
    %c0_3 = arith.constant 0 : index
    %c0_4 = arith.constant 0 : index
    %c0_5 = arith.constant 0 : index
    %12 = vector.load %arg2[%c0_3, %c0_4, %c0_5] : memref<9x4x128xbf16, #tpu.memory_space<vmem>>, vector<1x4x128xbf16>
    %13 = vector.shape_cast %12 : vector<1x4x128xbf16> to vector<4x128xbf16>
    %cst_6 = arith.constant dense<0.000000e+00> : vector<64x128xf32>
    %14 = tpu.matmul %11, %13, %cst_6 {dimension_numbers = #tpu.dot_dimension_numbers<[1], [0], [0], [1], [0, 0, 1, 1], [], []>} : vector<64x4xbf16>, vector<4x128xbf16>, vector<64x128xf32> -> vector<64x128xf32>
    %15 = arith.addf %9, %14 : vector<64x128xf32>
    %16 = vector.extract_strided_slice %8 {offsets = [0, 1, 0], sizes = [8, 8, 4], strides = [1, 1, 1]} : vector<10x10x4xbf16> to vector<8x8x4xbf16>
    %17 = vector.shape_cast %16 : vector<8x8x4xbf16> to vector<64x4xbf16>
    %c1 = arith.constant 1 : index
    %c0_7 = arith.constant 0 : index
    %c0_8 = arith.constant 0 : index
    %18 = vector.load %arg2[%c1, %c0_7, %c0_8] : memref<9x4x128xbf16, #tpu.memory_space<vmem>>, vector<1x4x128xbf16>
    %19 = vector.shape_cast %18 : vector<1x4x128xbf16> to vector<4x128xbf16>
    %cst_9 = arith.constant dense<0.000000e+00> : vector<64x128xf32>
    %20 = tpu.matmul %17, %19, %cst_9 {dimension_numbers = #tpu.dot_dimension_numbers<[1], [0], [0], [1], [0, 0, 1, 1], [], []>} : vector<64x4xbf16>, vector<4x128xbf16>, vector<64x128xf32> -> vector<64x128xf32>
    %21 = arith.addf %15, %20 : vector<64x128xf32>
    %22 = vector.extract_strided_slice %8 {offsets = [0, 2, 0], sizes = [8, 8, 4], strides = [1, 1, 1]} : vector<10x10x4xbf16> to vector<8x8x4xbf16>
    %23 = vector.shape_cast %22 : vector<8x8x4xbf16> to vector<64x4xbf16>
    %c2 = arith.constant 2 : index
    %c0_10 = arith.constant 0 : index
    %c0_11 = arith.constant 0 : index
    %24 = vector.load %arg2[%c2, %c0_10, %c0_11] : memref<9x4x128xbf16, #tpu.memory_space<vmem>>, vector<1x4x128xbf16>
    %25 = vector.shape_cast %24 : vector<1x4x128xbf16> to vector<4x128xbf16>
    %cst_12 = arith.constant dense<0.000000e+00> : vector<64x128xf32>
    %26 = tpu.matmul %23, %25, %cst_12 {dimension_numbers = #tpu.dot_dimension_numbers<[1], [0], [0], [1], [0, 0, 1, 1], [], []>} : vector<64x4xbf16>, vector<4x128xbf16>, vector<64x128xf32> -> vector<64x128xf32>
    %27 = arith.addf %21, %26 : vector<64x128xf32>
    %28 = vector.extract_strided_slice %8 {offsets = [1, 0, 0], sizes = [8, 8, 4], strides = [1, 1, 1]} : vector<10x10x4xbf16> to vector<8x8x4xbf16>
    %29 = vector.shape_cast %28 : vector<8x8x4xbf16> to vector<64x4xbf16>
    %c3 = arith.constant 3 : index
    %c0_13 = arith.constant 0 : index
    %c0_14 = arith.constant 0 : index
    %30 = vector.load %arg2[%c3, %c0_13, %c0_14] : memref<9x4x128xbf16, #tpu.memory_space<vmem>>, vector<1x4x128xbf16>
    %31 = vector.shape_cast %30 : vector<1x4x128xbf16> to vector<4x128xbf16>
    %cst_15 = arith.constant dense<0.000000e+00> : vector<64x128xf32>
    %32 = tpu.matmul %29, %31, %cst_15 {dimension_numbers = #tpu.dot_dimension_numbers<[1], [0], [0], [1], [0, 0, 1, 1], [], []>} : vector<64x4xbf16>, vector<4x128xbf16>, vector<64x128xf32> -> vector<64x128xf32>
    %33 = arith.addf %27, %32 : vector<64x128xf32>
    %34 = vector.extract_strided_slice %8 {offsets = [1, 1, 0], sizes = [8, 8, 4], strides = [1, 1, 1]} : vector<10x10x4xbf16> to vector<8x8x4xbf16>
    %35 = vector.shape_cast %34 : vector<8x8x4xbf16> to vector<64x4xbf16>
    %c4 = arith.constant 4 : index
    %c0_16 = arith.constant 0 : index
    %c0_17 = arith.constant 0 : index
    %36 = vector.load %arg2[%c4, %c0_16, %c0_17] : memref<9x4x128xbf16, #tpu.memory_space<vmem>>, vector<1x4x128xbf16>
    %37 = vector.shape_cast %36 : vector<1x4x128xbf16> to vector<4x128xbf16>
    %cst_18 = arith.constant dense<0.000000e+00> : vector<64x128xf32>
    %38 = tpu.matmul %35, %37, %cst_18 {dimension_numbers = #tpu.dot_dimension_numbers<[1], [0], [0], [1], [0, 0, 1, 1], [], []>} : vector<64x4xbf16>, vector<4x128xbf16>, vector<64x128xf32> -> vector<64x128xf32>
    %39 = arith.addf %33, %38 : vector<64x128xf32>
    %40 = vector.extract_strided_slice %8 {offsets = [1, 2, 0], sizes = [8, 8, 4], strides = [1, 1, 1]} : vector<10x10x4xbf16> to vector<8x8x4xbf16>
    %41 = vector.shape_cast %40 : vector<8x8x4xbf16> to vector<64x4xbf16>
    %c5 = arith.constant 5 : index
    %c0_19 = arith.constant 0 : index
    %c0_20 = arith.constant 0 : index
    %42 = vector.load %arg2[%c5, %c0_19, %c0_20] : memref<9x4x128xbf16, #tpu.memory_space<vmem>>, vector<1x4x128xbf16>
    %43 = vector.shape_cast %42 : vector<1x4x128xbf16> to vector<4x128xbf16>
    %cst_21 = arith.constant dense<0.000000e+00> : vector<64x128xf32>
    %44 = tpu.matmul %41, %43, %cst_21 {dimension_numbers = #tpu.dot_dimension_numbers<[1], [0], [0], [1], [0, 0, 1, 1], [], []>} : vector<64x4xbf16>, vector<4x128xbf16>, vector<64x128xf32> -> vector<64x128xf32>
    %45 = arith.addf %39, %44 : vector<64x128xf32>
    %46 = vector.extract_strided_slice %8 {offsets = [2, 0, 0], sizes = [8, 8, 4], strides = [1, 1, 1]} : vector<10x10x4xbf16> to vector<8x8x4xbf16>
    %47 = vector.shape_cast %46 : vector<8x8x4xbf16> to vector<64x4xbf16>
    %c6 = arith.constant 6 : index
    %c0_22 = arith.constant 0 : index
    %c0_23 = arith.constant 0 : index
    %48 = vector.load %arg2[%c6, %c0_22, %c0_23] : memref<9x4x128xbf16, #tpu.memory_space<vmem>>, vector<1x4x128xbf16>
    %49 = vector.shape_cast %48 : vector<1x4x128xbf16> to vector<4x128xbf16>
    %cst_24 = arith.constant dense<0.000000e+00> : vector<64x128xf32>
    %50 = tpu.matmul %47, %49, %cst_24 {dimension_numbers = #tpu.dot_dimension_numbers<[1], [0], [0], [1], [0, 0, 1, 1], [], []>} : vector<64x4xbf16>, vector<4x128xbf16>, vector<64x128xf32> -> vector<64x128xf32>
    %51 = arith.addf %45, %50 : vector<64x128xf32>
    %52 = vector.extract_strided_slice %8 {offsets = [2, 1, 0], sizes = [8, 8, 4], strides = [1, 1, 1]} : vector<10x10x4xbf16> to vector<8x8x4xbf16>
    %53 = vector.shape_cast %52 : vector<8x8x4xbf16> to vector<64x4xbf16>
    %c7 = arith.constant 7 : index
    %c0_25 = arith.constant 0 : index
    %c0_26 = arith.constant 0 : index
    %54 = vector.load %arg2[%c7, %c0_25, %c0_26] : memref<9x4x128xbf16, #tpu.memory_space<vmem>>, vector<1x4x128xbf16>
    %55 = vector.shape_cast %54 : vector<1x4x128xbf16> to vector<4x128xbf16>
    %cst_27 = arith.constant dense<0.000000e+00> : vector<64x128xf32>
    %56 = tpu.matmul %53, %55, %cst_27 {dimension_numbers = #tpu.dot_dimension_numbers<[1], [0], [0], [1], [0, 0, 1, 1], [], []>} : vector<64x4xbf16>, vector<4x128xbf16>, vector<64x128xf32> -> vector<64x128xf32>
    %57 = arith.addf %51, %56 : vector<64x128xf32>
    %58 = vector.extract_strided_slice %8 {offsets = [2, 2, 0], sizes = [8, 8, 4], strides = [1, 1, 1]} : vector<10x10x4xbf16> to vector<8x8x4xbf16>
    %59 = vector.shape_cast %58 : vector<8x8x4xbf16> to vector<64x4xbf16>
    %c8 = arith.constant 8 : index
    %c0_28 = arith.constant 0 : index
    %c0_29 = arith.constant 0 : index
    %60 = vector.load %arg2[%c8, %c0_28, %c0_29] : memref<9x4x128xbf16, #tpu.memory_space<vmem>>, vector<1x4x128xbf16>
    %61 = vector.shape_cast %60 : vector<1x4x128xbf16> to vector<4x128xbf16>
    %cst_30 = arith.constant dense<0.000000e+00> : vector<64x128xf32>
    %62 = tpu.matmul %59, %61, %cst_30 {dimension_numbers = #tpu.dot_dimension_numbers<[1], [0], [0], [1], [0, 0, 1, 1], [], []>} : vector<64x4xbf16>, vector<4x128xbf16>, vector<64x128xf32> -> vector<64x128xf32>
    %63 = arith.addf %57, %62 : vector<64x128xf32>
    %c0_31 = arith.constant 0 : index
    %c0_32 = arith.constant 0 : index
    %c0_33 = arith.constant 0 : index
    %64 = vector.load %arg3[%c0_31, %c0_32, %c0_33] : memref<1x64x128xf32, #tpu.memory_space<vmem>>, vector<1x64x128xf32>
    %65 = vector.shape_cast %64 : vector<1x64x128xf32> to vector<64x128xf32>
    %66 = vector.shape_cast %63 : vector<64x128xf32> to vector<1x64x128xf32>
    tpu.vector_store %arg3[%c0_31, %c0_32, %c0_33], %66 {strides = array<i32>} : memref<1x64x128xf32, #tpu.memory_space<vmem>>, vector<1x64x128xf32>,
    %cst_34 = arith.constant dense<0.000000e+00> : vector<128xf32>
    %67 = vector.multi_reduction <add>, %63, %cst_34 [0] : vector<64x128xf32> to vector<128xf32>
    %68 = vector.shape_cast %67 : vector<128xf32> to vector<1x128xf32>
    %69 = arith.mulf %63, %63 : vector<64x128xf32>
    %cst_35 = arith.constant dense<0.000000e+00> : vector<128xf32>
    %70 = vector.multi_reduction <add>, %69, %cst_35 [0] : vector<64x128xf32> to vector<128xf32>
    %71 = vector.shape_cast %70 : vector<128xf32> to vector<1x128xf32>
    %72 = tpu.concatenate %68, %71 in 0 : vector<1x128xf32>, vector<1x128xf32> -> vector<2x128xf32>
    %c0_36 = arith.constant 0 : index
    %c0_37 = arith.constant 0 : index
    %c0_38 = arith.constant 0 : index
    %73 = vector.load %arg4[%c0_36, %c0_37, %c0_38] : memref<1x2x128xf32, #tpu.memory_space<vmem>>, vector<1x2x128xf32>
    %74 = vector.shape_cast %73 : vector<1x2x128xf32> to vector<2x128xf32>
    %75 = vector.shape_cast %72 : vector<2x128xf32> to vector<1x2x128xf32>
    tpu.vector_store %arg4[%c0_36, %c0_37, %c0_38], %75 {strides = array<i32>} : memref<1x2x128xf32, #tpu.memory_space<vmem>>, vector<1x2x128xf32>,
    return
  }
  func.func @transform_0(%arg0: i32) -> (i32, i32, i32, i32) {
    %c0_i32 = arith.constant 0 : i32
    %c0_i32_0 = arith.constant 0 : i32
    %c0_i32_1 = arith.constant 0 : i32
    %c0_i32_2 = arith.constant 0 : i32
    return %arg0, %c0_i32, %c0_i32_0, %c0_i32_1 : i32, i32, i32, i32
  }
  func.func @transform_1(%arg0: i32) -> (i32, i32, i32) {
    %c0_i32 = arith.constant 0 : i32
    %c0_i32_0 = arith.constant 0 : i32
    %c0_i32_1 = arith.constant 0 : i32
    %c0_i32_2 = arith.constant 0 : i32
    return %c0_i32, %c0_i32_0, %c0_i32_1 : i32, i32, i32
  }
  func.func @transform_2(%arg0: i32) -> (i32, i32, i32) {
    %c0_i32 = arith.constant 0 : i32
    %c0_i32_0 = arith.constant 0 : i32
    %c0_i32_1 = arith.constant 0 : i32
    return %arg0, %c0_i32, %c0_i32_0 : i32, i32, i32
  }
  func.func @transform_3(%arg0: i32) -> (i32, i32, i32) {
    %c0_i32 = arith.constant 0 : i32
    %c0_i32_0 = arith.constant 0 : i32
    %c0_i32_1 = arith.constant 0 : i32
    return %arg0, %c0_i32, %c0_i32_0 : i32, i32, i32
  }
}

module attributes {stable_mosaic.version = 11 : i64} {
  func.func @_bn_conv2_kernel(%arg0: i32, %arg1: memref<2x2x128xf32, #tpu.memory_space<vmem>>, %arg2: memref<1x64x128xf32, #tpu.memory_space<vmem>>, %arg3: memref<9x128x128xbf16, #tpu.memory_space<vmem>>, %arg4: memref<1x64x128xf32, #tpu.memory_space<vmem>>, %arg5: memref<1x2x128xf32, #tpu.memory_space<vmem>>, %arg6: memref<10x10x128xbf16, #tpu.memory_space<vmem>>) attributes {dimension_semantics = [#tpu.dimension_semantics<parallel>], iteration_bounds = array<i64: 2>, scalar_prefetch = 0 : i64, scratch_operands = 1 : i64, tpu.core_type = #tpu.core_type<tc>, window_params = [{pipeline_mode = #tpu.pipeline_mode<synchronous>, transform_indices = @transform_0, window_bounds = array<i64: 2, 2, 128>}, {transform_indices = @transform_1, window_bounds = array<i64: 1, 64, 128>}, {pipeline_mode = #tpu.pipeline_mode<synchronous>, transform_indices = @transform_2, window_bounds = array<i64: 9, 128, 128>}, {transform_indices = @transform_3, window_bounds = array<i64: 1, 64, 128>}, {transform_indices = @transform_4, window_bounds = array<i64: 1, 2, 128>}]} {
    %c0 = arith.constant 0 : index
    %c0_0 = arith.constant 0 : index
    %c0_1 = arith.constant 0 : index
    %0 = vector.load %arg1[%c0, %c0_0, %c0_1] : memref<2x2x128xf32, #tpu.memory_space<vmem>>, vector<2x2x128xf32>
    %cst = arith.constant dense<0.000000e+00> : vector<2x128xf32>
    %1 = vector.multi_reduction <add>, %0, %cst [0] : vector<2x2x128xf32> to vector<2x128xf32>
    %2 = vector.extract_strided_slice %1 {offsets = [0, 0], sizes = [1, 128], strides = [1, 1]} : vector<2x128xf32> to vector<1x128xf32>
    %cst_2 = arith.constant 7.812500e-03 : f32
    %3 = vector.broadcast %cst_2 : f32 to vector<1x128xf32>
    %4 = arith.mulf %2, %3 : vector<1x128xf32>
    %5 = vector.extract_strided_slice %1 {offsets = [1, 0], sizes = [1, 128], strides = [1, 1]} : vector<2x128xf32> to vector<1x128xf32>
    %cst_3 = arith.constant 7.812500e-03 : f32
    %6 = vector.broadcast %cst_3 : f32 to vector<1x128xf32>
    %7 = arith.mulf %5, %6 : vector<1x128xf32>
    %8 = arith.mulf %4, %4 : vector<1x128xf32>
    %9 = arith.subf %7, %8 : vector<1x128xf32>
    %cst_4 = arith.constant 0.000000e+00 : f32
    %10 = vector.broadcast %cst_4 : f32 to vector<1x128xf32>
    %11 = arith.maximumf %9, %10 : vector<1x128xf32>
    %cst_5 = arith.constant 9.99999974E-6 : f32
    %12 = vector.broadcast %cst_5 : f32 to vector<1x128xf32>
    %13 = arith.addf %11, %12 : vector<1x128xf32>
    %14 = math.rsqrt %13 : vector<1x128xf32>
    %c0_6 = arith.constant 0 : index
    %c0_7 = arith.constant 0 : index
    %c0_8 = arith.constant 0 : index
    %15 = vector.load %arg2[%c0_6, %c0_7, %c0_8] : memref<1x64x128xf32, #tpu.memory_space<vmem>>, vector<1x64x128xf32>
    %16 = vector.shape_cast %15 : vector<1x64x128xf32> to vector<64x128xf32>
    %17 = vector.broadcast %4 : vector<1x128xf32> to vector<64x128xf32>
    %18 = arith.subf %16, %17 : vector<64x128xf32>
    %19 = vector.broadcast %14 : vector<1x128xf32> to vector<64x128xf32>
    %20 = arith.mulf %18, %19 : vector<64x128xf32>
    %cst_9 = arith.constant 0.000000e+00 : f32
    %21 = vector.broadcast %cst_9 : f32 to vector<64x128xf32>
    %22 = arith.maximumf %20, %21 : vector<64x128xf32>
    %cst_10 = arith.constant 0.000000e+00 : bf16
    %23 = vector.broadcast %cst_10 : bf16 to vector<10x10x128xbf16>
    %c0_11 = arith.constant 0 : index
    %c0_12 = arith.constant 0 : index
    %c0_13 = arith.constant 0 : index
    %24 = vector.load %arg6[%c0_11, %c0_12, %c0_13] : memref<10x10x128xbf16, #tpu.memory_space<vmem>>, vector<10x10x128xbf16>
    tpu.vector_store %arg6[%c0_11, %c0_12, %c0_13], %23 {strides = array<i32>} : memref<10x10x128xbf16, #tpu.memory_space<vmem>>, vector<10x10x128xbf16>,
    %25 = arith.truncf %22 : vector<64x128xf32> to vector<64x128xbf16>
    %26 = vector.shape_cast %25 : vector<64x128xbf16> to vector<8x8x128xbf16>
    %c1 = arith.constant 1 : index
    %c1_14 = arith.constant 1 : index
    %c0_15 = arith.constant 0 : index
    %27 = vector.load %arg6[%c1, %c1_14, %c0_15] : memref<10x10x128xbf16, #tpu.memory_space<vmem>>, vector<8x8x128xbf16>
    tpu.vector_store %arg6[%c1, %c1_14, %c0_15], %26 {strides = array<i32>} : memref<10x10x128xbf16, #tpu.memory_space<vmem>>, vector<8x8x128xbf16>,
    %cst_16 = arith.constant 0.000000e+00 : f32
    %28 = vector.broadcast %cst_16 : f32 to vector<64x128xf32>
    %c0_17 = arith.constant 0 : index
    %c0_18 = arith.constant 0 : index
    %c0_19 = arith.constant 0 : index
    %29 = vector.load %arg6[%c0_17, %c0_18, %c0_19] : memref<10x10x128xbf16, #tpu.memory_space<vmem>>, vector<8x8x128xbf16>
    %30 = vector.shape_cast %29 : vector<8x8x128xbf16> to vector<64x128xbf16>
    %c0_20 = arith.constant 0 : index
    %c0_21 = arith.constant 0 : index
    %c0_22 = arith.constant 0 : index
    %31 = vector.load %arg3[%c0_20, %c0_21, %c0_22] : memref<9x128x128xbf16, #tpu.memory_space<vmem>>, vector<1x128x128xbf16>
    %32 = vector.shape_cast %31 : vector<1x128x128xbf16> to vector<128x128xbf16>
    %cst_23 = arith.constant dense<0.000000e+00> : vector<64x128xf32>
    %33 = tpu.matmul %30, %32, %cst_23 {dimension_numbers = #tpu.dot_dimension_numbers<[1], [0], [0], [1], [0, 0, 1, 1], [], []>} : vector<64x128xbf16>, vector<128x128xbf16>, vector<64x128xf32> -> vector<64x128xf32>
    %34 = arith.addf %28, %33 : vector<64x128xf32>
    %c0_24 = arith.constant 0 : index
    %c1_25 = arith.constant 1 : index
    %c0_26 = arith.constant 0 : index
    %35 = vector.load %arg6[%c0_24, %c1_25, %c0_26] : memref<10x10x128xbf16, #tpu.memory_space<vmem>>, vector<8x8x128xbf16>
    %36 = vector.shape_cast %35 : vector<8x8x128xbf16> to vector<64x128xbf16>
    %c1_27 = arith.constant 1 : index
    %c0_28 = arith.constant 0 : index
    %c0_29 = arith.constant 0 : index
    %37 = vector.load %arg3[%c1_27, %c0_28, %c0_29] : memref<9x128x128xbf16, #tpu.memory_space<vmem>>, vector<1x128x128xbf16>
    %38 = vector.shape_cast %37 : vector<1x128x128xbf16> to vector<128x128xbf16>
    %cst_30 = arith.constant dense<0.000000e+00> : vector<64x128xf32>
    %39 = tpu.matmul %36, %38, %cst_30 {dimension_numbers = #tpu.dot_dimension_numbers<[1], [0], [0], [1], [0, 0, 1, 1], [], []>} : vector<64x128xbf16>, vector<128x128xbf16>, vector<64x128xf32> -> vector<64x128xf32>
    %40 = arith.addf %34, %39 : vector<64x128xf32>
    %c0_31 = arith.constant 0 : index
    %c2 = arith.constant 2 : index
    %c0_32 = arith.constant 0 : index
    %41 = vector.load %arg6[%c0_31, %c2, %c0_32] : memref<10x10x128xbf16, #tpu.memory_space<vmem>>, vector<8x8x128xbf16>
    %42 = vector.shape_cast %41 : vector<8x8x128xbf16> to vector<64x128xbf16>
    %c2_33 = arith.constant 2 : index
    %c0_34 = arith.constant 0 : index
    %c0_35 = arith.constant 0 : index
    %43 = vector.load %arg3[%c2_33, %c0_34, %c0_35] : memref<9x128x128xbf16, #tpu.memory_space<vmem>>, vector<1x128x128xbf16>
    %44 = vector.shape_cast %43 : vector<1x128x128xbf16> to vector<128x128xbf16>
    %cst_36 = arith.constant dense<0.000000e+00> : vector<64x128xf32>
    %45 = tpu.matmul %42, %44, %cst_36 {dimension_numbers = #tpu.dot_dimension_numbers<[1], [0], [0], [1], [0, 0, 1, 1], [], []>} : vector<64x128xbf16>, vector<128x128xbf16>, vector<64x128xf32> -> vector<64x128xf32>
    %46 = arith.addf %40, %45 : vector<64x128xf32>
    %c1_37 = arith.constant 1 : index
    %c0_38 = arith.constant 0 : index
    %c0_39 = arith.constant 0 : index
    %47 = vector.load %arg6[%c1_37, %c0_38, %c0_39] : memref<10x10x128xbf16, #tpu.memory_space<vmem>>, vector<8x8x128xbf16>
    %48 = vector.shape_cast %47 : vector<8x8x128xbf16> to vector<64x128xbf16>
    %c3 = arith.constant 3 : index
    %c0_40 = arith.constant 0 : index
    %c0_41 = arith.constant 0 : index
    %49 = vector.load %arg3[%c3, %c0_40, %c0_41] : memref<9x128x128xbf16, #tpu.memory_space<vmem>>, vector<1x128x128xbf16>
    %50 = vector.shape_cast %49 : vector<1x128x128xbf16> to vector<128x128xbf16>
    %cst_42 = arith.constant dense<0.000000e+00> : vector<64x128xf32>
    %51 = tpu.matmul %48, %50, %cst_42 {dimension_numbers = #tpu.dot_dimension_numbers<[1], [0], [0], [1], [0, 0, 1, 1], [], []>} : vector<64x128xbf16>, vector<128x128xbf16>, vector<64x128xf32> -> vector<64x128xf32>
    %52 = arith.addf %46, %51 : vector<64x128xf32>
    %c1_43 = arith.constant 1 : index
    %c1_44 = arith.constant 1 : index
    %c0_45 = arith.constant 0 : index
    %53 = vector.load %arg6[%c1_43, %c1_44, %c0_45] : memref<10x10x128xbf16, #tpu.memory_space<vmem>>, vector<8x8x128xbf16>
    %54 = vector.shape_cast %53 : vector<8x8x128xbf16> to vector<64x128xbf16>
    %c4 = arith.constant 4 : index
    %c0_46 = arith.constant 0 : index
    %c0_47 = arith.constant 0 : index
    %55 = vector.load %arg3[%c4, %c0_46, %c0_47] : memref<9x128x128xbf16, #tpu.memory_space<vmem>>, vector<1x128x128xbf16>
    %56 = vector.shape_cast %55 : vector<1x128x128xbf16> to vector<128x128xbf16>
    %cst_48 = arith.constant dense<0.000000e+00> : vector<64x128xf32>
    %57 = tpu.matmul %54, %56, %cst_48 {dimension_numbers = #tpu.dot_dimension_numbers<[1], [0], [0], [1], [0, 0, 1, 1], [], []>} : vector<64x128xbf16>, vector<128x128xbf16>, vector<64x128xf32> -> vector<64x128xf32>
    %58 = arith.addf %52, %57 : vector<64x128xf32>
    %c1_49 = arith.constant 1 : index
    %c2_50 = arith.constant 2 : index
    %c0_51 = arith.constant 0 : index
    %59 = vector.load %arg6[%c1_49, %c2_50, %c0_51] : memref<10x10x128xbf16, #tpu.memory_space<vmem>>, vector<8x8x128xbf16>
    %60 = vector.shape_cast %59 : vector<8x8x128xbf16> to vector<64x128xbf16>
    %c5 = arith.constant 5 : index
    %c0_52 = arith.constant 0 : index
    %c0_53 = arith.constant 0 : index
    %61 = vector.load %arg3[%c5, %c0_52, %c0_53] : memref<9x128x128xbf16, #tpu.memory_space<vmem>>, vector<1x128x128xbf16>
    %62 = vector.shape_cast %61 : vector<1x128x128xbf16> to vector<128x128xbf16>
    %cst_54 = arith.constant dense<0.000000e+00> : vector<64x128xf32>
    %63 = tpu.matmul %60, %62, %cst_54 {dimension_numbers = #tpu.dot_dimension_numbers<[1], [0], [0], [1], [0, 0, 1, 1], [], []>} : vector<64x128xbf16>, vector<128x128xbf16>, vector<64x128xf32> -> vector<64x128xf32>
    %64 = arith.addf %58, %63 : vector<64x128xf32>
    %c2_55 = arith.constant 2 : index
    %c0_56 = arith.constant 0 : index
    %c0_57 = arith.constant 0 : index
    %65 = vector.load %arg6[%c2_55, %c0_56, %c0_57] : memref<10x10x128xbf16, #tpu.memory_space<vmem>>, vector<8x8x128xbf16>
    %66 = vector.shape_cast %65 : vector<8x8x128xbf16> to vector<64x128xbf16>
    %c6 = arith.constant 6 : index
    %c0_58 = arith.constant 0 : index
    %c0_59 = arith.constant 0 : index
    %67 = vector.load %arg3[%c6, %c0_58, %c0_59] : memref<9x128x128xbf16, #tpu.memory_space<vmem>>, vector<1x128x128xbf16>
    %68 = vector.shape_cast %67 : vector<1x128x128xbf16> to vector<128x128xbf16>
    %cst_60 = arith.constant dense<0.000000e+00> : vector<64x128xf32>
    %69 = tpu.matmul %66, %68, %cst_60 {dimension_numbers = #tpu.dot_dimension_numbers<[1], [0], [0], [1], [0, 0, 1, 1], [], []>} : vector<64x128xbf16>, vector<128x128xbf16>, vector<64x128xf32> -> vector<64x128xf32>
    %70 = arith.addf %64, %69 : vector<64x128xf32>
    %c2_61 = arith.constant 2 : index
    %c1_62 = arith.constant 1 : index
    %c0_63 = arith.constant 0 : index
    %71 = vector.load %arg6[%c2_61, %c1_62, %c0_63] : memref<10x10x128xbf16, #tpu.memory_space<vmem>>, vector<8x8x128xbf16>
    %72 = vector.shape_cast %71 : vector<8x8x128xbf16> to vector<64x128xbf16>
    %c7 = arith.constant 7 : index
    %c0_64 = arith.constant 0 : index
    %c0_65 = arith.constant 0 : index
    %73 = vector.load %arg3[%c7, %c0_64, %c0_65] : memref<9x128x128xbf16, #tpu.memory_space<vmem>>, vector<1x128x128xbf16>
    %74 = vector.shape_cast %73 : vector<1x128x128xbf16> to vector<128x128xbf16>
    %cst_66 = arith.constant dense<0.000000e+00> : vector<64x128xf32>
    %75 = tpu.matmul %72, %74, %cst_66 {dimension_numbers = #tpu.dot_dimension_numbers<[1], [0], [0], [1], [0, 0, 1, 1], [], []>} : vector<64x128xbf16>, vector<128x128xbf16>, vector<64x128xf32> -> vector<64x128xf32>
    %76 = arith.addf %70, %75 : vector<64x128xf32>
    %c2_67 = arith.constant 2 : index
    %c2_68 = arith.constant 2 : index
    %c0_69 = arith.constant 0 : index
    %77 = vector.load %arg6[%c2_67, %c2_68, %c0_69] : memref<10x10x128xbf16, #tpu.memory_space<vmem>>, vector<8x8x128xbf16>
    %78 = vector.shape_cast %77 : vector<8x8x128xbf16> to vector<64x128xbf16>
    %c8 = arith.constant 8 : index
    %c0_70 = arith.constant 0 : index
    %c0_71 = arith.constant 0 : index
    %79 = vector.load %arg3[%c8, %c0_70, %c0_71] : memref<9x128x128xbf16, #tpu.memory_space<vmem>>, vector<1x128x128xbf16>
    %80 = vector.shape_cast %79 : vector<1x128x128xbf16> to vector<128x128xbf16>
    %cst_72 = arith.constant dense<0.000000e+00> : vector<64x128xf32>
    %81 = tpu.matmul %78, %80, %cst_72 {dimension_numbers = #tpu.dot_dimension_numbers<[1], [0], [0], [1], [0, 0, 1, 1], [], []>} : vector<64x128xbf16>, vector<128x128xbf16>, vector<64x128xf32> -> vector<64x128xf32>
    %82 = arith.addf %76, %81 : vector<64x128xf32>
    %c0_73 = arith.constant 0 : index
    %c0_74 = arith.constant 0 : index
    %c0_75 = arith.constant 0 : index
    %83 = vector.load %arg4[%c0_73, %c0_74, %c0_75] : memref<1x64x128xf32, #tpu.memory_space<vmem>>, vector<1x64x128xf32>
    %84 = vector.shape_cast %83 : vector<1x64x128xf32> to vector<64x128xf32>
    %85 = vector.shape_cast %82 : vector<64x128xf32> to vector<1x64x128xf32>
    tpu.vector_store %arg4[%c0_73, %c0_74, %c0_75], %85 {strides = array<i32>} : memref<1x64x128xf32, #tpu.memory_space<vmem>>, vector<1x64x128xf32>,
    %cst_76 = arith.constant dense<0.000000e+00> : vector<128xf32>
    %86 = vector.multi_reduction <add>, %82, %cst_76 [0] : vector<64x128xf32> to vector<128xf32>
    %87 = vector.shape_cast %86 : vector<128xf32> to vector<1x128xf32>
    %88 = arith.mulf %82, %82 : vector<64x128xf32>
    %cst_77 = arith.constant dense<0.000000e+00> : vector<128xf32>
    %89 = vector.multi_reduction <add>, %88, %cst_77 [0] : vector<64x128xf32> to vector<128xf32>
    %90 = vector.shape_cast %89 : vector<128xf32> to vector<1x128xf32>
    %91 = tpu.concatenate %87, %90 in 0 : vector<1x128xf32>, vector<1x128xf32> -> vector<2x128xf32>
    %c0_78 = arith.constant 0 : index
    %c0_79 = arith.constant 0 : index
    %c0_80 = arith.constant 0 : index
    %92 = vector.load %arg5[%c0_78, %c0_79, %c0_80] : memref<1x2x128xf32, #tpu.memory_space<vmem>>, vector<1x2x128xf32>
    %93 = vector.shape_cast %92 : vector<1x2x128xf32> to vector<2x128xf32>
    %94 = vector.shape_cast %91 : vector<2x128xf32> to vector<1x2x128xf32>
    tpu.vector_store %arg5[%c0_78, %c0_79, %c0_80], %94 {strides = array<i32>} : memref<1x2x128xf32, #tpu.memory_space<vmem>>, vector<1x2x128xf32>,
    return
  }
  func.func @transform_0(%arg0: i32) -> (i32, i32, i32) {
    %c0_i32 = arith.constant 0 : i32
    %c0_i32_0 = arith.constant 0 : i32
    %c0_i32_1 = arith.constant 0 : i32
    %c0_i32_2 = arith.constant 0 : i32
    return %c0_i32, %c0_i32_0, %c0_i32_1 : i32, i32, i32
  }
  func.func @transform_1(%arg0: i32) -> (i32, i32, i32) {
    %c0_i32 = arith.constant 0 : i32
    %c0_i32_0 = arith.constant 0 : i32
    %c0_i32_1 = arith.constant 0 : i32
    return %arg0, %c0_i32, %c0_i32_0 : i32, i32, i32
  }
  func.func @transform_2(%arg0: i32) -> (i32, i32, i32) {
    %c0_i32 = arith.constant 0 : i32
    %c0_i32_0 = arith.constant 0 : i32
    %c0_i32_1 = arith.constant 0 : i32
    %c0_i32_2 = arith.constant 0 : i32
    return %c0_i32, %c0_i32_0, %c0_i32_1 : i32, i32, i32
  }
  func.func @transform_3(%arg0: i32) -> (i32, i32, i32) {
    %c0_i32 = arith.constant 0 : i32
    %c0_i32_0 = arith.constant 0 : i32
    %c0_i32_1 = arith.constant 0 : i32
    return %arg0, %c0_i32, %c0_i32_0 : i32, i32, i32
  }
  func.func @transform_4(%arg0: i32) -> (i32, i32, i32) {
    %c0_i32 = arith.constant 0 : i32
    %c0_i32_0 = arith.constant 0 : i32
    %c0_i32_1 = arith.constant 0 : i32
    return %arg0, %c0_i32, %c0_i32_0 : i32, i32, i32
  }
}

module attributes {stable_mosaic.version = 11 : i64} {
  func.func @_bn_relu_out_kernel(%arg0: i32, %arg1: memref<2x2x128xf32, #tpu.memory_space<vmem>>, %arg2: memref<1x64x128xf32, #tpu.memory_space<vmem>>, %arg3: memref<1x64x128xbf16, #tpu.memory_space<vmem>>) attributes {dimension_semantics = [#tpu.dimension_semantics<parallel>], iteration_bounds = array<i64: 2>, scalar_prefetch = 0 : i64, scratch_operands = 0 : i64, tpu.core_type = #tpu.core_type<tc>, window_params = [{pipeline_mode = #tpu.pipeline_mode<synchronous>, transform_indices = @transform_0, window_bounds = array<i64: 2, 2, 128>}, {transform_indices = @transform_1, window_bounds = array<i64: 1, 64, 128>}, {transform_indices = @transform_2, window_bounds = array<i64: 1, 64, 128>}]} {
    %c0 = arith.constant 0 : index
    %c0_0 = arith.constant 0 : index
    %c0_1 = arith.constant 0 : index
    %0 = vector.load %arg1[%c0, %c0_0, %c0_1] : memref<2x2x128xf32, #tpu.memory_space<vmem>>, vector<2x2x128xf32>
    %cst = arith.constant dense<0.000000e+00> : vector<2x128xf32>
    %1 = vector.multi_reduction <add>, %0, %cst [0] : vector<2x2x128xf32> to vector<2x128xf32>
    %2 = vector.extract_strided_slice %1 {offsets = [0, 0], sizes = [1, 128], strides = [1, 1]} : vector<2x128xf32> to vector<1x128xf32>
    %cst_2 = arith.constant 7.812500e-03 : f32
    %3 = vector.broadcast %cst_2 : f32 to vector<1x128xf32>
    %4 = arith.mulf %2, %3 : vector<1x128xf32>
    %5 = vector.extract_strided_slice %1 {offsets = [1, 0], sizes = [1, 128], strides = [1, 1]} : vector<2x128xf32> to vector<1x128xf32>
    %cst_3 = arith.constant 7.812500e-03 : f32
    %6 = vector.broadcast %cst_3 : f32 to vector<1x128xf32>
    %7 = arith.mulf %5, %6 : vector<1x128xf32>
    %8 = arith.mulf %4, %4 : vector<1x128xf32>
    %9 = arith.subf %7, %8 : vector<1x128xf32>
    %cst_4 = arith.constant 0.000000e+00 : f32
    %10 = vector.broadcast %cst_4 : f32 to vector<1x128xf32>
    %11 = arith.maximumf %9, %10 : vector<1x128xf32>
    %cst_5 = arith.constant 9.99999974E-6 : f32
    %12 = vector.broadcast %cst_5 : f32 to vector<1x128xf32>
    %13 = arith.addf %11, %12 : vector<1x128xf32>
    %14 = math.rsqrt %13 : vector<1x128xf32>
    %c0_6 = arith.constant 0 : index
    %c0_7 = arith.constant 0 : index
    %c0_8 = arith.constant 0 : index
    %15 = vector.load %arg2[%c0_6, %c0_7, %c0_8] : memref<1x64x128xf32, #tpu.memory_space<vmem>>, vector<1x64x128xf32>
    %16 = vector.shape_cast %15 : vector<1x64x128xf32> to vector<64x128xf32>
    %17 = vector.broadcast %4 : vector<1x128xf32> to vector<64x128xf32>
    %18 = arith.subf %16, %17 : vector<64x128xf32>
    %19 = vector.broadcast %14 : vector<1x128xf32> to vector<64x128xf32>
    %20 = arith.mulf %18, %19 : vector<64x128xf32>
    %cst_9 = arith.constant 0.000000e+00 : f32
    %21 = vector.broadcast %cst_9 : f32 to vector<64x128xf32>
    %22 = arith.maximumf %20, %21 : vector<64x128xf32>
    %23 = arith.truncf %22 : vector<64x128xf32> to vector<64x128xbf16>
    %c0_10 = arith.constant 0 : index
    %c0_11 = arith.constant 0 : index
    %c0_12 = arith.constant 0 : index
    %24 = vector.load %arg3[%c0_10, %c0_11, %c0_12] : memref<1x64x128xbf16, #tpu.memory_space<vmem>>, vector<1x64x128xbf16>
    %25 = vector.shape_cast %24 : vector<1x64x128xbf16> to vector<64x128xbf16>
    %26 = vector.shape_cast %23 : vector<64x128xbf16> to vector<1x64x128xbf16>
    tpu.vector_store %arg3[%c0_10, %c0_11, %c0_12], %26 {strides = array<i32>} : memref<1x64x128xbf16, #tpu.memory_space<vmem>>, vector<1x64x128xbf16>,
    return
  }
  func.func @transform_0(%arg0: i32) -> (i32, i32, i32) {
    %c0_i32 = arith.constant 0 : i32
    %c0_i32_0 = arith.constant 0 : i32
    %c0_i32_1 = arith.constant 0 : i32
    %c0_i32_2 = arith.constant 0 : i32
    return %c0_i32, %c0_i32_0, %c0_i32_1 : i32, i32, i32
  }
  func.func @transform_1(%arg0: i32) -> (i32, i32, i32) {
    %c0_i32 = arith.constant 0 : i32
    %c0_i32_0 = arith.constant 0 : i32
    %c0_i32_1 = arith.constant 0 : i32
    return %arg0, %c0_i32, %c0_i32_0 : i32, i32, i32
  }
  func.func @transform_2(%arg0: i32) -> (i32, i32, i32) {
    %c0_i32 = arith.constant 0 : i32
    %c0_i32_0 = arith.constant 0 : i32
    %c0_i32_1 = arith.constant 0 : i32
    return %arg0, %c0_i32, %c0_i32_0 : i32, i32, i32
  }
}

</mosaic_0001>

<llo_original>
// kernel: down_module.5
$region0: #{down_module.5}
  #allocation0 [shape = 'u32[]', space=smem, size = 0x4, offset = 0x4, fixed_abs, tag = 'smem constant byte address 0x4 - core index']
  #allocation1 [shape = 'u32[144,128]{1,0:T(1,128)}', space=vmem, size = 0x12000, scoped, tag = 'internal scratch']
  %s0 = inlined_call_operand.vmem [shape: f32[2,2,128], index: 0, kind: input, shape index: {}]
  %s1 = inlined_call_operand.vmem [shape: f32[2,64,128], index: 1, kind: input, shape index: {}]
  %s2 = inlined_call_operand.vmem [shape: bf16[2,64,128], index: 2, kind: output, shape index: {}]
  %s3 = sld [smem:[#allocation0]]
  $region41: #{down_module.5} parent=0
    _
  %s5 = ssub.s32 1, %s3
  %s6 = scalar_select 0, %s5, %s3
  loop: start=0, step=1, limit=4
  $region2: #{down_module.5} parent=0 // loop_pre_header
    _
  $region3: #{down_module.5} parent=0 // loop_header
    %s8 = sphi 0, %s12
    %p9 = scmp.ge.s32.totalorder %s8, 4
    %s16 = sphi 0, %s16
    %s18 = sphi 0, %s16
    %s19 = sphi 0, %s18
    %s33 = sphi 0, %s19
    %s39 = sphi 0, %s41
    %s42 = sphi 0, %s39
    %s43 = sphi 0, %s42
    %s59 = sphi 0, %s43
    %s65 = sphi 0, %s67
    %s68 = sphi 0, %s65
    %s69 = sphi 0, %s68
    %s85 = sphi 0, %s69
  $region4: #{down_module.5} parent=0 // loop_header_branch
    %11 = sbr.rel (%p9) target = $region8
  $region5: #{down_module.5} parent=0 // loop_body
    %s13 = ssub.s32 %s8, 1
    %s14 = ssub.s32 %s8, 2
    %s15 = sadd.s32 %s8, 1
    %s17 = sadd.s32 %s16, 1
    %p20 = scmp.eq.s32.totalorder %s8, 1
    %p21 = scmp.ne.s32.totalorder %s16, %s18
    %p22 = scmp.eq.s32.totalorder %s8, 0
    %p23 = por %p21, %p22
    %p24 = scmp.ne.s32.totalorder %s16, %s18
    %p25 = scmp.eq.s32.totalorder %s13, 1
    %p26 = por %p24, %p25
    %p27 = scmp.ne.s32.totalorder %s18, %s19
    %p28 = scmp.eq.s32.totalorder %s13, 0
    %p29 = por %p27, %p28
    %p30 = scmp.ne.s32.totalorder %s18, %s19
    %p31 = scmp.eq.s32.totalorder %s14, 1
    %p32 = por %p30, %p31
    %p34 = scmp.ne.s32.totalorder %s19, %s33
    %p35 = scmp.eq.s32.totalorder %s14, 0
    %p36 = por %p34, %p35
    %s37 = ssub.s32 %s8, %s15
    %p38 = scmp.eq.s32.totalorder %s37, 0
    %s40 = sadd.s32 %s39, 1
    %s41 = scalar_select %p38, %s39, %s40
    %p44 = pneg %p38
    %p45 = scmp.eq.s32.totalorder %s8, 1
    %p46 = por %p44, %p45
    %p47 = scmp.ne.s32.totalorder %s39, %s42
    %p48 = scmp.eq.s32.totalorder %s8, 0
    %p49 = por %p47, %p48
    %p50 = scmp.ne.s32.totalorder %s39, %s42
    %p51 = scmp.eq.s32.totalorder %s13, 1
    %p52 = por %p50, %p51
    %p53 = scmp.ne.s32.totalorder %s42, %s43
    %p54 = scmp.eq.s32.totalorder %s13, 0
    %p55 = por %p53, %p54
    %p56 = scmp.ne.s32.totalorder %s42, %s43
    %p57 = scmp.eq.s32.totalorder %s14, 1
    %p58 = por %p56, %p57
    %p60 = scmp.ne.s32.totalorder %s43, %s59
    %p61 = scmp.eq.s32.totalorder %s14, 0
    %p62 = por %p60, %p61
    %s63 = ssub.s32 %s8, %s15
    %p64 = scmp.eq.s32.totalorder %s63, 0
    %s66 = sadd.s32 %s65, 1
    %s67 = scalar_select %p64, %s65, %s66
    %p70 = pneg %p64
    %p71 = scmp.eq.s32.totalorder %s8, 1
    %p72 = por %p70, %p71
    %p73 = scmp.ne.s32.totalorder %s65, %s68
    %p74 = scmp.eq.s32.totalorder %s8, 0
    %p75 = por %p73, %p74
    %p76 = scmp.ne.s32.totalorder %s65, %s68
    %p77 = scmp.eq.s32.totalorder %s13, 1
    %p78 = por %p76, %p77
    %p79 = scmp.ne.s32.totalorder %s68, %s69
    %p80 = scmp.eq.s32.totalorder %s13, 0
    %p81 = por %p79, %p80
    %p82 = scmp.ne.s32.totalorder %s68, %s69
    %p83 = scmp.eq.s32.totalorder %s14, 1
    %p84 = por %p82, %p83
    %p86 = scmp.ne.s32.totalorder %s69, %s85
    %p87 = scmp.eq.s32.totalorder %s14, 0
    %p88 = por %p86, %p87
    %p89 = scmp.le.s32.totalorder 1, %s8
    %p90 = scmp.lt.s32.totalorder %s8, 3
    %p91 = pnand %p89, %p90
    %p92 = pneg %p91
    // Predicated region
    $region9: #{down_module.5} parent=5 // pred_check
      _
    $region10: #{down_module.5} parent=5 // pred_check_branch
      %94 = sbr.rel (%p91) target = $region12
    $region11: #{down_module.5} parent=5 // pred_region
      %s95 = ssub.s32 %s8, 1
      // Predicated region
      $region13: #{down_module.5} parent=11 // pred_check
        %p96 = pneg %p29
      $region14: #{down_module.5} parent=11 // pred_check_branch
        %98 = sbr.rel (%p96) target = $region16
      $region15: #{down_module.5} parent=11 // pred_region
        _
      $region16: #{down_module.5} parent=11 // pred_fallthru
        _
    $region12: #{down_module.5} parent=5 // pred_fallthru
      _
    %p99 = scmp.lt.s32.totalorder %s8, 2
    // Predicated region
    $region17: #{down_module.5} parent=5 // pred_check
      %p100 = pneg %p99
    $region18: #{down_module.5} parent=5 // pred_check_branch
      %102 = sbr.rel (%p100) target = $region20
    $region19: #{down_module.5} parent=5 // pred_region
      // Predicated region
      $region21: #{down_module.5} parent=19 // pred_check
        %p103 = pneg %p49
      $region22: #{down_module.5} parent=19 // pred_check_branch
        %105 = sbr.rel (%p103) target = $region24
      $region23: #{down_module.5} parent=19 // pred_region
        %p106 = scmp.lt.s32.totalorder %s8, 1
        %s107 = scalar_select %p106, %s8, 1
        %s108 = smul.addr %s107, 8
        %s109 = smul.addr %s108, 8
        %s110 = scalar_lea.vmem %s1, %s109
      $region24: #{down_module.5} parent=19 // pred_fallthru
        _
    $region20: #{down_module.5} parent=5 // pred_fallthru
      _
    %p111 = scmp.le.s32.totalorder 1, %s8
    %p112 = scmp.lt.s32.totalorder %s8, 3
    %p113 = pnand %p111, %p112
    %p114 = pneg %p113
    // Predicated region
    $region25: #{down_module.5} parent=5 // pred_check
      _
    $region26: #{down_module.5} parent=5 // pred_check_branch
      %116 = sbr.rel (%p113) target = $region28
    $region27: #{down_module.5} parent=5 // pred_region
      %s117 = ssub.s32 %s8, 1
      %p118 = pneg %p29
      %p119 = pneg %p26
      %p120 = scmp.lt.s32.totalorder %s13, 1
      %s121 = scalar_select %p120, %s13, 1
      %s122 = smul.addr %s121, 8
      %s123 = smul.addr %s122, 8
      %s124 = scalar_lea.vmem %s1, %s123
      %p125 = pneg %p55
      %p126 = pneg %p52
      %p127 = pneg %p81
      %p128 = pneg %p78
      %p129 = scmp.lt.s32.totalorder %s13, 1
      %s130 = scalar_select %p129, %s13, 1
      %s131 = smul.addr %s130, 8
      %s132 = smul.addr %s131, 4
      %s133 = scalar_lea.vmem %s2, %s132
      %p134 = scmp.lt.s32.totalorder %s13, 1
      %s135 = scalar_select %p134, %s13, 1
      %s136 = smul.addr %s135, 8
      %s137 = smul.addr %s136, 8
      %s138 = scalar_lea.vmem %s1, %s137
      %p139 = scmp.lt.s32.totalorder %s13, 1
      %s140 = scalar_select %p139, %s13, 1
      %s141 = smul.addr %s140, 8
      %s142 = smul.addr %s141, 4
      %s143 = scalar_lea.vmem %s2, %s142
      %v144 = vld [vmem:[%s0] sm:$0x3]
      %v145 = vld [vmem:[%s0 + $0x2] sm:$0x3]
      %vm146 = vcmask 1041408
      %v147 = vsel %vm146, %v144, 0.0
      %v148 = vsel %vm146, %v145, 0.0
      %v149 = vadd.f32 %v147, %v148
      %v150 = vmul.f32 %v149, 0.0078125
      %v151 = vmul.f32 %v150, %v150
      %v153 = vrot.slane %v151, 7
      %v155 = vsub.f32 %v150, %v153
      %v156 = vmax.f32 %v155, 0.0
      %v157 = vadd.f32 %v156, 1e-05
      %v158 = vrsqrt.pop %v157
      %v159 = vld [vmem:[%s138] sm:$0xff]
      %v160 = vld [vmem:[%s138 + $0x8] sm:$0xff]
      %v161 = vld [vmem:[%s138 + $0x10] sm:$0xff]
      %v162 = vld [vmem:[%s138 + $0x18] sm:$0xff]
      %v163 = vld [vmem:[%s138 + $0x20] sm:$0xff]
      %v164 = vld [vmem:[%s138 + $0x28] sm:$0xff]
      %v165 = vld [vmem:[%s138 + $0x30] sm:$0xff]
      %v166 = vld [vmem:[%s138 + $0x38] sm:$0xff]
      %v167 = vlaneseq
      %v168 = vshrl.u32 %v167, 7
      %v169 = vsub.s32 0, %v168
      %v170 = vrot.slane %v150, %v169
      %v171 = vsub.f32 %v159, %v170
      %v172 = vsub.f32 %v160, %v170
      %v173 = vsub.f32 %v161, %v170
      %v174 = vsub.f32 %v162, %v170
      %v175 = vsub.f32 %v163, %v170
      %v176 = vsub.f32 %v164, %v170
      %v177 = vsub.f32 %v165, %v170
      %v178 = vsub.f32 %v166, %v170
      %v179 = vlaneseq
      %v180 = vshrl.u32 %v179, 7
      %v181 = vsub.s32 1, %v180
      %v182 = vrot.slane %v158, %v181
      %v183 = vmul.f32 %v171, %v182
      %v184 = vmul.f32 %v172, %v182
      %v185 = vmul.f32 %v173, %v182
      %v186 = vmul.f32 %v174, %v182
      %v187 = vmul.f32 %v175, %v182
      %v188 = vmul.f32 %v176, %v182
      %v189 = vmul.f32 %v177, %v182
      %v190 = vmul.f32 %v178, %v182
      %v191 = vmax.f32 %v183, 0.0
      %v192 = vmax.f32 %v184, 0.0
      %v193 = vmax.f32 %v185, 0.0
      %v194 = vmax.f32 %v186, 0.0
      %v195 = vmax.f32 %v187, 0.0
      %v196 = vmax.f32 %v188, 0.0
      %v197 = vmax.f32 %v189, 0.0
      %v198 = vmax.f32 %v190, 0.0
      %v199 = vpack.c.bf16 %v192, %v191
      %v200 = vpack.c.bf16 %v194, %v193
      %v201 = vpack.c.bf16 %v196, %v195
      %v202 = vpack.c.bf16 %v198, %v197
      %v207 = vunpack.c.l.b16 %v199
      %v208 = vunpack.c.h.b16 %v199
      %v209 = vunpack.c.l.b16 %v200
      %v210 = vunpack.c.h.b16 %v200
      %v211 = vunpack.c.l.b16 %v201
      %v212 = vunpack.c.h.b16 %v201
      %v213 = vunpack.c.l.b16 %v202
      %v214 = vunpack.c.h.b16 %v202
      %v215 = vpack.c.b16 %v207, %v207
      %v216 = vpack.c.b16 %v208, %v208
      %v217 = vpack.c.b16 %v209, %v209
      %v218 = vpack.c.b16 %v210, %v210
      %v219 = vpack.c.b16 %v211, %v211
      %v220 = vpack.c.b16 %v212, %v212
      %v221 = vpack.c.b16 %v213, %v213
      %v222 = vpack.c.b16 %v214, %v214
      %231 = vst [vmem:[%s143] sm:$0xf] %v215
      %232 = vst [vmem:[%s143 + $0x4] sm:$0xf] %v216
      %233 = vst [vmem:[%s143 + $0x8] sm:$0xf] %v217
      %234 = vst [vmem:[%s143 + $0xc] sm:$0xf] %v218
      %235 = vst [vmem:[%s143 + $0x10] sm:$0xf] %v219
      %236 = vst [vmem:[%s143 + $0x14] sm:$0xf] %v220
      %237 = vst [vmem:[%s143 + $0x18] sm:$0xf] %v221
      %238 = vst [vmem:[%s143 + $0x1c] sm:$0xf] %v222
      %p239 = scmp.lt.s32.totalorder %s13, 1
      %s240 = scalar_select %p239, %s13, 1
      %s241 = smul.addr %s240, 8
      %s242 = smul.addr %s241, 4
      %s243 = scalar_lea.vmem %s2, %s242
      // Predicated region
      $region29: #{down_module.5} parent=27 // pred_check
        %p244 = pneg %p78
      $region30: #{down_module.5} parent=27 // pred_check_branch
        %246 = sbr.rel (%p244) target = $region32
      $region31: #{down_module.5} parent=27 // pred_region
        _
      $region32: #{down_module.5} parent=27 // pred_fallthru
        _
    $region28: #{down_module.5} parent=5 // pred_fallthru
      _
    %p247 = scmp.le.s32.totalorder 2, %s8
    // Predicated region
    $region33: #{down_module.5} parent=5 // pred_check
      %p248 = pneg %p247
    $region34: #{down_module.5} parent=5 // pred_check_branch
      %250 = sbr.rel (%p248) target = $region36
    $region35: #{down_module.5} parent=5 // pred_region
      %s251 = ssub.s32 %s8, 2
      // Predicated region
      $region37: #{down_module.5} parent=35 // pred_check
        %p252 = pneg %p84
      $region38: #{down_module.5} parent=35 // pred_check_branch
        %254 = sbr.rel (%p252) target = $region40
      $region39: #{down_module.5} parent=35 // pred_region
        %p255 = scmp.lt.s32.totalorder %s14, 1
        %s256 = scalar_select %p255, %s14, 1
        %s257 = smul.addr %s256, 8
        %s258 = smul.addr %s257, 4
        %s259 = scalar_lea.vmem %s2, %s258
      $region40: #{down_module.5} parent=35 // pred_fallthru
        _
    $region36: #{down_module.5} parent=5 // pred_fallthru
      _
  $region6: #{down_module.5} parent=0 // loop_footer
    %s12 = sadd.s32 1, %s8
  $region7: #{down_module.5} parent=0 // loop_footer_branch
    %7 = sbr.rel target = $region3
  $region8: #{down_module.5} parent=0 // loop_exit
    _

// kernel: down_module.3
$region0: #{down_module.3}
  #allocation0 [shape = 'u32[]', space=smem, size = 0x4, offset = 0x4, fixed_abs, tag = 'smem constant byte address 0x4 - core index']
  #allocation1 [shape = 'u32[144,128]{1,0:T(1,128)}', space=vmem, size = 0x12000, scoped, tag = 'internal scratch']
  %s0 = inlined_call_operand.vmem [shape: bf16[2,10,10,16], index: 0, kind: input, shape index: {}]
  %s1 = inlined_call_operand.vmem [shape: bf16[9,4,128], index: 1, kind: input, shape index: {}]
  %s2 = inlined_call_operand.vmem [shape: f32[2,64,128], index: 2, kind: output, shape index: {0}]
  %s3 = inlined_call_operand.vmem [shape: f32[2,2,128], index: 3, kind: output, shape index: {1}]
  %4 = xla_tuple %s2, %s3
  %s5 = sld [smem:[#allocation0]]
  $region49: #{down_module.3} parent=0
    _
  %s7 = ssub.s32 1, %s5
  %s8 = scalar_select 0, %s7, %s5
  loop: start=0, step=1, limit=4
  $region2: #{down_module.3} parent=0 // loop_pre_header
    _
  $region3: #{down_module.3} parent=0 // loop_header
    %s10 = sphi 0, %s14
    %p11 = scmp.ge.s32.totalorder %s10, 4
    %s20 = sphi 0, %s22
    %s23 = sphi 0, %s20
    %s24 = sphi 0, %s23
    %s40 = sphi 0, %s24
    %s44 = sphi 0, %s44
    %s46 = sphi 0, %s44
    %s47 = sphi 0, %s46
    %s61 = sphi 0, %s47
    %s67 = sphi 0, %s69
    %s70 = sphi 0, %s67
    %s71 = sphi 0, %s70
    %s87 = sphi 0, %s71
    %s93 = sphi 0, %s95
    %s96 = sphi 0, %s93
    %s97 = sphi 0, %s96
    %s113 = sphi 0, %s97
  $region4: #{down_module.3} parent=0 // loop_header_branch
    %13 = sbr.rel (%p11) target = $region8
  $region5: #{down_module.3} parent=0 // loop_body
    %s15 = ssub.s32 %s10, 1
    %s16 = ssub.s32 %s10, 2
    %s17 = sadd.s32 %s10, 1
    %s18 = ssub.s32 %s10, %s17
    %p19 = scmp.eq.s32.totalorder %s18, 0
    %s21 = sadd.s32 %s20, 1
    %s22 = scalar_select %p19, %s20, %s21
    %p25 = pneg %p19
    %p26 = scmp.eq.s32.totalorder %s10, 1
    %p27 = por %p25, %p26
    %p28 = scmp.ne.s32.totalorder %s20, %s23
    %p29 = scmp.eq.s32.totalorder %s10, 0
    %p30 = por %p28, %p29
    %p31 = scmp.ne.s32.totalorder %s20, %s23
    %p32 = scmp.eq.s32.totalorder %s15, 1
    %p33 = por %p31, %p32
    %p34 = scmp.ne.s32.totalorder %s23, %s24
    %p35 = scmp.eq.s32.totalorder %s15, 0
    %p36 = por %p34, %p35
    %p37 = scmp.ne.s32.totalorder %s23, %s24
    %p38 = scmp.eq.s32.totalorder %s16, 1
    %p39 = por %p37, %p38
    %p41 = scmp.ne.s32.totalorder %s24, %s40
    %p42 = scmp.eq.s32.totalorder %s16, 0
    %p43 = por %p41, %p42
    %s45 = sadd.s32 %s44, 1
    %p48 = scmp.eq.s32.totalorder %s10, 1
    %p49 = scmp.ne.s32.totalorder %s44, %s46
    %p50 = scmp.eq.s32.totalorder %s10, 0
    %p51 = por %p49, %p50
    %p52 = scmp.ne.s32.totalorder %s44, %s46
    %p53 = scmp.eq.s32.totalorder %s15, 1
    %p54 = por %p52, %p53
    %p55 = scmp.ne.s32.totalorder %s46, %s47
    %p56 = scmp.eq.s32.totalorder %s15, 0
    %p57 = por %p55, %p56
    %p58 = scmp.ne.s32.totalorder %s46, %s47
    %p59 = scmp.eq.s32.totalorder %s16, 1
    %p60 = por %p58, %p59
    %p62 = scmp.ne.s32.totalorder %s47, %s61
    %p63 = scmp.eq.s32.totalorder %s16, 0
    %p64 = por %p62, %p63
    %s65 = ssub.s32 %s10, %s17
    %p66 = scmp.eq.s32.totalorder %s65, 0
    %s68 = sadd.s32 %s67, 1
    %s69 = scalar_select %p66, %s67, %s68
    %p72 = pneg %p66
    %p73 = scmp.eq.s32.totalorder %s10, 1
    %p74 = por %p72, %p73
    %p75 = scmp.ne.s32.totalorder %s67, %s70
    %p76 = scmp.eq.s32.totalorder %s10, 0
    %p77 = por %p75, %p76
    %p78 = scmp.ne.s32.totalorder %s67, %s70
    %p79 = scmp.eq.s32.totalorder %s15, 1
    %p80 = por %p78, %p79
    %p81 = scmp.ne.s32.totalorder %s70, %s71
    %p82 = scmp.eq.s32.totalorder %s15, 0
    %p83 = por %p81, %p82
    %p84 = scmp.ne.s32.totalorder %s70, %s71
    %p85 = scmp.eq.s32.totalorder %s16, 1
    %p86 = por %p84, %p85
    %p88 = scmp.ne.s32.totalorder %s71, %s87
    %p89 = scmp.eq.s32.totalorder %s16, 0
    %p90 = por %p88, %p89
    %s91 = ssub.s32 %s10, %s17
    %p92 = scmp.eq.s32.totalorder %s91, 0
    %s94 = sadd.s32 %s93, 1
    %s95 = scalar_select %p92, %s93, %s94
    %p98 = pneg %p92
    %p99 = scmp.eq.s32.totalorder %s10, 1
    %p100 = por %p98, %p99
    %p101 = scmp.ne.s32.totalorder %s93, %s96
    %p102 = scmp.eq.s32.totalorder %s10, 0
    %p103 = por %p101, %p102
    %p104 = scmp.ne.s32.totalorder %s93, %s96
    %p105 = scmp.eq.s32.totalorder %s15, 1
    %p106 = por %p104, %p105
    %p107 = scmp.ne.s32.totalorder %s96, %s97
    %p108 = scmp.eq.s32.totalorder %s15, 0
    %p109 = por %p107, %p108
    %p110 = scmp.ne.s32.totalorder %s96, %s97
    %p111 = scmp.eq.s32.totalorder %s16, 1
    %p112 = por %p110, %p111
    %p114 = scmp.ne.s32.totalorder %s97, %s113
    %p115 = scmp.eq.s32.totalorder %s16, 0
    %p116 = por %p114, %p115
    %p117 = scmp.le.s32.totalorder 1, %s10
    %p118 = scmp.lt.s32.totalorder %s10, 3
    %p119 = pnand %p117, %p118
    %p120 = pneg %p119
    // Predicated region
    $region9: #{down_module.3} parent=5 // pred_check
      _
    $region10: #{down_module.3} parent=5 // pred_check_branch
      %122 = sbr.rel (%p119) target = $region12
    $region11: #{down_module.3} parent=5 // pred_region
      %s123 = ssub.s32 %s10, 1
      // Predicated region
      $region13: #{down_module.3} parent=11 // pred_check
        %p124 = pneg %p57
      $region14: #{down_module.3} parent=11 // pred_check_branch
        %126 = sbr.rel (%p124) target = $region16
      $region15: #{down_module.3} parent=11 // pred_region
        _
      $region16: #{down_module.3} parent=11 // pred_fallthru
        _
    $region12: #{down_module.3} parent=5 // pred_fallthru
      _
    %p127 = scmp.lt.s32.totalorder %s10, 2
    // Predicated region
    $region17: #{down_module.3} parent=5 // pred_check
      %p128 = pneg %p127
    $region18: #{down_module.3} parent=5 // pred_check_branch
      %130 = sbr.rel (%p128) target = $region20
    $region19: #{down_module.3} parent=5 // pred_region
      // Predicated region
      $region21: #{down_module.3} parent=19 // pred_check
        %p131 = pneg %p30
      $region22: #{down_module.3} parent=19 // pred_check_branch
        %133 = sbr.rel (%p131) target = $region24
      $region23: #{down_module.3} parent=19 // pred_region
        %p134 = scmp.lt.s32.totalorder %s10, 1
        %s135 = scalar_select %p134, %s10, 1
        %s136 = smul.addr %s135, 20
        %s137 = smul.addr %s136, 4
        %s138 = scalar_lea.vmem %s0, %s137
      $region24: #{down_module.3} parent=19 // pred_fallthru
        _
    $region20: #{down_module.3} parent=5 // pred_fallthru
      _
    %p139 = scmp.le.s32.totalorder 1, %s10
    %p140 = scmp.lt.s32.totalorder %s10, 3
    %p141 = pnand %p139, %p140
    %p142 = pneg %p141
    // Predicated region
    $region25: #{down_module.3} parent=5 // pred_check
      _
    $region26: #{down_module.3} parent=5 // pred_check_branch
      %144 = sbr.rel (%p141) target = $region28
    $region27: #{down_module.3} parent=5 // pred_region
      %s145 = ssub.s32 %s10, 1
      %p146 = scmp.lt.s32.totalorder %s15, 1
      %s147 = scalar_select %p146, %s15, 1
      %s148 = smul.addr %s147, 20
      %s149 = smul.addr %s148, 4
      %s150 = scalar_lea.vmem %s0, %s149
      %p151 = pneg %p36
      %p152 = pneg %p33
      %p153 = pneg %p57
      %p154 = pneg %p54
      %p155 = pneg %p83
      %p156 = pneg %p80
      %p157 = scmp.lt.s32.totalorder %s15, 1
      %s158 = scalar_select %p157, %s15, 1
      %s159 = smul.addr %s158, 8
      %s160 = smul.addr %s159, 8
      %s161 = scalar_lea.vmem %s2, %s160
      %p162 = pneg %p109
      %p163 = pneg %p106
      %p164 = scmp.lt.s32.totalorder %s15, 1
      %s165 = scalar_select %p164, %s15, 1
      %s166 = smul.addr %s165, 2
      %s167 = scalar_lea.vmem %s3, %s166
      %p168 = scmp.lt.s32.totalorder %s15, 1
      %s169 = scalar_select %p168, %s15, 1
      %s170 = smul.addr %s169, 20
      %s171 = smul.addr %s170, 4
      %s172 = scalar_lea.vmem %s0, %s171
      %p173 = scmp.lt.s32.totalorder %s15, 1
      %s174 = scalar_select %p173, %s15, 1
      %s175 = smul.addr %s174, 8
      %s176 = smul.addr %s175, 8
      %s177 = scalar_lea.vmem %s2, %s176
      %p178 = scmp.lt.s32.totalorder %s15, 1
      %s179 = scalar_select %p178, %s15, 1
      %s180 = smul.addr %s179, 2
      %s181 = scalar_lea.vmem %s3, %s180
      %v183 = vld [vmem:[%s172] sm:$0xf]
      %v184 = vld [vmem:[%s172 + $0x4] sm:$0x1]
      %v185 = vld [vmem:[%s172 + $0x8] sm:$0xf]
      %v186 = vld [vmem:[%s172 + $0xc] sm:$0x1]
      %v187 = vld [vmem:[%s172 + $0x10] sm:$0xf]
      %v188 = vld [vmem:[%s172 + $0x14] sm:$0x1]
      %v189 = vld [vmem:[%s172 + $0x18] sm:$0xf]
      %v190 = vld [vmem:[%s172 + $0x1c] sm:$0x1]
      %v191 = vld [vmem:[%s172 + $0x20] sm:$0xf]
      %v192 = vld [vmem:[%s172 + $0x24] sm:$0x1]
      %v193 = vld [vmem:[%s172 + $0x28] sm:$0xf]
      %v194 = vld [vmem:[%s172 + $0x2c] sm:$0x1]
      %v195 = vld [vmem:[%s172 + $0x30] sm:$0xf]
      %v196 = vld [vmem:[%s172 + $0x34] sm:$0x1]
      %v197 = vld [vmem:[%s172 + $0x38] sm:$0xf]
      %v198 = vld [vmem:[%s172 + $0x3c] sm:$0x1]
      %v199 = vld [vmem:[%s172 + $0x40] sm:$0xf]
      %v200 = vld [vmem:[%s172 + $0x44] sm:$0x1]
      %v201 = vld [vmem:[%s172 + $0x48] sm:$0xf]
      %v202 = vld [vmem:[%s172 + $0x4c] sm:$0x1]
      %223 = vrot.lane.b32.xlu0 %v183, 124
      %v224 = vpop.permute.xlu0 %223
      %225 = vrot.lane.b32.xlu0 %v184, 124
      %v226 = vpop.permute.xlu0 %225
      %227 = vrot.lane.b32.xlu0 %v185, 124
      %v228 = vpop.permute.xlu0 %227
      %229 = vrot.lane.b32.xlu0 %v186, 124
      %v230 = vpop.permute.xlu0 %229
      %231 = vrot.lane.b32.xlu0 %v187, 124
      %v232 = vpop.permute.xlu0 %231
      %233 = vrot.lane.b32.xlu0 %v188, 124
      %v234 = vpop.permute.xlu0 %233
      %235 = vrot.lane.b32.xlu0 %v189, 124
      %v236 = vpop.permute.xlu0 %235
      %237 = vrot.lane.b32.xlu0 %v190, 124
      %v238 = vpop.permute.xlu0 %237
      %239 = vrot.lane.b32.xlu0 %v191, 124
      %v240 = vpop.permute.xlu0 %239
      %241 = vrot.lane.b32.xlu0 %v192, 124
      %v242 = vpop.permute.xlu0 %241
      %243 = vrot.lane.b32.xlu0 %v193, 124
      %v244 = vpop.permute.xlu0 %243
      %245 = vrot.lane.b32.xlu0 %v194, 124
      %v246 = vpop.permute.xlu0 %245
      %247 = vrot.lane.b32.xlu0 %v195, 124
      %v248 = vpop.permute.xlu0 %247
      %249 = vrot.lane.b32.xlu0 %v196, 124
      %v250 = vpop.permute.xlu0 %249
      %251 = vrot.lane.b32.xlu0 %v197, 124
      %v252 = vpop.permute.xlu0 %251
      %253 = vrot.lane.b32.xlu0 %v198, 124
      %v254 = vpop.permute.xlu0 %253
      %255 = vrot.lane.b32.xlu0 %v199, 124
      %v256 = vpop.permute.xlu0 %255
      %257 = vrot.lane.b32.xlu0 %v200, 124
      %v258 = vpop.permute.xlu0 %257
      %259 = vrot.lane.b32.xlu0 %v201, 124
      %v260 = vpop.permute.xlu0 %259
      %261 = vrot.lane.b32.xlu0 %v202, 124
      %v262 = vpop.permute.xlu0 %261
      %v283 = vmax.bf16 %v183, %v224
      %v284 = vmax.bf16 %v184, %v226
      %v285 = vmax.bf16 %v185, %v228
      %v286 = vmax.bf16 %v186, %v230
      %v287 = vmax.bf16 %v187, %v232
      %v288 = vmax.bf16 %v188, %v234
      %v289 = vmax.bf16 %v189, %v236
      %v290 = vmax.bf16 %v190, %v238
      %v291 = vmax.bf16 %v191, %v240
      %v292 = vmax.bf16 %v192, %v242
      %v293 = vmax.bf16 %v193, %v244
      %v294 = vmax.bf16 %v194, %v246
      %v295 = vmax.bf16 %v195, %v248
      %v296 = vmax.bf16 %v196, %v250
      %v297 = vmax.bf16 %v197, %v252
      %v298 = vmax.bf16 %v198, %v254
      %v299 = vmax.bf16 %v199, %v256
      %v300 = vmax.bf16 %v200, %v258
      %v301 = vmax.bf16 %v201, %v260
      %v302 = vmax.bf16 %v202, %v262
      %323 = vrot.lane.b32.xlu0 %v283, 120
      %v324 = vpop.permute.xlu0 %323
      %325 = vrot.lane.b32.xlu0 %v284, 120
      %v326 = vpop.permute.xlu0 %325
      %327 = vrot.lane.b32.xlu0 %v285, 120
      %v328 = vpop.permute.xlu0 %327
      %329 = vrot.lane.b32.xlu0 %v286, 120
      %v330 = vpop.permute.xlu0 %329
      %331 = vrot.lane.b32.xlu0 %v287, 120
      %v332 = vpop.permute.xlu0 %331
      %333 = vrot.lane.b32.xlu0 %v288, 120
      %v334 = vpop.permute.xlu0 %333
      %335 = vrot.lane.b32.xlu0 %v289, 120
      %v336 = vpop.permute.xlu0 %335
      %337 = vrot.lane.b32.xlu0 %v290, 120
      %v338 = vpop.permute.xlu0 %337
      %339 = vrot.lane.b32.xlu0 %v291, 120
      %v340 = vpop.permute.xlu0 %339
      %341 = vrot.lane.b32.xlu0 %v292, 120
      %v342 = vpop.permute.xlu0 %341
      %343 = vrot.lane.b32.xlu0 %v293, 120
      %v344 = vpop.permute.xlu0 %343
      %345 = vrot.lane.b32.xlu0 %v294, 120
      %v346 = vpop.permute.xlu0 %345
      %347 = vrot.lane.b32.xlu0 %v295, 120
      %v348 = vpop.permute.xlu0 %347
      %349 = vrot.lane.b32.xlu0 %v296, 120
      %v350 = vpop.permute.xlu0 %349
      %351 = vrot.lane.b32.xlu0 %v297, 120
      %v352 = vpop.permute.xlu0 %351
      %353 = vrot.lane.b32.xlu0 %v298, 120
      %v354 = vpop.permute.xlu0 %353
      %355 = vrot.lane.b32.xlu0 %v299, 120
      %v356 = vpop.permute.xlu0 %355
      %357 = vrot.lane.b32.xlu0 %v300, 120
      %v358 = vpop.permute.xlu0 %357
      %359 = vrot.lane.b32.xlu0 %v301, 120
      %v360 = vpop.permute.xlu0 %359
      %361 = vrot.lane.b32.xlu0 %v302, 120
      %v362 = vpop.permute.xlu0 %361
      %v383 = vmax.bf16 %v283, %v324
      %v384 = vmax.bf16 %v284, %v326
      %v385 = vmax.bf16 %v285, %v328
      %v386 = vmax.bf16 %v286, %v330
      %v387 = vmax.bf16 %v287, %v332
      %v388 = vmax.bf16 %v288, %v334
      %v389 = vmax.bf16 %v289, %v336
      %v390 = vmax.bf16 %v290, %v338
      %v391 = vmax.bf16 %v291, %v340
      %v392 = vmax.bf16 %v292, %v342
      %v393 = vmax.bf16 %v293, %v344
      %v394 = vmax.bf16 %v294, %v346
      %v395 = vmax.bf16 %v295, %v348
      %v396 = vmax.bf16 %v296, %v350
      %v397 = vmax.bf16 %v297, %v352
      %v398 = vmax.bf16 %v298, %v354
      %v399 = vmax.bf16 %v299, %v356
      %v400 = vmax.bf16 %v300, %v358
      %v401 = vmax.bf16 %v301, %v360
      %v402 = vmax.bf16 %v302, %v362
      %v403 = vld [vmem:[%s1] sm:$0x3]
      %vm404 = vsmask.f32 3328
      %vm405 = vsmask.f32 7440
      %vm406 = vmor %vm404, %vm405
      %v408 = vshrl.u32 %v383, 16
      %v410 = vrot.slane %v408, 4
      %v411 = vshll.u32 %v383, 16
      %v413 = vrot.slane %v411, 5
      %v414 = vor.u32 %v410, %v413
      %v415 = vrot.slane %v414, 4
      %v417 = vshll.u32 %v384, 16
      %v419 = vrot.slane %v417, 5
      %v420 = vsel %vm406, %v415, %v419
      %v422 = vshrl.u32 %v385, 16
      %v424 = vrot.slane %v422, 4
      %v425 = vshll.u32 %v385, 16
      %v427 = vrot.slane %v425, 5
      %v428 = vor.u32 %v424, %v427
      %v429 = vrot.slane %v428, 4
      %v431 = vshll.u32 %v386, 16
      %v433 = vrot.slane %v431, 5
      %v434 = vsel %vm406, %v429, %v433
      %v436 = vshrl.u32 %v387, 16
      %v438 = vrot.slane %v436, 4
      %v439 = vshll.u32 %v387, 16
      %v441 = vrot.slane %v439, 5
      %v442 = vor.u32 %v438, %v441
      %v443 = vrot.slane %v442, 4
      %v445 = vshll.u32 %v388, 16
      %v447 = vrot.slane %v445, 5
      %v448 = vsel %vm406, %v443, %v447
      %v450 = vshrl.u32 %v389, 16
      %v452 = vrot.slane %v450, 4
      %v453 = vshll.u32 %v389, 16
      %v455 = vrot.slane %v453, 5
      %v456 = vor.u32 %v452, %v455
      %v457 = vrot.slane %v456, 4
      %v459 = vshll.u32 %v390, 16
      %v461 = vrot.slane %v459, 5
      %v462 = vsel %vm406, %v457, %v461
      %v464 = vshrl.u32 %v391, 16
      %v466 = vrot.slane %v464, 4
      %v467 = vshll.u32 %v391, 16
      %v469 = vrot.slane %v467, 5
      %v470 = vor.u32 %v466, %v469
      %v471 = vrot.slane %v470, 4
      %v473 = vshll.u32 %v392, 16
      %v475 = vrot.slane %v473, 5
      %v476 = vsel %vm406, %v471, %v475
      %v478 = vshrl.u32 %v393, 16
      %v480 = vrot.slane %v478, 4
      %v481 = vshll.u32 %v393, 16
      %v483 = vrot.slane %v481, 5
      %v484 = vor.u32 %v480, %v483
      %v485 = vrot.slane %v484, 4
      %v487 = vshll.u32 %v394, 16
      %v489 = vrot.slane %v487, 5
      %v490 = vsel %vm406, %v485, %v489
      %v492 = vshrl.u32 %v395, 16
      %v494 = vrot.slane %v492, 4
      %v495 = vshll.u32 %v395, 16
      %v497 = vrot.slane %v495, 5
      %v498 = vor.u32 %v494, %v497
      %v499 = vrot.slane %v498, 4
      %v501 = vshll.u32 %v396, 16
      %v503 = vrot.slane %v501, 5
      %v504 = vsel %vm406, %v499, %v503
      %v506 = vshrl.u32 %v397, 16
      %v508 = vrot.slane %v506, 4
      %v509 = vshll.u32 %v397, 16
      %v511 = vrot.slane %v509, 5
      %v512 = vor.u32 %v508, %v511
      %v513 = vrot.slane %v512, 4
      %v515 = vshll.u32 %v398, 16
      %v517 = vrot.slane %v515, 5
      %v518 = vsel %vm406, %v513, %v517
      %s519 = scalar_lea.vmem %s1, 2
      %v520 = vld [vmem:[%s519] sm:$0x3]
      %v521 = vunpack.c.l.b16 %v420
      %v522 = vunpack.c.l.b16 %v434
      %v523 = vunpack.c.l.b16 %v448
      %v524 = vunpack.c.l.b16 %v462
      %v525 = vunpack.c.l.b16 %v476
      %v526 = vunpack.c.l.b16 %v490
      %v527 = vunpack.c.l.b16 %v504
      %v528 = vunpack.c.l.b16 %v518
      %v529 = vpack.c.b16 %v522, %v521
      %v530 = vpack.c.b16 %v524, %v523
      %v531 = vpack.c.b16 %v526, %v525
      %v532 = vpack.c.b16 %v528, %v527
      %vm533 = vcmask 31744
      %v535 = vsel %vm533, %v529, 0
      %v538 = vsel %vm533, %v530, 0
      %v541 = vsel %vm533, %v531, 0
      %v544 = vsel %vm533, %v532, 0
      %vm546 = vcmask 1041408
      %v548 = vsel %vm546, %v520, 0
      %550 = vmatprep.subr.bf16.mxu0 0
      %551 = vmatpush1.bf16.msra.mxu0 %v548
      %552 = vmatprep.subr.bf16.mxu0 0
      %553 = vmatpush1.bf16.msra.mxu0 0
      %554 = vmatprep.subr.bf16.mxu0 0
      %555 = vmatpush1.bf16.msra.mxu0 0
      %556 = vmatprep.subr.bf16.mxu0 0
      %557 = vmatpush1.bf16.msra.mxu0 0
      %558 = vmatprep.subr.bf16.mxu0 0
      %559 = vmatpush1.bf16.msra.mxu0 0
      %560 = vmatprep.subr.bf16.mxu0 0
      %561 = vmatpush1.bf16.msra.mxu0 0
      %562 = vmatprep.subr.bf16.mxu0 0
      %563 = vmatpush1.bf16.msra.mxu0 0
      %564 = vmatprep.subr.bf16.mxu0 0
      %565 = vmatpush1.bf16.msra.mxu0 0
      %566 = vmatprep.subr.bf16.mxu0 0
      %567 = vmatpush1.bf16.msra.mxu0 0
      %568 = vmatprep.subr.bf16.mxu0 0
      %569 = vmatpush1.bf16.msra.mxu0 0
      %570 = vmatprep.subr.bf16.mxu0 0
      %571 = vmatpush1.bf16.msra.mxu0 0
      %572 = vmatprep.subr.bf16.mxu0 0
      %573 = vmatpush1.bf16.msra.mxu0 0
      %574 = vmatprep.subr.bf16.mxu0 0
      %575 = vmatpush1.bf16.msra.mxu0 0
      %576 = vmatprep.subr.bf16.mxu0 0
      %577 = vmatpush1.bf16.msra.mxu0 0
      %578 = vmatprep.subr.bf16.mxu0 0
      %579 = vmatpush1.bf16.msra.mxu0 0
      %580 = vmatprep.subr.bf16.mxu0 0
      %581 = vmatpush1.bf16.msra.mxu0 0
      %582 = vmatprep.mubr.bf16.mxu0 0
      %583 = vmatmul.mubr.bf16.gmra.mrb[0].mxu0 %v535
      %v584 = vpop.f32.mrb[0].mxu0
      %v585 = vadd.f32 0.0, %v584
      %v586 = vpop.f32.mrb[0].mxu0
      %v587 = vpop.f32.mrb[0].mxu0
      %v588 = vadd.f32 0.0, %v587
      %v589 = vpop.f32.mrb[0].mxu0
      %590 = vmatprep.mubr.bf16.mxu0 0
      %591 = vmatmul.mubr.bf16.gmra.mrb[0].mxu0 %v538
      %v592 = vpop.f32.mrb[0].mxu0
      %v593 = vadd.f32 0.0, %v592
      %v594 = vpop.f32.mrb[0].mxu0
      %v595 = vpop.f32.mrb[0].mxu0
      %v596 = vadd.f32 0.0, %v595
      %v597 = vpop.f32.mrb[0].mxu0
      %598 = vmatprep.mubr.bf16.mxu0 0
      %599 = vmatmul.mubr.bf16.gmra.mrb[0].mxu0 %v541
      %v600 = vpop.f32.mrb[0].mxu0
      %v601 = vadd.f32 0.0, %v600
      %v602 = vpop.f32.mrb[0].mxu0
      %v603 = vpop.f32.mrb[0].mxu0
      %v604 = vadd.f32 0.0, %v603
      %v605 = vpop.f32.mrb[0].mxu0
      %606 = vmatprep.mubr.bf16.mxu0 0
      %607 = vmatmul.mubr.bf16.gmra.mrb[0].mxu0 %v544
      %v608 = vpop.f32.mrb[0].mxu0
      %v609 = vadd.f32 0.0, %v608
      %v610 = vpop.f32.mrb[0].mxu0
      %v611 = vpop.f32.mrb[0].mxu0
      %v612 = vadd.f32 0.0, %v611
      %v613 = vpop.f32.mrb[0].mxu0
      %614 = vdwg.mxu0
      %v623 = vunpack.c.l.b16 %v383
      %v624 = vunpack.c.l.b16 %v385
      %v625 = vunpack.c.l.b16 %v387
      %v626 = vunpack.c.l.b16 %v389
      %v627 = vunpack.c.l.b16 %v391
      %v628 = vunpack.c.l.b16 %v393
      %v629 = vunpack.c.l.b16 %v395
      %v630 = vunpack.c.l.b16 %v397
      %v631 = vpack.c.b16 %v624, %v623
      %v632 = vpack.c.b16 %v626, %v625
      %v633 = vpack.c.b16 %v628, %v627
      %v634 = vpack.c.b16 %v630, %v629
      %v636 = vsel %vm533, %v631, 0
      %v639 = vsel %vm533, %v632, 0
      %v642 = vsel %vm533, %v633, 0
      %v645 = vsel %vm533, %v634, 0
      %v648 = vsel %vm546, %v403, 0
      %650 = vmatprep.subr.bf16.mxu0 0
      %651 = vmatpush1.bf16.msra.mxu0 %v648
      %652 = vmatprep.subr.bf16.mxu0 0
      %653 = vmatpush1.bf16.msra.mxu0 0
      %654 = vmatprep.subr.bf16.mxu0 0
      %655 = vmatpush1.bf16.msra.mxu0 0
      %656 = vmatprep.subr.bf16.mxu0 0
      %657 = vmatpush1.bf16.msra.mxu0 0
      %658 = vmatprep.subr.bf16.mxu0 0
      %659 = vmatpush1.bf16.msra.mxu0 0
      %660 = vmatprep.subr.bf16.mxu0 0
      %661 = vmatpush1.bf16.msra.mxu0 0
      %662 = vmatprep.subr.bf16.mxu0 0
      %663 = vmatpush1.bf16.msra.mxu0 0
      %664 = vmatprep.subr.bf16.mxu0 0
      %665 = vmatpush1.bf16.msra.mxu0 0
      %666 = vmatprep.subr.bf16.mxu0 0
      %667 = vmatpush1.bf16.msra.mxu0 0
      %668 = vmatprep.subr.bf16.mxu0 0
      %669 = vmatpush1.bf16.msra.mxu0 0
      %670 = vmatprep.subr.bf16.mxu0 0
      %671 = vmatpush1.bf16.msra.mxu0 0
      %672 = vmatprep.subr.bf16.mxu0 0
      %673 = vmatpush1.bf16.msra.mxu0 0
      %674 = vmatprep.subr.bf16.mxu0 0
      %675 = vmatpush1.bf16.msra.mxu0 0
      %676 = vmatprep.subr.bf16.mxu0 0
      %677 = vmatpush1.bf16.msra.mxu0 0
      %678 = vmatprep.subr.bf16.mxu0 0
      %679 = vmatpush1.bf16.msra.mxu0 0
      %680 = vmatprep.subr.bf16.mxu0 0
      %681 = vmatpush1.bf16.msra.mxu0 0
      %682 = vmatprep.mubr.bf16.mxu0 0
      %683 = vmatmul.mubr.bf16.gmra.mrb[0].mxu0 %v636
      %v684 = vpop.f32.mrb[0].mxu0
      %v685 = vadd.f32 %v585, %v684
      %v686 = vpop.f32.mrb[0].mxu0
      %v687 = vpop.f32.mrb[0].mxu0
      %v688 = vadd.f32 %v588, %v687
      %v689 = vpop.f32.mrb[0].mxu0
      %690 = vmatprep.mubr.bf16.mxu0 0
      %691 = vmatmul.mubr.bf16.gmra.mrb[0].mxu0 %v639
      %v692 = vpop.f32.mrb[0].mxu0
      %v693 = vadd.f32 %v593, %v692
      %v694 = vpop.f32.mrb[0].mxu0
      %v695 = vpop.f32.mrb[0].mxu0
      %v696 = vadd.f32 %v596, %v695
      %v697 = vpop.f32.mrb[0].mxu0
      %698 = vmatprep.mubr.bf16.mxu0 0
      %699 = vmatmul.mubr.bf16.gmra.mrb[0].mxu0 %v642
      %v700 = vpop.f32.mrb[0].mxu0
      %v701 = vadd.f32 %v601, %v700
      %v702 = vpop.f32.mrb[0].mxu0
      %v703 = vpop.f32.mrb[0].mxu0
      %v704 = vadd.f32 %v604, %v703
      %v705 = vpop.f32.mrb[0].mxu0
      %706 = vmatprep.mubr.bf16.mxu0 0
      %707 = vmatmul.mubr.bf16.gmra.mrb[0].mxu0 %v645
      %v708 = vpop.f32.mrb[0].mxu0
      %v709 = vadd.f32 %v609, %v708
      %v710 = vpop.f32.mrb[0].mxu0
      %v711 = vpop.f32.mrb[0].mxu0
      %v712 = vadd.f32 %v612, %v711
      %v713 = vpop.f32.mrb[0].mxu0
      %714 = vdwg.mxu0
      %vm723 = vcmask 1042432
      %vm724 = vcmask 1046532
      %vm725 = vmor %vm723, %vm724
      %v726 = vrot.slane %v383, 5
      %v727 = vrot.slane %v726, 4
      %v728 = vrot.slane %v384, 5
      %v729 = vsel %vm725, %v727, %v728
      %v730 = vrot.slane %v385, 5
      %v731 = vrot.slane %v730, 4
      %v732 = vrot.slane %v386, 5
      %v733 = vsel %vm725, %v731, %v732
      %v734 = vrot.slane %v387, 5
      %v735 = vrot.slane %v734, 4
      %v736 = vrot.slane %v388, 5
      %v737 = vsel %vm725, %v735, %v736
      %v738 = vrot.slane %v389, 5
      %v739 = vrot.slane %v738, 4
      %v740 = vrot.slane %v390, 5
      %v741 = vsel %vm725, %v739, %v740
      %v742 = vrot.slane %v391, 5
      %v743 = vrot.slane %v742, 4
      %v744 = vrot.slane %v392, 5
      %v745 = vsel %vm725, %v743, %v744
      %v746 = vrot.slane %v393, 5
      %v747 = vrot.slane %v746, 4
      %v748 = vrot.slane %v394, 5
      %v749 = vsel %vm725, %v747, %v748
      %v750 = vrot.slane %v395, 5
      %v751 = vrot.slane %v750, 4
      %v752 = vrot.slane %v396, 5
      %v753 = vsel %vm725, %v751, %v752
      %v754 = vrot.slane %v397, 5
      %v755 = vrot.slane %v754, 4
      %v756 = vrot.slane %v398, 5
      %v757 = vsel %vm725, %v755, %v756
      %s758 = scalar_lea.vmem %s1, 4
      %v759 = vld [vmem:[%s758] sm:$0x3]
      %v760 = vunpack.c.l.b16 %v729
      %v761 = vunpack.c.l.b16 %v733
      %v762 = vunpack.c.l.b16 %v737
      %v763 = vunpack.c.l.b16 %v741
      %v764 = vunpack.c.l.b16 %v745
      %v765 = vunpack.c.l.b16 %v749
      %v766 = vunpack.c.l.b16 %v753
      %v767 = vunpack.c.l.b16 %v757
      %v768 = vpack.c.b16 %v761, %v760
      %v769 = vpack.c.b16 %v763, %v762
      %v770 = vpack.c.b16 %v765, %v764
      %v771 = vpack.c.b16 %v767, %v766
      %v773 = vsel %vm533, %v768, 0
      %v776 = vsel %vm533, %v769, 0
      %v779 = vsel %vm533, %v770, 0
      %v782 = vsel %vm533, %v771, 0
      %v785 = vsel %vm546, %v759, 0
      %787 = vmatprep.subr.bf16.mxu0 0
      %788 = vmatpush1.bf16.msra.mxu0 %v785
      %789 = vmatprep.subr.bf16.mxu0 0
      %790 = vmatpush1.bf16.msra.mxu0 0
      %791 = vmatprep.subr.bf16.mxu0 0
      %792 = vmatpush1.bf16.msra.mxu0 0
      %793 = vmatprep.subr.bf16.mxu0 0
      %794 = vmatpush1.bf16.msra.mxu0 0
      %795 = vmatprep.subr.bf16.mxu0 0
      %796 = vmatpush1.bf16.msra.mxu0 0
      %797 = vmatprep.subr.bf16.mxu0 0
      %798 = vmatpush1.bf16.msra.mxu0 0
      %799 = vmatprep.subr.bf16.mxu0 0
      %800 = vmatpush1.bf16.msra.mxu0 0
      %801 = vmatprep.subr.bf16.mxu0 0
      %802 = vmatpush1.bf16.msra.mxu0 0
      %803 = vmatprep.subr.bf16.mxu0 0
      %804 = vmatpush1.bf16.msra.mxu0 0
      %805 = vmatprep.subr.bf16.mxu0 0
      %806 = vmatpush1.bf16.msra.mxu0 0
      %807 = vmatprep.subr.bf16.mxu0 0
      %808 = vmatpush1.bf16.msra.mxu0 0
      %809 = vmatprep.subr.bf16.mxu0 0
      %810 = vmatpush1.bf16.msra.mxu0 0
      %811 = vmatprep.subr.bf16.mxu0 0
      %812 = vmatpush1.bf16.msra.mxu0 0
      %813 = vmatprep.subr.bf16.mxu0 0
      %814 = vmatpush1.bf16.msra.mxu0 0
      %815 = vmatprep.subr.bf16.mxu0 0
      %816 = vmatpush1.bf16.msra.mxu0 0
      %817 = vmatprep.subr.bf16.mxu0 0
      %818 = vmatpush1.bf16.msra.mxu0 0
      %819 = vmatprep.mubr.bf16.mxu0 0
      %820 = vmatmul.mubr.bf16.gmra.mrb[0].mxu0 %v773
      %v821 = vpop.f32.mrb[0].mxu0
      %v822 = vadd.f32 0.0, %v821
      %v823 = vpop.f32.mrb[0].mxu0
      %v824 = vpop.f32.mrb[0].mxu0
      %v825 = vadd.f32 0.0, %v824
      %v826 = vpop.f32.mrb[0].mxu0
      %827 = vmatprep.mubr.bf16.mxu0 0
      %828 = vmatmul.mubr.bf16.gmra.mrb[0].mxu0 %v776
      %v829 = vpop.f32.mrb[0].mxu0
      %v830 = vadd.f32 0.0, %v829
      %v831 = vpop.f32.mrb[0].mxu0
      %v832 = vpop.f32.mrb[0].mxu0
      %v833 = vadd.f32 0.0, %v832
      %v834 = vpop.f32.mrb[0].mxu0
      %835 = vmatprep.mubr.bf16.mxu0 0
      %836 = vmatmul.mubr.bf16.gmra.mrb[0].mxu0 %v779
      %v837 = vpop.f32.mrb[0].mxu0
      %v838 = vadd.f32 0.0, %v837
      %v839 = vpop.f32.mrb[0].mxu0
      %v840 = vpop.f32.mrb[0].mxu0
      %v841 = vadd.f32 0.0, %v840
      %v842 = vpop.f32.mrb[0].mxu0
      %843 = vmatprep.mubr.bf16.mxu0 0
      %844 = vmatmul.mubr.bf16.gmra.mrb[0].mxu0 %v782
      %v845 = vpop.f32.mrb[0].mxu0
      %v846 = vadd.f32 0.0, %v845
      %v847 = vpop.f32.mrb[0].mxu0
      %v848 = vpop.f32.mrb[0].mxu0
      %v849 = vadd.f32 0.0, %v848
      %v850 = vpop.f32.mrb[0].mxu0
      %851 = vdwg.mxu0
      %v852 = vadd.f32 %v685, %v822
      %v853 = vadd.f32 %v688, %v825
      %v854 = vadd.f32 %v693, %v830
      %v855 = vadd.f32 %v696, %v833
      %v856 = vadd.f32 %v701, %v838
      %v857 = vadd.f32 %v704, %v841
      %v858 = vadd.f32 %v709, %v846
      %v859 = vadd.f32 %v712, %v849
      %s860 = scalar_lea.vmem %s1, 6
      %v861 = vld [vmem:[%s860] sm:$0x3]
      %v863 = vunpack.c.l.b16 %v399
      %v864 = vpack.c.b16 %v625, %v624
      %v865 = vpack.c.b16 %v627, %v626
      %v866 = vpack.c.b16 %v629, %v628
      %v867 = vpack.c.b16 %v863, %v630
      %v869 = vsel %vm533, %v864, 0
      %v872 = vsel %vm533, %v865, 0
      %v875 = vsel %vm533, %v866, 0
      %v878 = vsel %vm533, %v867, 0
      %v881 = vsel %vm546, %v861, 0
      %883 = vmatprep.subr.bf16.mxu0 0
      %884 = vmatpush1.bf16.msra.mxu0 %v881
      %885 = vmatprep.subr.bf16.mxu0 0
      %886 = vmatpush1.bf16.msra.mxu0 0
      %887 = vmatprep.subr.bf16.mxu0 0
      %888 = vmatpush1.bf16.msra.mxu0 0
      %889 = vmatprep.subr.bf16.mxu0 0
      %890 = vmatpush1.bf16.msra.mxu0 0
      %891 = vmatprep.subr.bf16.mxu0 0
      %892 = vmatpush1.bf16.msra.mxu0 0
      %893 = vmatprep.subr.bf16.mxu0 0
      %894 = vmatpush1.bf16.msra.mxu0 0
      %895 = vmatprep.subr.bf16.mxu0 0
      %896 = vmatpush1.bf16.msra.mxu0 0
      %897 = vmatprep.subr.bf16.mxu0 0
      %898 = vmatpush1.bf16.msra.mxu0 0
      %899 = vmatprep.subr.bf16.mxu0 0
      %900 = vmatpush1.bf16.msra.mxu0 0
      %901 = vmatprep.subr.bf16.mxu0 0
      %902 = vmatpush1.bf16.msra.mxu0 0
      %903 = vmatprep.subr.bf16.mxu0 0
      %904 = vmatpush1.bf16.msra.mxu0 0
      %905 = vmatprep.subr.bf16.mxu0 0
      %906 = vmatpush1.bf16.msra.mxu0 0
      %907 = vmatprep.subr.bf16.mxu0 0
      %908 = vmatpush1.bf16.msra.mxu0 0
      %909 = vmatprep.subr.bf16.mxu0 0
      %910 = vmatpush1.bf16.msra.mxu0 0
      %911 = vmatprep.subr.bf16.mxu0 0
      %912 = vmatpush1.bf16.msra.mxu0 0
      %913 = vmatprep.subr.bf16.mxu0 0
      %914 = vmatpush1.bf16.msra.mxu0 0
      %915 = vmatprep.mubr.bf16.mxu0 0
      %916 = vmatmul.mubr.bf16.gmra.mrb[0].mxu0 %v869
      %v917 = vpop.f32.mrb[0].mxu0
      %v918 = vadd.f32 0.0, %v917
      %v919 = vpop.f32.mrb[0].mxu0
      %v920 = vpop.f32.mrb[0].mxu0
      %v921 = vadd.f32 0.0, %v920
      %v922 = vpop.f32.mrb[0].mxu0
      %923 = vmatprep.mubr.bf16.mxu0 0
      %924 = vmatmul.mubr.bf16.gmra.mrb[0].mxu0 %v872
      %v925 = vpop.f32.mrb[0].mxu0
      %v926 = vadd.f32 0.0, %v925
      %v927 = vpop.f32.mrb[0].mxu0
      %v928 = vpop.f32.mrb[0].mxu0
      %v929 = vadd.f32 0.0, %v928
      %v930 = vpop.f32.mrb[0].mxu0
      %931 = vmatprep.mubr.bf16.mxu0 0
      %932 = vmatmul.mubr.bf16.gmra.mrb[0].mxu0 %v875
      %v933 = vpop.f32.mrb[0].mxu0
      %v934 = vadd.f32 0.0, %v933
      %v935 = vpop.f32.mrb[0].mxu0
      %v936 = vpop.f32.mrb[0].mxu0
      %v937 = vadd.f32 0.0, %v936
      %v938 = vpop.f32.mrb[0].mxu0
      %939 = vmatprep.mubr.bf16.mxu0 0
      %940 = vmatmul.mubr.bf16.gmra.mrb[0].mxu0 %v878
      %v941 = vpop.f32.mrb[0].mxu0
      %v942 = vadd.f32 0.0, %v941
      %v943 = vpop.f32.mrb[0].mxu0
      %v944 = vpop.f32.mrb[0].mxu0
      %v945 = vadd.f32 0.0, %v944
      %v946 = vpop.f32.mrb[0].mxu0
      %947 = vdwg.mxu0
      %v948 = vadd.f32 %v852, %v918
      %v949 = vadd.f32 %v853, %v921
      %v950 = vadd.f32 %v854, %v926
      %v951 = vadd.f32 %v855, %v929
      %v952 = vadd.f32 %v856, %v934
      %v953 = vadd.f32 %v857, %v937
      %v954 = vadd.f32 %v858, %v942
      %v955 = vadd.f32 %v859, %v945
      %v957 = vshrl.u32 %v399, 16
      %v959 = vrot.slane %v957, 4
      %v960 = vshll.u32 %v399, 16
      %v962 = vrot.slane %v960, 5
      %v963 = vor.u32 %v959, %v962
      %v964 = vrot.slane %v963, 4
      %v966 = vshll.u32 %v400, 16
      %v968 = vrot.slane %v966, 5
      %v969 = vsel %vm406, %v964, %v968
      %s970 = scalar_lea.vmem %s1, 8
      %v971 = vld [vmem:[%s970] sm:$0x3]
      %v972 = vunpack.c.l.b16 %v969
      %v973 = vpack.c.b16 %v523, %v522
      %v974 = vpack.c.b16 %v525, %v524
      %v975 = vpack.c.b16 %v527, %v526
      %v976 = vpack.c.b16 %v972, %v528
      %v978 = vsel %vm533, %v973, 0
      %v981 = vsel %vm533, %v974, 0
      %v984 = vsel %vm533, %v975, 0
      %v987 = vsel %vm533, %v976, 0
      %v990 = vsel %vm546, %v971, 0
      %992 = vmatprep.subr.bf16.mxu0 0
      %993 = vmatpush1.bf16.msra.mxu0 %v990
      %994 = vmatprep.subr.bf16.mxu0 0
      %995 = vmatpush1.bf16.msra.mxu0 0
      %996 = vmatprep.subr.bf16.mxu0 0
      %997 = vmatpush1.bf16.msra.mxu0 0
      %998 = vmatprep.subr.bf16.mxu0 0
      %999 = vmatpush1.bf16.msra.mxu0 0
      %1000 = vmatprep.subr.bf16.mxu0 0
      %1001 = vmatpush1.bf16.msra.mxu0 0
      %1002 = vmatprep.subr.bf16.mxu0 0
      %1003 = vmatpush1.bf16.msra.mxu0 0
      %1004 = vmatprep.subr.bf16.mxu0 0
      %1005 = vmatpush1.bf16.msra.mxu0 0
      %1006 = vmatprep.subr.bf16.mxu0 0
      %1007 = vmatpush1.bf16.msra.mxu0 0
      %1008 = vmatprep.subr.bf16.mxu0 0
      %1009 = vmatpush1.bf16.msra.mxu0 0
      %1010 = vmatprep.subr.bf16.mxu0 0
      %1011 = vmatpush1.bf16.msra.mxu0 0
      %1012 = vmatprep.subr.bf16.mxu0 0
      %1013 = vmatpush1.bf16.msra.mxu0 0
      %1014 = vmatprep.subr.bf16.mxu0 0
      %1015 = vmatpush1.bf16.msra.mxu0 0
      %1016 = vmatprep.subr.bf16.mxu0 0
      %1017 = vmatpush1.bf16.msra.mxu0 0
      %1018 = vmatprep.subr.bf16.mxu0 0
      %1019 = vmatpush1.bf16.msra.mxu0 0
      %1020 = vmatprep.subr.bf16.mxu0 0
      %1021 = vmatpush1.bf16.msra.mxu0 0
      %1022 = vmatprep.subr.bf16.mxu0 0
      %1023 = vmatpush1.bf16.msra.mxu0 0
      %1024 = vmatprep.mubr.bf16.mxu0 0
      %1025 = vmatmul.mubr.bf16.gmra.mrb[0].mxu0 %v978
      %v1026 = vpop.f32.mrb[0].mxu0
      %v1027 = vadd.f32 0.0, %v1026
      %v1028 = vpop.f32.mrb[0].mxu0
      %v1029 = vpop.f32.mrb[0].mxu0
      %v1030 = vadd.f32 0.0, %v1029
      %v1031 = vpop.f32.mrb[0].mxu0
      %1032 = vmatprep.mubr.bf16.mxu0 0
      %1033 = vmatmul.mubr.bf16.gmra.mrb[0].mxu0 %v981
      %v1034 = vpop.f32.mrb[0].mxu0
      %v1035 = vadd.f32 0.0, %v1034
      %v1036 = vpop.f32.mrb[0].mxu0
      %v1037 = vpop.f32.mrb[0].mxu0
      %v1038 = vadd.f32 0.0, %v1037
      %v1039 = vpop.f32.mrb[0].mxu0
      %1040 = vmatprep.mubr.bf16.mxu0 0
      %1041 = vmatmul.mubr.bf16.gmra.mrb[0].mxu0 %v984
      %v1042 = vpop.f32.mrb[0].mxu0
      %v1043 = vadd.f32 0.0, %v1042
      %v1044 = vpop.f32.mrb[0].mxu0
      %v1045 = vpop.f32.mrb[0].mxu0
      %v1046 = vadd.f32 0.0, %v1045
      %v1047 = vpop.f32.mrb[0].mxu0
      %1048 = vmatprep.mubr.bf16.mxu0 0
      %1049 = vmatmul.mubr.bf16.gmra.mrb[0].mxu0 %v987
      %v1050 = vpop.f32.mrb[0].mxu0
      %v1051 = vadd.f32 0.0, %v1050
      %v1052 = vpop.f32.mrb[0].mxu0
      %v1053 = vpop.f32.mrb[0].mxu0
      %v1054 = vadd.f32 0.0, %v1053
      %v1055 = vpop.f32.mrb[0].mxu0
      %1056 = vdwg.mxu0
      %v1057 = vadd.f32 %v948, %v1027
      %v1058 = vadd.f32 %v949, %v1030
      %v1059 = vadd.f32 %v950, %v1035
      %v1060 = vadd.f32 %v951, %v1038
      %v1061 = vadd.f32 %v952, %v1043
      %v1062 = vadd.f32 %v953, %v1046
      %v1063 = vadd.f32 %v954, %v1051
      %v1064 = vadd.f32 %v955, %v1054
      %v1066 = vrot.slane %v399, 5
      %v1067 = vrot.slane %v1066, 4
      %v1068 = vrot.slane %v400, 5
      %v1069 = vsel %vm725, %v1067, %v1068
      %s1070 = scalar_lea.vmem %s1, 10
      %v1071 = vld [vmem:[%s1070] sm:$0x3]
      %v1072 = vunpack.c.l.b16 %v1069
      %v1073 = vpack.c.b16 %v762, %v761
      %v1074 = vpack.c.b16 %v764, %v763
      %v1075 = vpack.c.b16 %v766, %v765
      %v1076 = vpack.c.b16 %v1072, %v767
      %v1078 = vsel %vm533, %v1073, 0
      %v1081 = vsel %vm533, %v1074, 0
      %v1084 = vsel %vm533, %v1075, 0
      %v1087 = vsel %vm533, %v1076, 0
      %v1090 = vsel %vm546, %v1071, 0
      %1092 = vmatprep.subr.bf16.mxu0 0
      %1093 = vmatpush1.bf16.msra.mxu0 %v1090
      %1094 = vmatprep.subr.bf16.mxu0 0
      %1095 = vmatpush1.bf16.msra.mxu0 0
      %1096 = vmatprep.subr.bf16.mxu0 0
      %1097 = vmatpush1.bf16.msra.mxu0 0
      %1098 = vmatprep.subr.bf16.mxu0 0
      %1099 = vmatpush1.bf16.msra.mxu0 0
      %1100 = vmatprep.subr.bf16.mxu0 0
      %1101 = vmatpush1.bf16.msra.mxu0 0
      %1102 = vmatprep.subr.bf16.mxu0 0
      %1103 = vmatpush1.bf16.msra.mxu0 0
      %1104 = vmatprep.subr.bf16.mxu0 0
      %1105 = vmatpush1.bf16.msra.mxu0 0
      %1106 = vmatprep.subr.bf16.mxu0 0
      %1107 = vmatpush1.bf16.msra.mxu0 0
      %1108 = vmatprep.subr.bf16.mxu0 0
      %1109 = vmatpush1.bf16.msra.mxu0 0
      %1110 = vmatprep.subr.bf16.mxu0 0
      %1111 = vmatpush1.bf16.msra.mxu0 0
      %1112 = vmatprep.subr.bf16.mxu0 0
      %1113 = vmatpush1.bf16.msra.mxu0 0
      %1114 = vmatprep.subr.bf16.mxu0 0
      %1115 = vmatpush1.bf16.msra.mxu0 0
      %1116 = vmatprep.subr.bf16.mxu0 0
      %1117 = vmatpush1.bf16.msra.mxu0 0
      %1118 = vmatprep.subr.bf16.mxu0 0
      %1119 = vmatpush1.bf16.msra.mxu0 0
      %1120 = vmatprep.subr.bf16.mxu0 0
      %1121 = vmatpush1.bf16.msra.mxu0 0
      %1122 = vmatprep.subr.bf16.mxu0 0
      %1123 = vmatpush1.bf16.msra.mxu0 0
      %1124 = vmatprep.mubr.bf16.mxu0 0
      %1125 = vmatmul.mubr.bf16.gmra.mrb[0].mxu0 %v1078
      %v1126 = vpop.f32.mrb[0].mxu0
      %v1127 = vadd.f32 0.0, %v1126
      %v1128 = vpop.f32.mrb[0].mxu0
      %v1129 = vpop.f32.mrb[0].mxu0
      %v1130 = vadd.f32 0.0, %v1129
      %v1131 = vpop.f32.mrb[0].mxu0
      %1132 = vmatprep.mubr.bf16.mxu0 0
      %1133 = vmatmul.mubr.bf16.gmra.mrb[0].mxu0 %v1081
      %v1134 = vpop.f32.mrb[0].mxu0
      %v1135 = vadd.f32 0.0, %v1134
      %v1136 = vpop.f32.mrb[0].mxu0
      %v1137 = vpop.f32.mrb[0].mxu0
      %v1138 = vadd.f32 0.0, %v1137
      %v1139 = vpop.f32.mrb[0].mxu0
      %1140 = vmatprep.mubr.bf16.mxu0 0
      %1141 = vmatmul.mubr.bf16.gmra.mrb[0].mxu0 %v1084
      %v1142 = vpop.f32.mrb[0].mxu0
      %v1143 = vadd.f32 0.0, %v1142
      %v1144 = vpop.f32.mrb[0].mxu0
      %v1145 = vpop.f32.mrb[0].mxu0
      %v1146 = vadd.f32 0.0, %v1145
      %v1147 = vpop.f32.mrb[0].mxu0
      %1148 = vmatprep.mubr.bf16.mxu0 0
      %1149 = vmatmul.mubr.bf16.gmra.mrb[0].mxu0 %v1087
      %v1150 = vpop.f32.mrb[0].mxu0
      %v1151 = vadd.f32 0.0, %v1150
      %v1152 = vpop.f32.mrb[0].mxu0
      %v1153 = vpop.f32.mrb[0].mxu0
      %v1154 = vadd.f32 0.0, %v1153
      %v1155 = vpop.f32.mrb[0].mxu0
      %1156 = vdwg.mxu0
      %v1157 = vadd.f32 %v1057, %v1127
      %v1158 = vadd.f32 %v1058, %v1130
      %v1159 = vadd.f32 %v1059, %v1135
      %v1160 = vadd.f32 %v1060, %v1138
      %v1161 = vadd.f32 %v1061, %v1143
      %v1162 = vadd.f32 %v1062, %v1146
      %v1163 = vadd.f32 %v1063, %v1151
      %v1164 = vadd.f32 %v1064, %v1154
      %s1165 = scalar_lea.vmem %s1, 12
      %v1166 = vld [vmem:[%s1165] sm:$0x3]
      %v1168 = vunpack.c.l.b16 %v401
      %v1169 = vpack.c.b16 %v1168, %v863
      %v1171 = vsel %vm533, %v1169, 0
      %v1174 = vsel %vm546, %v1166, 0
      %1176 = vmatprep.subr.bf16.mxu0 0
      %1177 = vmatpush1.bf16.msra.mxu0 %v1174
      %1178 = vmatprep.subr.bf16.mxu0 0
      %1179 = vmatpush1.bf16.msra.mxu0 0
      %1180 = vmatprep.subr.bf16.mxu0 0
      %1181 = vmatpush1.bf16.msra.mxu0 0
      %1182 = vmatprep.subr.bf16.mxu0 0
      %1183 = vmatpush1.bf16.msra.mxu0 0
      %1184 = vmatprep.subr.bf16.mxu0 0
      %1185 = vmatpush1.bf16.msra.mxu0 0
      %1186 = vmatprep.subr.bf16.mxu0 0
      %1187 = vmatpush1.bf16.msra.mxu0 0
      %1188 = vmatprep.subr.bf16.mxu0 0
      %1189 = vmatpush1.bf16.msra.mxu0 0
      %1190 = vmatprep.subr.bf16.mxu0 0
      %1191 = vmatpush1.bf16.msra.mxu0 0
      %1192 = vmatprep.subr.bf16.mxu0 0
      %1193 = vmatpush1.bf16.msra.mxu0 0
      %1194 = vmatprep.subr.bf16.mxu0 0
      %1195 = vmatpush1.bf16.msra.mxu0 0
      %1196 = vmatprep.subr.bf16.mxu0 0
      %1197 = vmatpush1.bf16.msra.mxu0 0
      %1198 = vmatprep.subr.bf16.mxu0 0
      %1199 = vmatpush1.bf16.msra.mxu0 0
      %1200 = vmatprep.subr.bf16.mxu0 0
      %1201 = vmatpush1.bf16.msra.mxu0 0
      %1202 = vmatprep.subr.bf16.mxu0 0
      %1203 = vmatpush1.bf16.msra.mxu0 0
      %1204 = vmatprep.subr.bf16.mxu0 0
      %1205 = vmatpush1.bf16.msra.mxu0 0
      %1206 = vmatprep.subr.bf16.mxu0 0
      %1207 = vmatpush1.bf16.msra.mxu0 0
      %1208 = vmatprep.mubr.bf16.mxu0 0
      %1209 = vmatmul.mubr.bf16.gmra.mrb[0].mxu0 %v639
      %v1210 = vpop.f32.mrb[0].mxu0
      %v1211 = vadd.f32 0.0, %v1210
      %v1212 = vpop.f32.mrb[0].mxu0
      %v1213 = vpop.f32.mrb[0].mxu0
      %v1214 = vadd.f32 0.0, %v1213
      %v1215 = vpop.f32.mrb[0].mxu0
      %1216 = vmatprep.mubr.bf16.mxu0 0
      %1217 = vmatmul.mubr.bf16.gmra.mrb[0].mxu0 %v642
      %v1218 = vpop.f32.mrb[0].mxu0
      %v1219 = vadd.f32 0.0, %v1218
      %v1220 = vpop.f32.mrb[0].mxu0
      %v1221 = vpop.f32.mrb[0].mxu0
      %v1222 = vadd.f32 0.0, %v1221
      %v1223 = vpop.f32.mrb[0].mxu0
      %1224 = vmatprep.mubr.bf16.mxu0 0
      %1225 = vmatmul.mubr.bf16.gmra.mrb[0].mxu0 %v645
      %v1226 = vpop.f32.mrb[0].mxu0
      %v1227 = vadd.f32 0.0, %v1226
      %v1228 = vpop.f32.mrb[0].mxu0
      %v1229 = vpop.f32.mrb[0].mxu0
      %v1230 = vadd.f32 0.0, %v1229
      %v1231 = vpop.f32.mrb[0].mxu0
      %1232 = vmatprep.mubr.bf16.mxu0 0
      %1233 = vmatmul.mubr.bf16.gmra.mrb[0].mxu0 %v1171
      %v1234 = vpop.f32.mrb[0].mxu0
      %v1235 = vadd.f32 0.0, %v1234
      %v1236 = vpop.f32.mrb[0].mxu0
      %v1237 = vpop.f32.mrb[0].mxu0
      %v1238 = vadd.f32 0.0, %v1237
      %v1239 = vpop.f32.mrb[0].mxu0
      %1240 = vdwg.mxu0
      %v1241 = vadd.f32 %v1157, %v1211
      %v1242 = vadd.f32 %v1158, %v1214
      %v1243 = vadd.f32 %v1159, %v1219
      %v1244 = vadd.f32 %v1160, %v1222
      %v1245 = vadd.f32 %v1161, %v1227
      %v1246 = vadd.f32 %v1162, %v1230
      %v1247 = vadd.f32 %v1163, %v1235
      %v1248 = vadd.f32 %v1164, %v1238
      %v1250 = vshrl.u32 %v401, 16
      %v1252 = vrot.slane %v1250, 4
      %v1253 = vshll.u32 %v401, 16
      %v1255 = vrot.slane %v1253, 5
      %v1256 = vor.u32 %v1252, %v1255
      %v1257 = vrot.slane %v1256, 4
      %v1259 = vshll.u32 %v402, 16
      %v1261 = vrot.slane %v1259, 5
      %v1262 = vsel %vm406, %v1257, %v1261
      %s1263 = scalar_lea.vmem %s1, 14
      %v1264 = vld [vmem:[%s1263] sm:$0x3]
      %v1265 = vunpack.c.l.b16 %v1262
      %v1266 = vpack.c.b16 %v1265, %v972
      %v1268 = vsel %vm533, %v1266, 0
      %v1271 = vsel %vm546, %v1264, 0
      %1273 = vmatprep.subr.bf16.mxu0 0
      %1274 = vmatpush1.bf16.msra.mxu0 %v1271
      %1275 = vmatprep.subr.bf16.mxu0 0
      %1276 = vmatpush1.bf16.msra.mxu0 0
      %1277 = vmatprep.subr.bf16.mxu0 0
      %1278 = vmatpush1.bf16.msra.mxu0 0
      %1279 = vmatprep.subr.bf16.mxu0 0
      %1280 = vmatpush1.bf16.msra.mxu0 0
      %1281 = vmatprep.subr.bf16.mxu0 0
      %1282 = vmatpush1.bf16.msra.mxu0 0
      %1283 = vmatprep.subr.bf16.mxu0 0
      %1284 = vmatpush1.bf16.msra.mxu0 0
      %1285 = vmatprep.subr.bf16.mxu0 0
      %1286 = vmatpush1.bf16.msra.mxu0 0
      %1287 = vmatprep.subr.bf16.mxu0 0
      %1288 = vmatpush1.bf16.msra.mxu0 0
      %1289 = vmatprep.subr.bf16.mxu0 0
      %1290 = vmatpush1.bf16.msra.mxu0 0
      %1291 = vmatprep.subr.bf16.mxu0 0
      %1292 = vmatpush1.bf16.msra.mxu0 0
      %1293 = vmatprep.subr.bf16.mxu0 0
      %1294 = vmatpush1.bf16.msra.mxu0 0
      %1295 = vmatprep.subr.bf16.mxu0 0
      %1296 = vmatpush1.bf16.msra.mxu0 0
      %1297 = vmatprep.subr.bf16.mxu0 0
      %1298 = vmatpush1.bf16.msra.mxu0 0
      %1299 = vmatprep.subr.bf16.mxu0 0
      %1300 = vmatpush1.bf16.msra.mxu0 0
      %1301 = vmatprep.subr.bf16.mxu0 0
      %1302 = vmatpush1.bf16.msra.mxu0 0
      %1303 = vmatprep.subr.bf16.mxu0 0
      %1304 = vmatpush1.bf16.msra.mxu0 0
      %1305 = vmatprep.mubr.bf16.mxu0 0
      %1306 = vmatmul.mubr.bf16.gmra.mrb[0].mxu0 %v538
      %v1307 = vpop.f32.mrb[0].mxu0
      %v1308 = vadd.f32 0.0, %v1307
      %v1309 = vpop.f32.mrb[0].mxu0
      %v1310 = vpop.f32.mrb[0].mxu0
      %v1311 = vadd.f32 0.0, %v1310
      %v1312 = vpop.f32.mrb[0].mxu0
      %1313 = vmatprep.mubr.bf16.mxu0 0
      %1314 = vmatmul.mubr.bf16.gmra.mrb[0].mxu0 %v541
      %v1315 = vpop.f32.mrb[0].mxu0
      %v1316 = vadd.f32 0.0, %v1315
      %v1317 = vpop.f32.mrb[0].mxu0
      %v1318 = vpop.f32.mrb[0].mxu0
      %v1319 = vadd.f32 0.0, %v1318
      %v1320 = vpop.f32.mrb[0].mxu0
      %1321 = vmatprep.mubr.bf16.mxu0 0
      %1322 = vmatmul.mubr.bf16.gmra.mrb[0].mxu0 %v544
      %v1323 = vpop.f32.mrb[0].mxu0
      %v1324 = vadd.f32 0.0, %v1323
      %v1325 = vpop.f32.mrb[0].mxu0
      %v1326 = vpop.f32.mrb[0].mxu0
      %v1327 = vadd.f32 0.0, %v1326
      %v1328 = vpop.f32.mrb[0].mxu0
      %1329 = vmatprep.mubr.bf16.mxu0 0
      %1330 = vmatmul.mubr.bf16.gmra.mrb[0].mxu0 %v1268
      %v1331 = vpop.f32.mrb[0].mxu0
      %v1332 = vadd.f32 0.0, %v1331
      %v1333 = vpop.f32.mrb[0].mxu0
      %v1334 = vpop.f32.mrb[0].mxu0
      %v1335 = vadd.f32 0.0, %v1334
      %v1336 = vpop.f32.mrb[0].mxu0
      %1337 = vdwg.mxu0
      %v1338 = vadd.f32 %v1241, %v1308
      %v1339 = vadd.f32 %v1242, %v1311
      %v1340 = vadd.f32 %v1243, %v1316
      %v1341 = vadd.f32 %v1244, %v1319
      %v1342 = vadd.f32 %v1245, %v1324
      %v1343 = vadd.f32 %v1246, %v1327
      %v1344 = vadd.f32 %v1247, %v1332
      %v1345 = vadd.f32 %v1248, %v1335
      %v1347 = vrot.slane %v401, 5
      %v1348 = vrot.slane %v1347, 4
      %v1349 = vrot.slane %v402, 5
      %v1350 = vsel %vm725, %v1348, %v1349
      %s1351 = scalar_lea.vmem %s1, 16
      %v1352 = vld [vmem:[%s1351] sm:$0x3]
      %v1353 = vunpack.c.l.b16 %v1350
      %v1354 = vpack.c.b16 %v1353, %v1072
      %v1356 = vsel %vm533, %v1354, 0
      %v1359 = vsel %vm546, %v1352, 0
      %1361 = vmatprep.subr.bf16.mxu0 0
      %1362 = vmatpush1.bf16.msra.mxu0 %v1359
      %1363 = vmatprep.subr.bf16.mxu0 0
      %1364 = vmatpush1.bf16.msra.mxu0 0
      %1365 = vmatprep.subr.bf16.mxu0 0
      %1366 = vmatpush1.bf16.msra.mxu0 0
      %1367 = vmatprep.subr.bf16.mxu0 0
      %1368 = vmatpush1.bf16.msra.mxu0 0
      %1369 = vmatprep.subr.bf16.mxu0 0
      %1370 = vmatpush1.bf16.msra.mxu0 0
      %1371 = vmatprep.subr.bf16.mxu0 0
      %1372 = vmatpush1.bf16.msra.mxu0 0
      %1373 = vmatprep.subr.bf16.mxu0 0
      %1374 = vmatpush1.bf16.msra.mxu0 0
      %1375 = vmatprep.subr.bf16.mxu0 0
      %1376 = vmatpush1.bf16.msra.mxu0 0
      %1377 = vmatprep.subr.bf16.mxu0 0
      %1378 = vmatpush1.bf16.msra.mxu0 0
      %1379 = vmatprep.subr.bf16.mxu0 0
      %1380 = vmatpush1.bf16.msra.mxu0 0
      %1381 = vmatprep.subr.bf16.mxu0 0
      %1382 = vmatpush1.bf16.msra.mxu0 0
      %1383 = vmatprep.subr.bf16.mxu0 0
      %1384 = vmatpush1.bf16.msra.mxu0 0
      %1385 = vmatprep.subr.bf16.mxu0 0
      %1386 = vmatpush1.bf16.msra.mxu0 0
      %1387 = vmatprep.subr.bf16.mxu0 0
      %1388 = vmatpush1.bf16.msra.mxu0 0
      %1389 = vmatprep.subr.bf16.mxu0 0
      %1390 = vmatpush1.bf16.msra.mxu0 0
      %1391 = vmatprep.subr.bf16.mxu0 0
      %1392 = vmatpush1.bf16.msra.mxu0 0
      %1393 = vmatprep.mubr.bf16.mxu0 0
      %1394 = vmatmul.mubr.bf16.gmra.mrb[0].mxu0 %v776
      %v1395 = vpop.f32.mrb[0].mxu0
      %v1396 = vadd.f32 0.0, %v1395
      %v1397 = vpop.f32.mrb[0].mxu0
      %v1398 = vpop.f32.mrb[0].mxu0
      %v1399 = vadd.f32 0.0, %v1398
      %v1400 = vpop.f32.mrb[0].mxu0
      %1401 = vmatprep.mubr.bf16.mxu0 0
      %1402 = vmatmul.mubr.bf16.gmra.mrb[0].mxu0 %v779
      %v1403 = vpop.f32.mrb[0].mxu0
      %v1404 = vadd.f32 0.0, %v1403
      %v1405 = vpop.f32.mrb[0].mxu0
      %v1406 = vpop.f32.mrb[0].mxu0
      %v1407 = vadd.f32 0.0, %v1406
      %v1408 = vpop.f32.mrb[0].mxu0
      %1409 = vmatprep.mubr.bf16.mxu0 0
      %1410 = vmatmul.mubr.bf16.gmra.mrb[0].mxu0 %v782
      %v1411 = vpop.f32.mrb[0].mxu0
      %v1412 = vadd.f32 0.0, %v1411
      %v1413 = vpop.f32.mrb[0].mxu0
      %v1414 = vpop.f32.mrb[0].mxu0
      %v1415 = vadd.f32 0.0, %v1414
      %v1416 = vpop.f32.mrb[0].mxu0
      %1417 = vmatprep.mubr.bf16.mxu0 0
      %1418 = vmatmul.mubr.bf16.gmra.mrb[0].mxu0 %v1356
      %v1419 = vpop.f32.mrb[0].mxu0
      %v1420 = vadd.f32 0.0, %v1419
      %v1421 = vpop.f32.mrb[0].mxu0
      %v1422 = vpop.f32.mrb[0].mxu0
      %v1423 = vadd.f32 0.0, %v1422
      %v1424 = vpop.f32.mrb[0].mxu0
      %1425 = vdwg.mxu0
      %v1426 = vadd.f32 %v1338, %v1396
      %v1427 = vadd.f32 %v1339, %v1399
      %v1428 = vadd.f32 %v1340, %v1404
      %v1429 = vadd.f32 %v1341, %v1407
      %v1430 = vadd.f32 %v1342, %v1412
      %v1431 = vadd.f32 %v1343, %v1415
      %v1432 = vadd.f32 %v1344, %v1420
      %v1433 = vadd.f32 %v1345, %v1423
      %1434 = vst [vmem:[%s177] sm:$0xff] %v1426
      %1435 = vst [vmem:[%s177 + $0x8] sm:$0xff] %v1427
      %1436 = vst [vmem:[%s177 + $0x10] sm:$0xff] %v1428
      %1437 = vst [vmem:[%s177 + $0x18] sm:$0xff] %v1429
      %1438 = vst [vmem:[%s177 + $0x20] sm:$0xff] %v1430
      %1439 = vst [vmem:[%s177 + $0x28] sm:$0xff] %v1431
      %1440 = vst [vmem:[%s177 + $0x30] sm:$0xff] %v1432
      %1441 = vst [vmem:[%s177 + $0x38] sm:$0xff] %v1433
      %v1442 = vadd.f32 %v1426, %v1427
      %v1443 = vadd.f32 %v1442, %v1428
      %v1444 = vadd.f32 %v1443, %v1429
      %v1445 = vadd.f32 %v1444, %v1430
      %v1446 = vadd.f32 %v1445, %v1431
      %v1447 = vadd.f32 %v1446, %v1432
      %v1448 = vadd.f32 %v1447, %v1433
      %v1449 = vrot.slane %v1448, 4
      %v1450 = vadd.f32 %v1448, %v1449
      %v1451 = vrot.slane %v1450, 2
      %v1452 = vadd.f32 %v1450, %v1451
      %v1453 = vrot.slane %v1452, 1
      %v1454 = vadd.f32 %v1452, %v1453
      %v1455 = vmul.f32 %v1426, %v1426
      %v1456 = vmul.f32 %v1427, %v1427
      %v1457 = vmul.f32 %v1428, %v1428
      %v1458 = vmul.f32 %v1429, %v1429
      %v1459 = vmul.f32 %v1430, %v1430
      %v1460 = vmul.f32 %v1431, %v1431
      %v1461 = vmul.f32 %v1432, %v1432
      %v1462 = vmul.f32 %v1433, %v1433
      %v1463 = vadd.f32 %v1455, %v1456
      %v1464 = vadd.f32 %v1463, %v1457
      %v1465 = vadd.f32 %v1464, %v1458
      %v1466 = vadd.f32 %v1465, %v1459
      %v1467 = vadd.f32 %v1466, %v1460
      %v1468 = vadd.f32 %v1467, %v1461
      %v1469 = vadd.f32 %v1468, %v1462
      %v1470 = vrot.slane %v1469, 4
      %v1471 = vadd.f32 %v1469, %v1470
      %v1472 = vrot.slane %v1471, 2
      %v1473 = vadd.f32 %v1471, %v1472
      %v1474 = vrot.slane %v1473, 1
      %v1475 = vadd.f32 %v1473, %v1474
      %vm1476 = vcmask 1040384
      %v1477 = vsel %vm1476, %v1454, %v1475
      %1478 = vst [vmem:[%s181] sm:$0x3] %v1477
      %p1479 = scmp.lt.s32.totalorder %s15, 1
      %s1480 = scalar_select %p1479, %s15, 1
      %s1481 = smul.addr %s1480, 8
      %s1482 = smul.addr %s1481, 8
      %s1483 = scalar_lea.vmem %s2, %s1482
      %p1484 = scmp.lt.s32.totalorder %s15, 1
      %s1485 = scalar_select %p1484, %s15, 1
      %s1486 = smul.addr %s1485, 2
      %s1487 = scalar_lea.vmem %s3, %s1486
      // Predicated region
      $region29: #{down_module.3} parent=27 // pred_check
        %p1488 = pneg %p80
      $region30: #{down_module.3} parent=27 // pred_check_branch
        %1490 = sbr.rel (%p1488) target = $region32
      $region31: #{down_module.3} parent=27 // pred_region
        _
      $region32: #{down_module.3} parent=27 // pred_fallthru
        _
      // Predicated region
      $region33: #{down_module.3} parent=27 // pred_check
        %p1491 = pneg %p106
      $region34: #{down_module.3} parent=27 // pred_check_branch
        %1493 = sbr.rel (%p1491) target = $region36
      $region35: #{down_module.3} parent=27 // pred_region
        _
      $region36: #{down_module.3} parent=27 // pred_fallthru
        _
    $region28: #{down_module.3} parent=5 // pred_fallthru
      _
    %p1494 = scmp.le.s32.totalorder 2, %s10
    // Predicated region
    $region37: #{down_module.3} parent=5 // pred_check
      %p1495 = pneg %p1494
    $region38: #{down_module.3} parent=5 // pred_check_branch
      %1497 = sbr.rel (%p1495) target = $region40
    $region39: #{down_module.3} parent=5 // pred_region
      %s1498 = ssub.s32 %s10, 2
      // Predicated region
      $region41: #{down_module.3} parent=39 // pred_check
        %p1499 = pneg %p86
      $region42: #{down_module.3} parent=39 // pred_check_branch
        %1501 = sbr.rel (%p1499) target = $region44
      $region43: #{down_module.3} parent=39 // pred_region
        %p1502 = scmp.lt.s32.totalorder %s16, 1
        %s1503 = scalar_select %p1502, %s16, 1
        %s1504 = smul.addr %s1503, 8
        %s1505 = smul.addr %s1504, 8
        %s1506 = scalar_lea.vmem %s2, %s1505
      $region44: #{down_module.3} parent=39 // pred_fallthru
        _
      // Predicated region
      $region45: #{down_module.3} parent=39 // pred_check
        %p1507 = pneg %p112
      $region46: #{down_module.3} parent=39 // pred_check_branch
        %1509 = sbr.rel (%p1507) target = $region48
      $region47: #{down_module.3} parent=39 // pred_region
        %p1510 = scmp.lt.s32.totalorder %s16, 1
        %s1511 = scalar_select %p1510, %s16, 1
        %s1512 = smul.addr %s1511, 2
        %s1513 = scalar_lea.vmem %s3, %s1512
      $region48: #{down_module.3} parent=39 // pred_fallthru
        _
    $region40: #{down_module.3} parent=5 // pred_fallthru
      _
  $region6: #{down_module.3} parent=0 // loop_footer
    %s14 = sadd.s32 1, %s10
  $region7: #{down_module.3} parent=0 // loop_footer_branch
    %9 = sbr.rel target = $region3
  $region8: #{down_module.3} parent=0 // loop_exit
    _

// kernel: down_module.4
$region0: #{down_module.4}
  #allocation0 [shape = 'u32[]', space=smem, size = 0x4, offset = 0x4, fixed_abs, tag = 'smem constant byte address 0x4 - core index']
  #allocation1 [shape = 'u32[144,128]{1,0:T(1,128)}', space=vmem, size = 0x12000, scoped, tag = 'internal scratch']
  #allocation2 [shape = 'bf16[10,10,128]{2,1,0:T(8,128)(2,1)}', space=vmem, size = 0xa000, scoped, tag = 'scratch operand']
  %s0 = inlined_call_operand.vmem [shape: f32[2,2,128], index: 0, kind: input, shape index: {}]
  %s1 = inlined_call_operand.vmem [shape: f32[2,64,128], index: 1, kind: input, shape index: {}]
  %s2 = inlined_call_operand.vmem [shape: bf16[9,128,128], index: 2, kind: input, shape index: {}]
  %s3 = inlined_call_operand.vmem [shape: f32[2,64,128], index: 3, kind: output, shape index: {0}]
  %s4 = inlined_call_operand.vmem [shape: f32[2,2,128], index: 4, kind: output, shape index: {1}]
  %5 = xla_tuple %s3, %s4
  %s6 = sld [smem:[#allocation0]]
  $region53: #{down_module.4} parent=0
    _
  %s8 = ssub.s32 1, %s6
  %s9 = scalar_select 0, %s8, %s6
  loop: start=0, step=1, limit=4
  $region2: #{down_module.4} parent=0 // loop_pre_header
    _
  $region3: #{down_module.4} parent=0 // loop_header
    %s11 = sphi 0, %s15
    %p12 = scmp.ge.s32.totalorder %s11, 4
    %s19 = sphi 0, %s19
    %s21 = sphi 0, %s19
    %s22 = sphi 0, %s21
    %s36 = sphi 0, %s22
    %s42 = sphi 0, %s44
    %s45 = sphi 0, %s42
    %s46 = sphi 0, %s45
    %s62 = sphi 0, %s46
    %s66 = sphi 0, %s66
    %s68 = sphi 0, %s66
    %s69 = sphi 0, %s68
    %s83 = sphi 0, %s69
    %s89 = sphi 0, %s91
    %s92 = sphi 0, %s89
    %s93 = sphi 0, %s92
    %s109 = sphi 0, %s93
    %s115 = sphi 0, %s117
    %s118 = sphi 0, %s115
    %s119 = sphi 0, %s118
    %s135 = sphi 0, %s119
  $region4: #{down_module.4} parent=0 // loop_header_branch
    %14 = sbr.rel (%p12) target = $region8
  $region5: #{down_module.4} parent=0 // loop_body
    %s16 = ssub.s32 %s11, 1
    %s17 = ssub.s32 %s11, 2
    %s18 = sadd.s32 %s11, 1
    %s20 = sadd.s32 %s19, 1
    %p23 = scmp.eq.s32.totalorder %s11, 1
    %p24 = scmp.ne.s32.totalorder %s19, %s21
    %p25 = scmp.eq.s32.totalorder %s11, 0
    %p26 = por %p24, %p25
    %p27 = scmp.ne.s32.totalorder %s19, %s21
    %p28 = scmp.eq.s32.totalorder %s16, 1
    %p29 = por %p27, %p28
    %p30 = scmp.ne.s32.totalorder %s21, %s22
    %p31 = scmp.eq.s32.totalorder %s16, 0
    %p32 = por %p30, %p31
    %p33 = scmp.ne.s32.totalorder %s21, %s22
    %p34 = scmp.eq.s32.totalorder %s17, 1
    %p35 = por %p33, %p34
    %p37 = scmp.ne.s32.totalorder %s22, %s36
    %p38 = scmp.eq.s32.totalorder %s17, 0
    %p39 = por %p37, %p38
    %s40 = ssub.s32 %s11, %s18
    %p41 = scmp.eq.s32.totalorder %s40, 0
    %s43 = sadd.s32 %s42, 1
    %s44 = scalar_select %p41, %s42, %s43
    %p47 = pneg %p41
    %p48 = scmp.eq.s32.totalorder %s11, 1
    %p49 = por %p47, %p48
    %p50 = scmp.ne.s32.totalorder %s42, %s45
    %p51 = scmp.eq.s32.totalorder %s11, 0
    %p52 = por %p50, %p51
    %p53 = scmp.ne.s32.totalorder %s42, %s45
    %p54 = scmp.eq.s32.totalorder %s16, 1
    %p55 = por %p53, %p54
    %p56 = scmp.ne.s32.totalorder %s45, %s46
    %p57 = scmp.eq.s32.totalorder %s16, 0
    %p58 = por %p56, %p57
    %p59 = scmp.ne.s32.totalorder %s45, %s46
    %p60 = scmp.eq.s32.totalorder %s17, 1
    %p61 = por %p59, %p60
    %p63 = scmp.ne.s32.totalorder %s46, %s62
    %p64 = scmp.eq.s32.totalorder %s17, 0
    %p65 = por %p63, %p64
    %s67 = sadd.s32 %s66, 1
    %p70 = scmp.eq.s32.totalorder %s11, 1
    %p71 = scmp.ne.s32.totalorder %s66, %s68
    %p72 = scmp.eq.s32.totalorder %s11, 0
    %p73 = por %p71, %p72
    %p74 = scmp.ne.s32.totalorder %s66, %s68
    %p75 = scmp.eq.s32.totalorder %s16, 1
    %p76 = por %p74, %p75
    %p77 = scmp.ne.s32.totalorder %s68, %s69
    %p78 = scmp.eq.s32.totalorder %s16, 0
    %p79 = por %p77, %p78
    %p80 = scmp.ne.s32.totalorder %s68, %s69
    %p81 = scmp.eq.s32.totalorder %s17, 1
    %p82 = por %p80, %p81
    %p84 = scmp.ne.s32.totalorder %s69, %s83
    %p85 = scmp.eq.s32.totalorder %s17, 0
    %p86 = por %p84, %p85
    %s87 = ssub.s32 %s11, %s18
    %p88 = scmp.eq.s32.totalorder %s87, 0
    %s90 = sadd.s32 %s89, 1
    %s91 = scalar_select %p88, %s89, %s90
    %p94 = pneg %p88
    %p95 = scmp.eq.s32.totalorder %s11, 1
    %p96 = por %p94, %p95
    %p97 = scmp.ne.s32.totalorder %s89, %s92
    %p98 = scmp.eq.s32.totalorder %s11, 0
    %p99 = por %p97, %p98
    %p100 = scmp.ne.s32.totalorder %s89, %s92
    %p101 = scmp.eq.s32.totalorder %s16, 1
    %p102 = por %p100, %p101
    %p103 = scmp.ne.s32.totalorder %s92, %s93
    %p104 = scmp.eq.s32.totalorder %s16, 0
    %p105 = por %p103, %p104
    %p106 = scmp.ne.s32.totalorder %s92, %s93
    %p107 = scmp.eq.s32.totalorder %s17, 1
    %p108 = por %p106, %p107
    %p110 = scmp.ne.s32.totalorder %s93, %s109
    %p111 = scmp.eq.s32.totalorder %s17, 0
    %p112 = por %p110, %p111
    %s113 = ssub.s32 %s11, %s18
    %p114 = scmp.eq.s32.totalorder %s113, 0
    %s116 = sadd.s32 %s115, 1
    %s117 = scalar_select %p114, %s115, %s116
    %p120 = pneg %p114
    %p121 = scmp.eq.s32.totalorder %s11, 1
    %p122 = por %p120, %p121
    %p123 = scmp.ne.s32.totalorder %s115, %s118
    %p124 = scmp.eq.s32.totalorder %s11, 0
    %p125 = por %p123, %p124
    %p126 = scmp.ne.s32.totalorder %s115, %s118
    %p127 = scmp.eq.s32.totalorder %s16, 1
    %p128 = por %p126, %p127
    %p129 = scmp.ne.s32.totalorder %s118, %s119
    %p130 = scmp.eq.s32.totalorder %s16, 0
    %p131 = por %p129, %p130
    %p132 = scmp.ne.s32.totalorder %s118, %s119
    %p133 = scmp.eq.s32.totalorder %s17, 1
    %p134 = por %p132, %p133
    %p136 = scmp.ne.s32.totalorder %s119, %s135
    %p137 = scmp.eq.s32.totalorder %s17, 0
    %p138 = por %p136, %p137
    %p139 = scmp.le.s32.totalorder 1, %s11
    %p140 = scmp.lt.s32.totalorder %s11, 3
    %p141 = pnand %p139, %p140
    %p142 = pneg %p141
    // Predicated region
    $region9: #{down_module.4} parent=5 // pred_check
      _
    $region10: #{down_module.4} parent=5 // pred_check_branch
      %144 = sbr.rel (%p141) target = $region12
    $region11: #{down_module.4} parent=5 // pred_region
      %s145 = ssub.s32 %s11, 1
      // Predicated region
      $region13: #{down_module.4} parent=11 // pred_check
        %p146 = pneg %p32
      $region14: #{down_module.4} parent=11 // pred_check_branch
        %148 = sbr.rel (%p146) target = $region16
      $region15: #{down_module.4} parent=11 // pred_region
        _
      $region16: #{down_module.4} parent=11 // pred_fallthru
        _
      // Predicated region
      $region17: #{down_module.4} parent=11 // pred_check
        %p149 = pneg %p79
      $region18: #{down_module.4} parent=11 // pred_check_branch
        %151 = sbr.rel (%p149) target = $region20
      $region19: #{down_module.4} parent=11 // pred_region
        _
      $region20: #{down_module.4} parent=11 // pred_fallthru
        _
    $region12: #{down_module.4} parent=5 // pred_fallthru
      _
    %p152 = scmp.lt.s32.totalorder %s11, 2
    // Predicated region
    $region21: #{down_module.4} parent=5 // pred_check
      %p153 = pneg %p152
    $region22: #{down_module.4} parent=5 // pred_check_branch
      %155 = sbr.rel (%p153) target = $region24
    $region23: #{down_module.4} parent=5 // pred_region
      // Predicated region
      $region25: #{down_module.4} parent=23 // pred_check
        %p156 = pneg %p52
      $region26: #{down_module.4} parent=23 // pred_check_branch
        %158 = sbr.rel (%p156) target = $region28
      $region27: #{down_module.4} parent=23 // pred_region
        %p159 = scmp.lt.s32.totalorder %s11, 1
        %s160 = scalar_select %p159, %s11, 1
        %s161 = smul.addr %s160, 8
        %s162 = smul.addr %s161, 8
        %s163 = scalar_lea.vmem %s1, %s162
      $region28: #{down_module.4} parent=23 // pred_fallthru
        _
    $region24: #{down_module.4} parent=5 // pred_fallthru
      _
    %p164 = scmp.le.s32.totalorder 1, %s11
    %p165 = scmp.lt.s32.totalorder %s11, 3
    %p166 = pnand %p164, %p165
    %p167 = pneg %p166
    // Predicated region
    $region29: #{down_module.4} parent=5 // pred_check
      _
    $region30: #{down_module.4} parent=5 // pred_check_branch
      %169 = sbr.rel (%p166) target = $region32
    $region31: #{down_module.4} parent=5 // pred_region
      %s170 = ssub.s32 %s11, 1
      %p171 = pneg %p32
      %p172 = pneg %p29
      %p173 = scmp.lt.s32.totalorder %s16, 1
      %s174 = scalar_select %p173, %s16, 1
      %s175 = smul.addr %s174, 8
      %s176 = smul.addr %s175, 8
      %s177 = scalar_lea.vmem %s1, %s176
      %p178 = pneg %p58
      %p179 = pneg %p55
      %p180 = pneg %p79
      %p181 = pneg %p76
      %p182 = pneg %p105
      %p183 = pneg %p102
      %p184 = scmp.lt.s32.totalorder %s16, 1
      %s185 = scalar_select %p184, %s16, 1
      %s186 = smul.addr %s185, 8
      %s187 = smul.addr %s186, 8
      %s188 = scalar_lea.vmem %s3, %s187
      %p189 = pneg %p131
      %p190 = pneg %p128
      %p191 = scmp.lt.s32.totalorder %s16, 1
      %s192 = scalar_select %p191, %s16, 1
      %s193 = smul.addr %s192, 2
      %s194 = scalar_lea.vmem %s4, %s193
      %p195 = scmp.lt.s32.totalorder %s16, 1
      %s196 = scalar_select %p195, %s16, 1
      %s197 = smul.addr %s196, 8
      %s198 = smul.addr %s197, 8
      %s199 = scalar_lea.vmem %s1, %s198
      %p200 = scmp.lt.s32.totalorder %s16, 1
      %s201 = scalar_select %p200, %s16, 1
      %s202 = smul.addr %s201, 8
      %s203 = smul.addr %s202, 8
      %s204 = scalar_lea.vmem %s3, %s203
      %p205 = scmp.lt.s32.totalorder %s16, 1
      %s206 = scalar_select %p205, %s16, 1
      %s207 = smul.addr %s206, 2
      %s208 = scalar_lea.vmem %s4, %s207
      %v210 = vld [vmem:[%s0] sm:$0x3]
      %v211 = vld [vmem:[%s0 + $0x2] sm:$0x3]
      %vm212 = vcmask 1041408
      %v213 = vsel %vm212, %v210, 0.0
      %v214 = vsel %vm212, %v211, 0.0
      %v215 = vadd.f32 %v213, %v214
      %v216 = vmul.f32 %v215, 0.0078125
      %v217 = vmul.f32 %v216, %v216
      %v219 = vrot.slane %v217, 7
      %v221 = vsub.f32 %v216, %v219
      %v222 = vmax.f32 %v221, 0.0
      %v223 = vadd.f32 %v222, 1e-05
      %v224 = vrsqrt.pop %v223
      %v225 = vld [vmem:[%s199] sm:$0xff]
      %v226 = vld [vmem:[%s199 + $0x8] sm:$0xff]
      %v227 = vld [vmem:[%s199 + $0x10] sm:$0xff]
      %v228 = vld [vmem:[%s199 + $0x18] sm:$0xff]
      %v229 = vld [vmem:[%s199 + $0x20] sm:$0xff]
      %v230 = vld [vmem:[%s199 + $0x28] sm:$0xff]
      %v231 = vld [vmem:[%s199 + $0x30] sm:$0xff]
      %v232 = vld [vmem:[%s199 + $0x38] sm:$0xff]
      %v233 = vlaneseq
      %v234 = vshrl.u32 %v233, 7
      %v235 = vsub.s32 0, %v234
      %v236 = vrot.slane %v216, %v235
      %v237 = vsub.f32 %v225, %v236
      %v238 = vsub.f32 %v226, %v236
      %v239 = vsub.f32 %v227, %v236
      %v240 = vsub.f32 %v228, %v236
      %v241 = vsub.f32 %v229, %v236
      %v242 = vsub.f32 %v230, %v236
      %v243 = vsub.f32 %v231, %v236
      %v244 = vsub.f32 %v232, %v236
      %v245 = vlaneseq
      %v246 = vshrl.u32 %v245, 7
      %v247 = vsub.s32 1, %v246
      %v248 = vrot.slane %v224, %v247
      %v249 = vmul.f32 %v237, %v248
      %v250 = vmul.f32 %v238, %v248
      %v251 = vmul.f32 %v239, %v248
      %v252 = vmul.f32 %v240, %v248
      %v253 = vmul.f32 %v241, %v248
      %v254 = vmul.f32 %v242, %v248
      %v255 = vmul.f32 %v243, %v248
      %v256 = vmul.f32 %v244, %v248
      %v257 = vmax.f32 %v249, 0.0
      %v258 = vmax.f32 %v250, 0.0
      %v259 = vmax.f32 %v251, 0.0
      %v260 = vmax.f32 %v252, 0.0
      %v261 = vmax.f32 %v253, 0.0
      %v262 = vmax.f32 %v254, 0.0
      %v263 = vmax.f32 %v255, 0.0
      %v264 = vmax.f32 %v256, 0.0
      %265 = vst [vmem:[#allocation2] sm:$0xf] 0
      %266 = vst [vmem:[#allocation2 + $0x4] sm:$0x1] 0
      %267 = vst [vmem:[#allocation2 + $0x8] sm:$0xf] 0
      %268 = vst [vmem:[#allocation2 + $0xc] sm:$0x1] 0
      %269 = vst [vmem:[#allocation2 + $0x10] sm:$0xf] 0
      %270 = vst [vmem:[#allocation2 + $0x14] sm:$0x1] 0
      %271 = vst [vmem:[#allocation2 + $0x18] sm:$0xf] 0
      %272 = vst [vmem:[#allocation2 + $0x1c] sm:$0x1] 0
      %273 = vst [vmem:[#allocation2 + $0x20] sm:$0xf] 0
      %274 = vst [vmem:[#allocation2 + $0x24] sm:$0x1] 0
      %275 = vst [vmem:[#allocation2 + $0x28] sm:$0xf] 0
      %276 = vst [vmem:[#allocation2 + $0x2c] sm:$0x1] 0
      %277 = vst [vmem:[#allocation2 + $0x30] sm:$0xf] 0
      %278 = vst [vmem:[#allocation2 + $0x34] sm:$0x1] 0
      %279 = vst [vmem:[#allocation2 + $0x38] sm:$0xf] 0
      %280 = vst [vmem:[#allocation2 + $0x3c] sm:$0x1] 0
      %281 = vst [vmem:[#allocation2 + $0x40] sm:$0xf] 0
      %282 = vst [vmem:[#allocation2 + $0x44] sm:$0x1] 0
      %283 = vst [vmem:[#allocation2 + $0x48] sm:$0xf] 0
      %284 = vst [vmem:[#allocation2 + $0x4c] sm:$0x1] 0
      %v285 = vpack.c.bf16 %v258, %v257
      %v286 = vpack.c.bf16 %v260, %v259
      %v287 = vpack.c.bf16 %v262, %v261
      %v288 = vpack.c.bf16 %v264, %v263
      %v293 = vunpack.c.l.b16 %v285
      %v294 = vunpack.c.h.b16 %v285
      %v295 = vunpack.c.l.b16 %v286
      %v296 = vunpack.c.h.b16 %v286
      %v297 = vunpack.c.l.b16 %v287
      %v298 = vunpack.c.h.b16 %v287
      %v299 = vunpack.c.l.b16 %v288
      %v300 = vunpack.c.h.b16 %v288
      %v301 = vpack.c.b16 %v293, %v293
      %v302 = vpack.c.b16 %v294, %v294
      %v303 = vpack.c.b16 %v295, %v295
      %v304 = vpack.c.b16 %v296, %v296
      %v305 = vpack.c.b16 %v297, %v297
      %v306 = vpack.c.b16 %v298, %v298
      %v307 = vpack.c.b16 %v299, %v299
      %v308 = vpack.c.b16 %v300, %v300
      %v310 = vshrl.u32 %v301, 16
      %v312 = vrot.slane %v310, 7
      %v313 = vshll.u32 %v301, 16
      %v315 = vor.u32 %v312, %v313
      %v316 = vrot.slane %v312, 4
      %v318 = vshrl.u32 %v302, 16
      %v320 = vrot.slane %v318, 7
      %v321 = vshll.u32 %v302, 16
      %v323 = vor.u32 %v320, %v321
      %v324 = vrot.slane %v320, 4
      %v326 = vshrl.u32 %v303, 16
      %v328 = vrot.slane %v326, 7
      %v329 = vshll.u32 %v303, 16
      %v331 = vor.u32 %v328, %v329
      %v332 = vrot.slane %v328, 4
      %v334 = vshrl.u32 %v304, 16
      %v336 = vrot.slane %v334, 7
      %v337 = vshll.u32 %v304, 16
      %v339 = vor.u32 %v336, %v337
      %v340 = vrot.slane %v336, 4
      %v342 = vshrl.u32 %v305, 16
      %v344 = vrot.slane %v342, 7
      %v345 = vshll.u32 %v305, 16
      %v347 = vor.u32 %v344, %v345
      %v348 = vrot.slane %v344, 4
      %v350 = vshrl.u32 %v306, 16
      %v352 = vrot.slane %v350, 7
      %v353 = vshll.u32 %v306, 16
      %v355 = vor.u32 %v352, %v353
      %v356 = vrot.slane %v352, 4
      %v358 = vshrl.u32 %v307, 16
      %v360 = vrot.slane %v358, 7
      %v361 = vshll.u32 %v307, 16
      %v363 = vor.u32 %v360, %v361
      %v364 = vrot.slane %v360, 4
      %v366 = vshrl.u32 %v308, 16
      %v368 = vrot.slane %v366, 7
      %v369 = vshll.u32 %v308, 16
      %v371 = vor.u32 %v368, %v369
      %v372 = vrot.slane %v368, 4
      %s389 = scalar_lea.vmem [#allocation2], 8
      %vm390 = vcmask 1043456
      %vm391 = vsmask.f32 7938
      %vm392 = vmand %vm390, %vm391
      %v393 = vld [vmem:[%s389] sm:$0xf]
      %v394 = vsel %vm392, %v315, %v393
      %395 = vst [vmem:[%s389] sm:$0xf] %v394
      %vm396 = vcmask 1040384
      %vm397 = vsmask.f32 256
      %vm398 = vmand %vm396, %vm397
      %v399 = vld [vmem:[%s389 + $0x4] sm:$0x1]
      %v400 = vsel %vm398, %v316, %v399
      %401 = vst [vmem:[%s389 + $0x4] sm:$0x1] %v400
      %v402 = vld [vmem:[%s389 + $0x8] sm:$0xf]
      %v403 = vsel %vm392, %v323, %v402
      %404 = vst [vmem:[%s389 + $0x8] sm:$0xf] %v403
      %v405 = vld [vmem:[%s389 + $0xc] sm:$0x1]
      %v406 = vsel %vm398, %v324, %v405
      %407 = vst [vmem:[%s389 + $0xc] sm:$0x1] %v406
      %v408 = vld [vmem:[%s389 + $0x10] sm:$0xf]
      %v409 = vsel %vm392, %v331, %v408
      %410 = vst [vmem:[%s389 + $0x10] sm:$0xf] %v409
      %v411 = vld [vmem:[%s389 + $0x14] sm:$0x1]
      %v412 = vsel %vm398, %v332, %v411
      %413 = vst [vmem:[%s389 + $0x14] sm:$0x1] %v412
      %v414 = vld [vmem:[%s389 + $0x18] sm:$0xf]
      %v415 = vsel %vm392, %v339, %v414
      %416 = vst [vmem:[%s389 + $0x18] sm:$0xf] %v415
      %v417 = vld [vmem:[%s389 + $0x1c] sm:$0x1]
      %v418 = vsel %vm398, %v340, %v417
      %419 = vst [vmem:[%s389 + $0x1c] sm:$0x1] %v418
      %v420 = vld [vmem:[%s389 + $0x20] sm:$0xf]
      %v421 = vsel %vm392, %v347, %v420
      %422 = vst [vmem:[%s389 + $0x20] sm:$0xf] %v421
      %v423 = vld [vmem:[%s389 + $0x24] sm:$0x1]
      %v424 = vsel %vm398, %v348, %v423
      %425 = vst [vmem:[%s389 + $0x24] sm:$0x1] %v424
      %v426 = vld [vmem:[%s389 + $0x28] sm:$0xf]
      %v427 = vsel %vm392, %v355, %v426
      %428 = vst [vmem:[%s389 + $0x28] sm:$0xf] %v427
      %v429 = vld [vmem:[%s389 + $0x2c] sm:$0x1]
      %v430 = vsel %vm398, %v356, %v429
      %431 = vst [vmem:[%s389 + $0x2c] sm:$0x1] %v430
      %v432 = vld [vmem:[%s389 + $0x30] sm:$0xf]
      %v433 = vsel %vm392, %v363, %v432
      %434 = vst [vmem:[%s389 + $0x30] sm:$0xf] %v433
      %v435 = vld [vmem:[%s389 + $0x34] sm:$0x1]
      %v436 = vsel %vm398, %v364, %v435
      %437 = vst [vmem:[%s389 + $0x34] sm:$0x1] %v436
      %v438 = vld [vmem:[%s389 + $0x38] sm:$0xf]
      %v439 = vsel %vm392, %v371, %v438
      %440 = vst [vmem:[%s389 + $0x38] sm:$0xf] %v439
      %v441 = vld [vmem:[%s389 + $0x3c] sm:$0x1]
      %v442 = vsel %vm398, %v372, %v441
      %443 = vst [vmem:[%s389 + $0x3c] sm:$0x1] %v442
      %v444 = vld [vmem:[#allocation2] sm:$0xf]
      %v445 = vld [vmem:[#allocation2 + $0x8] sm:$0xf]
      %v446 = vld [vmem:[#allocation2 + $0x10] sm:$0xf]
      %v447 = vld [vmem:[#allocation2 + $0x18] sm:$0xf]
      %v448 = vld [vmem:[#allocation2 + $0x20] sm:$0xf]
      %v449 = vld [vmem:[#allocation2 + $0x28] sm:$0xf]
      %v450 = vld [vmem:[#allocation2 + $0x30] sm:$0xf]
      %v451 = vld [vmem:[#allocation2 + $0x38] sm:$0xf]
      %v452 = vld [vmem:[%s2] sm:$0xf]
      %v453 = vld [vmem:[%s2 + $0x4] sm:$0xf]
      %v454 = vld [vmem:[%s2 + $0x8] sm:$0xf]
      %v455 = vld [vmem:[%s2 + $0xc] sm:$0xf]
      %v456 = vld [vmem:[%s2 + $0x10] sm:$0xf]
      %v457 = vld [vmem:[%s2 + $0x14] sm:$0xf]
      %v458 = vld [vmem:[%s2 + $0x18] sm:$0xf]
      %v459 = vld [vmem:[%s2 + $0x1c] sm:$0xf]
      %v460 = vld [vmem:[%s2 + $0x20] sm:$0xf]
      %v461 = vld [vmem:[%s2 + $0x24] sm:$0xf]
      %v462 = vld [vmem:[%s2 + $0x28] sm:$0xf]
      %v463 = vld [vmem:[%s2 + $0x2c] sm:$0xf]
      %v464 = vld [vmem:[%s2 + $0x30] sm:$0xf]
      %v465 = vld [vmem:[%s2 + $0x34] sm:$0xf]
      %v466 = vld [vmem:[%s2 + $0x38] sm:$0xf]
      %v467 = vld [vmem:[%s2 + $0x3c] sm:$0xf]
      %v468 = vld [vmem:[#allocation2 + $0x4] sm:$0x1]
      %v469 = vld [vmem:[#allocation2 + $0xc] sm:$0x1]
      %v470 = vld [vmem:[#allocation2 + $0x14] sm:$0x1]
      %v471 = vld [vmem:[#allocation2 + $0x1c] sm:$0x1]
      %v472 = vld [vmem:[#allocation2 + $0x24] sm:$0x1]
      %v473 = vld [vmem:[#allocation2 + $0x2c] sm:$0x1]
      %v474 = vld [vmem:[#allocation2 + $0x34] sm:$0x1]
      %v475 = vld [vmem:[#allocation2 + $0x3c] sm:$0x1]
      %vm476 = vsmask.f32 3328
      %vm477 = vsmask.f32 7440
      %vm478 = vmor %vm476, %vm477
      %v480 = vshrl.u32 %v444, 16
      %v482 = vrot.slane %v480, 4
      %v483 = vshll.u32 %v444, 16
      %v485 = vrot.slane %v483, 5
      %v486 = vor.u32 %v482, %v485
      %v487 = vrot.slane %v486, 4
      %v489 = vshll.u32 %v468, 16
      %v491 = vrot.slane %v489, 5
      %v492 = vsel %vm478, %v487, %v491
      %v494 = vshrl.u32 %v445, 16
      %v496 = vrot.slane %v494, 4
      %v497 = vshll.u32 %v445, 16
      %v499 = vrot.slane %v497, 5
      %v500 = vor.u32 %v496, %v499
      %v501 = vrot.slane %v500, 4
      %v503 = vshll.u32 %v469, 16
      %v505 = vrot.slane %v503, 5
      %v506 = vsel %vm478, %v501, %v505
      %v508 = vshrl.u32 %v446, 16
      %v510 = vrot.slane %v508, 4
      %v511 = vshll.u32 %v446, 16
      %v513 = vrot.slane %v511, 5
      %v514 = vor.u32 %v510, %v513
      %v515 = vrot.slane %v514, 4
      %v517 = vshll.u32 %v470, 16
      %v519 = vrot.slane %v517, 5
      %v520 = vsel %vm478, %v515, %v519
      %v522 = vshrl.u32 %v447, 16
      %v524 = vrot.slane %v522, 4
      %v525 = vshll.u32 %v447, 16
      %v527 = vrot.slane %v525, 5
      %v528 = vor.u32 %v524, %v527
      %v529 = vrot.slane %v528, 4
      %v531 = vshll.u32 %v471, 16
      %v533 = vrot.slane %v531, 5
      %v534 = vsel %vm478, %v529, %v533
      %v536 = vshrl.u32 %v448, 16
      %v538 = vrot.slane %v536, 4
      %v539 = vshll.u32 %v448, 16
      %v541 = vrot.slane %v539, 5
      %v542 = vor.u32 %v538, %v541
      %v543 = vrot.slane %v542, 4
      %v545 = vshll.u32 %v472, 16
      %v547 = vrot.slane %v545, 5
      %v548 = vsel %vm478, %v543, %v547
      %v550 = vshrl.u32 %v449, 16
      %v552 = vrot.slane %v550, 4
      %v553 = vshll.u32 %v449, 16
      %v555 = vrot.slane %v553, 5
      %v556 = vor.u32 %v552, %v555
      %v557 = vrot.slane %v556, 4
      %v559 = vshll.u32 %v473, 16
      %v561 = vrot.slane %v559, 5
      %v562 = vsel %vm478, %v557, %v561
      %v564 = vshrl.u32 %v450, 16
      %v566 = vrot.slane %v564, 4
      %v567 = vshll.u32 %v450, 16
      %v569 = vrot.slane %v567, 5
      %v570 = vor.u32 %v566, %v569
      %v571 = vrot.slane %v570, 4
      %v573 = vshll.u32 %v474, 16
      %v575 = vrot.slane %v573, 5
      %v576 = vsel %vm478, %v571, %v575
      %v578 = vshrl.u32 %v451, 16
      %v580 = vrot.slane %v578, 4
      %v581 = vshll.u32 %v451, 16
      %v583 = vrot.slane %v581, 5
      %v584 = vor.u32 %v580, %v583
      %v585 = vrot.slane %v584, 4
      %v587 = vshll.u32 %v475, 16
      %v589 = vrot.slane %v587, 5
      %v590 = vsel %vm478, %v585, %v589
      %s591 = scalar_lea.vmem %s2, 64
      %v592 = vld [vmem:[%s591] sm:$0xf]
      %v593 = vld [vmem:[%s591 + $0x4] sm:$0xf]
      %v594 = vld [vmem:[%s591 + $0x8] sm:$0xf]
      %v595 = vld [vmem:[%s591 + $0xc] sm:$0xf]
      %v596 = vld [vmem:[%s591 + $0x10] sm:$0xf]
      %v597 = vld [vmem:[%s591 + $0x14] sm:$0xf]
      %v598 = vld [vmem:[%s591 + $0x18] sm:$0xf]
      %v599 = vld [vmem:[%s591 + $0x1c] sm:$0xf]
      %v600 = vld [vmem:[%s591 + $0x20] sm:$0xf]
      %v601 = vld [vmem:[%s591 + $0x24] sm:$0xf]
      %v602 = vld [vmem:[%s591 + $0x28] sm:$0xf]
      %v603 = vld [vmem:[%s591 + $0x2c] sm:$0xf]
      %v604 = vld [vmem:[%s591 + $0x30] sm:$0xf]
      %v605 = vld [vmem:[%s591 + $0x34] sm:$0xf]
      %v606 = vld [vmem:[%s591 + $0x38] sm:$0xf]
      %v607 = vld [vmem:[%s591 + $0x3c] sm:$0xf]
      %v608 = vunpack.c.l.b16 %v492
      %v609 = vunpack.c.l.b16 %v506
      %v610 = vunpack.c.l.b16 %v520
      %v611 = vunpack.c.l.b16 %v534
      %v612 = vunpack.c.l.b16 %v548
      %v613 = vunpack.c.l.b16 %v562
      %v614 = vunpack.c.l.b16 %v576
      %v615 = vunpack.c.l.b16 %v590
      %v616 = vpack.c.b16 %v609, %v608
      %v617 = vpack.c.b16 %v611, %v610
      %v618 = vpack.c.b16 %v613, %v612
      %v619 = vpack.c.b16 %v615, %v614
      %v640 = vunpack.c.l.b16 %v592
      %v641 = vunpack.c.l.b16 %v593
      %v642 = vunpack.c.l.b16 %v594
      %v643 = vunpack.c.l.b16 %v595
      %v644 = vunpack.c.l.b16 %v596
      %v645 = vunpack.c.l.b16 %v597
      %v646 = vunpack.c.l.b16 %v598
      %v647 = vunpack.c.l.b16 %v599
      %v648 = vunpack.c.l.b16 %v600
      %v649 = vunpack.c.l.b16 %v601
      %v650 = vunpack.c.l.b16 %v602
      %v651 = vunpack.c.l.b16 %v603
      %v652 = vunpack.c.l.b16 %v604
      %v653 = vunpack.c.l.b16 %v605
      %v654 = vunpack.c.l.b16 %v606
      %v655 = vunpack.c.l.b16 %v607
      %v656 = vpack.c.b16 %v641, %v640
      %v657 = vpack.c.b16 %v643, %v642
      %v658 = vpack.c.b16 %v645, %v644
      %v659 = vpack.c.b16 %v647, %v646
      %v660 = vpack.c.b16 %v649, %v648
      %v661 = vpack.c.b16 %v651, %v650
      %v662 = vpack.c.b16 %v653, %v652
      %v663 = vpack.c.b16 %v655, %v654
      %672 = vmatprep.subr.bf16.mxu0 0
      %673 = vmatpush1.bf16.msra.mxu0 %v656
      %674 = vmatprep.subr.bf16.mxu0 0
      %675 = vmatpush1.bf16.msra.mxu0 %v657
      %676 = vmatprep.subr.bf16.mxu0 0
      %677 = vmatpush1.bf16.msra.mxu0 %v658
      %678 = vmatprep.subr.bf16.mxu0 0
      %679 = vmatpush1.bf16.msra.mxu0 %v659
      %680 = vmatprep.subr.bf16.mxu0 0
      %681 = vmatpush1.bf16.msra.mxu0 %v660
      %682 = vmatprep.subr.bf16.mxu0 0
      %683 = vmatpush1.bf16.msra.mxu0 %v661
      %684 = vmatprep.subr.bf16.mxu0 0
      %685 = vmatpush1.bf16.msra.mxu0 %v662
      %686 = vmatprep.subr.bf16.mxu0 0
      %687 = vmatpush1.bf16.msra.mxu0 %v663
      %688 = vmatprep.subr.bf16.mxu0 0
      %689 = vmatpush1.bf16.msra.mxu0 0
      %690 = vmatprep.subr.bf16.mxu0 0
      %691 = vmatpush1.bf16.msra.mxu0 0
      %692 = vmatprep.subr.bf16.mxu0 0
      %693 = vmatpush1.bf16.msra.mxu0 0
      %694 = vmatprep.subr.bf16.mxu0 0
      %695 = vmatpush1.bf16.msra.mxu0 0
      %696 = vmatprep.subr.bf16.mxu0 0
      %697 = vmatpush1.bf16.msra.mxu0 0
      %698 = vmatprep.subr.bf16.mxu0 0
      %699 = vmatpush1.bf16.msra.mxu0 0
      %700 = vmatprep.subr.bf16.mxu0 0
      %701 = vmatpush1.bf16.msra.mxu0 0
      %702 = vmatprep.subr.bf16.mxu0 0
      %703 = vmatpush1.bf16.msra.mxu0 0
      %704 = vmatprep.mubr.bf16.mxu0 0
      %705 = vmatmul.mubr.bf16.gmra.mrb[0].mxu0 %v616
      %v706 = vpop.f32.mrb[0].mxu0
      %v707 = vadd.f32 0.0, %v706
      %v708 = vpop.f32.mrb[0].mxu0
      %v709 = vpop.f32.mrb[0].mxu0
      %v710 = vadd.f32 0.0, %v709
      %v711 = vpop.f32.mrb[0].mxu0
      %712 = vmatprep.mubr.bf16.mxu0 0
      %713 = vmatmul.mubr.bf16.gmra.mrb[0].mxu0 %v617
      %v714 = vpop.f32.mrb[0].mxu0
      %v715 = vadd.f32 0.0, %v714
      %v716 = vpop.f32.mrb[0].mxu0
      %v717 = vpop.f32.mrb[0].mxu0
      %v718 = vadd.f32 0.0, %v717
      %v719 = vpop.f32.mrb[0].mxu0
      %720 = vmatprep.mubr.bf16.mxu0 0
      %721 = vmatmul.mubr.bf16.gmra.mrb[0].mxu0 %v618
      %v722 = vpop.f32.mrb[0].mxu0
      %v723 = vadd.f32 0.0, %v722
      %v724 = vpop.f32.mrb[0].mxu0
      %v725 = vpop.f32.mrb[0].mxu0
      %v726 = vadd.f32 0.0, %v725
      %v727 = vpop.f32.mrb[0].mxu0
      %728 = vmatprep.mubr.bf16.mxu0 0
      %729 = vmatmul.mubr.bf16.gmra.mrb[0].mxu0 %v619
      %v730 = vpop.f32.mrb[0].mxu0
      %v731 = vadd.f32 0.0, %v730
      %v732 = vpop.f32.mrb[0].mxu0
      %v733 = vpop.f32.mrb[0].mxu0
      %v734 = vadd.f32 0.0, %v733
      %v735 = vpop.f32.mrb[0].mxu0
      %736 = vdwg.mxu0
      %v745 = vunpack.c.l.b16 %v444
      %v746 = vunpack.c.l.b16 %v445
      %v747 = vunpack.c.l.b16 %v446
      %v748 = vunpack.c.l.b16 %v447
      %v749 = vunpack.c.l.b16 %v448
      %v750 = vunpack.c.l.b16 %v449
      %v751 = vunpack.c.l.b16 %v450
      %v752 = vunpack.c.l.b16 %v451
      %v753 = vpack.c.b16 %v746, %v745
      %v754 = vpack.c.b16 %v748, %v747
      %v755 = vpack.c.b16 %v750, %v749
      %v756 = vpack.c.b16 %v752, %v751
      %v777 = vunpack.c.l.b16 %v452
      %v778 = vunpack.c.l.b16 %v453
      %v779 = vunpack.c.l.b16 %v454
      %v780 = vunpack.c.l.b16 %v455
      %v781 = vunpack.c.l.b16 %v456
      %v782 = vunpack.c.l.b16 %v457
      %v783 = vunpack.c.l.b16 %v458
      %v784 = vunpack.c.l.b16 %v459
      %v785 = vunpack.c.l.b16 %v460
      %v786 = vunpack.c.l.b16 %v461
      %v787 = vunpack.c.l.b16 %v462
      %v788 = vunpack.c.l.b16 %v463
      %v789 = vunpack.c.l.b16 %v464
      %v790 = vunpack.c.l.b16 %v465
      %v791 = vunpack.c.l.b16 %v466
      %v792 = vunpack.c.l.b16 %v467
      %v793 = vpack.c.b16 %v778, %v777
      %v794 = vpack.c.b16 %v780, %v779
      %v795 = vpack.c.b16 %v782, %v781
      %v796 = vpack.c.b16 %v784, %v783
      %v797 = vpack.c.b16 %v786, %v785
      %v798 = vpack.c.b16 %v788, %v787
      %v799 = vpack.c.b16 %v790, %v789
      %v800 = vpack.c.b16 %v792, %v791
      %809 = vmatprep.subr.bf16.mxu0 0
      %810 = vmatpush1.bf16.msra.mxu0 %v793
      %811 = vmatprep.subr.bf16.mxu0 0
      %812 = vmatpush1.bf16.msra.mxu0 %v794
      %813 = vmatprep.subr.bf16.mxu0 0
      %814 = vmatpush1.bf16.msra.mxu0 %v795
      %815 = vmatprep.subr.bf16.mxu0 0
      %816 = vmatpush1.bf16.msra.mxu0 %v796
      %817 = vmatprep.subr.bf16.mxu0 0
      %818 = vmatpush1.bf16.msra.mxu0 %v797
      %819 = vmatprep.subr.bf16.mxu0 0
      %820 = vmatpush1.bf16.msra.mxu0 %v798
      %821 = vmatprep.subr.bf16.mxu0 0
      %822 = vmatpush1.bf16.msra.mxu0 %v799
      %823 = vmatprep.subr.bf16.mxu0 0
      %824 = vmatpush1.bf16.msra.mxu0 %v800
      %825 = vmatprep.subr.bf16.mxu0 0
      %826 = vmatpush1.bf16.msra.mxu0 0
      %827 = vmatprep.subr.bf16.mxu0 0
      %828 = vmatpush1.bf16.msra.mxu0 0
      %829 = vmatprep.subr.bf16.mxu0 0
      %830 = vmatpush1.bf16.msra.mxu0 0
      %831 = vmatprep.subr.bf16.mxu0 0
      %832 = vmatpush1.bf16.msra.mxu0 0
      %833 = vmatprep.subr.bf16.mxu0 0
      %834 = vmatpush1.bf16.msra.mxu0 0
      %835 = vmatprep.subr.bf16.mxu0 0
      %836 = vmatpush1.bf16.msra.mxu0 0
      %837 = vmatprep.subr.bf16.mxu0 0
      %838 = vmatpush1.bf16.msra.mxu0 0
      %839 = vmatprep.subr.bf16.mxu0 0
      %840 = vmatpush1.bf16.msra.mxu0 0
      %841 = vmatprep.mubr.bf16.mxu0 0
      %842 = vmatmul.mubr.bf16.gmra.mrb[0].mxu0 %v753
      %v843 = vpop.f32.mrb[0].mxu0
      %v844 = vadd.f32 %v707, %v843
      %v845 = vpop.f32.mrb[0].mxu0
      %v846 = vpop.f32.mrb[0].mxu0
      %v847 = vadd.f32 %v710, %v846
      %v848 = vpop.f32.mrb[0].mxu0
      %849 = vmatprep.mubr.bf16.mxu0 0
      %850 = vmatmul.mubr.bf16.gmra.mrb[0].mxu0 %v754
      %v851 = vpop.f32.mrb[0].mxu0
      %v852 = vadd.f32 %v715, %v851
      %v853 = vpop.f32.mrb[0].mxu0
      %v854 = vpop.f32.mrb[0].mxu0
      %v855 = vadd.f32 %v718, %v854
      %v856 = vpop.f32.mrb[0].mxu0
      %857 = vmatprep.mubr.bf16.mxu0 0
      %858 = vmatmul.mubr.bf16.gmra.mrb[0].mxu0 %v755
      %v859 = vpop.f32.mrb[0].mxu0
      %v860 = vadd.f32 %v723, %v859
      %v861 = vpop.f32.mrb[0].mxu0
      %v862 = vpop.f32.mrb[0].mxu0
      %v863 = vadd.f32 %v726, %v862
      %v864 = vpop.f32.mrb[0].mxu0
      %865 = vmatprep.mubr.bf16.mxu0 0
      %866 = vmatmul.mubr.bf16.gmra.mrb[0].mxu0 %v756
      %v867 = vpop.f32.mrb[0].mxu0
      %v868 = vadd.f32 %v731, %v867
      %v869 = vpop.f32.mrb[0].mxu0
      %v870 = vpop.f32.mrb[0].mxu0
      %v871 = vadd.f32 %v734, %v870
      %v872 = vpop.f32.mrb[0].mxu0
      %873 = vdwg.mxu0
      %v874 = vld [vmem:[#allocation2] sm:$0xe]
      %v875 = vld [vmem:[#allocation2 + $0x8] sm:$0xe]
      %v876 = vld [vmem:[#allocation2 + $0x10] sm:$0xe]
      %v877 = vld [vmem:[#allocation2 + $0x18] sm:$0xe]
      %v878 = vld [vmem:[#allocation2 + $0x20] sm:$0xe]
      %v879 = vld [vmem:[#allocation2 + $0x28] sm:$0xe]
      %v880 = vld [vmem:[#allocation2 + $0x30] sm:$0xe]
      %v881 = vld [vmem:[#allocation2 + $0x38] sm:$0xe]
      %vm898 = vcmask 1042432
      %vm899 = vcmask 1046532
      %vm900 = vmor %vm898, %vm899
      %v901 = vrot.slane %v874, 5
      %v902 = vrot.slane %v901, 4
      %v903 = vrot.slane %v468, 5
      %v904 = vsel %vm900, %v902, %v903
      %v905 = vrot.slane %v875, 5
      %v906 = vrot.slane %v905, 4
      %v907 = vrot.slane %v469, 5
      %v908 = vsel %vm900, %v906, %v907
      %v909 = vrot.slane %v876, 5
      %v910 = vrot.slane %v909, 4
      %v911 = vrot.slane %v470, 5
      %v912 = vsel %vm900, %v910, %v911
      %v913 = vrot.slane %v877, 5
      %v914 = vrot.slane %v913, 4
      %v915 = vrot.slane %v471, 5
      %v916 = vsel %vm900, %v914, %v915
      %v917 = vrot.slane %v878, 5
      %v918 = vrot.slane %v917, 4
      %v919 = vrot.slane %v472, 5
      %v920 = vsel %vm900, %v918, %v919
      %v921 = vrot.slane %v879, 5
      %v922 = vrot.slane %v921, 4
      %v923 = vrot.slane %v473, 5
      %v924 = vsel %vm900, %v922, %v923
      %v925 = vrot.slane %v880, 5
      %v926 = vrot.slane %v925, 4
      %v927 = vrot.slane %v474, 5
      %v928 = vsel %vm900, %v926, %v927
      %v929 = vrot.slane %v881, 5
      %v930 = vrot.slane %v929, 4
      %v931 = vrot.slane %v475, 5
      %v932 = vsel %vm900, %v930, %v931
      %s933 = scalar_lea.vmem %s2, 128
      %v934 = vld [vmem:[%s933] sm:$0xf]
      %v935 = vld [vmem:[%s933 + $0x4] sm:$0xf]
      %v936 = vld [vmem:[%s933 + $0x8] sm:$0xf]
      %v937 = vld [vmem:[%s933 + $0xc] sm:$0xf]
      %v938 = vld [vmem:[%s933 + $0x10] sm:$0xf]
      %v939 = vld [vmem:[%s933 + $0x14] sm:$0xf]
      %v940 = vld [vmem:[%s933 + $0x18] sm:$0xf]
      %v941 = vld [vmem:[%s933 + $0x1c] sm:$0xf]
      %v942 = vld [vmem:[%s933 + $0x20] sm:$0xf]
      %v943 = vld [vmem:[%s933 + $0x24] sm:$0xf]
      %v944 = vld [vmem:[%s933 + $0x28] sm:$0xf]
      %v945 = vld [vmem:[%s933 + $0x2c] sm:$0xf]
      %v946 = vld [vmem:[%s933 + $0x30] sm:$0xf]
      %v947 = vld [vmem:[%s933 + $0x34] sm:$0xf]
      %v948 = vld [vmem:[%s933 + $0x38] sm:$0xf]
      %v949 = vld [vmem:[%s933 + $0x3c] sm:$0xf]
      %v950 = vunpack.c.l.b16 %v904
      %v951 = vunpack.c.l.b16 %v908
      %v952 = vunpack.c.l.b16 %v912
      %v953 = vunpack.c.l.b16 %v916
      %v954 = vunpack.c.l.b16 %v920
      %v955 = vunpack.c.l.b16 %v924
      %v956 = vunpack.c.l.b16 %v928
      %v957 = vunpack.c.l.b16 %v932
      %v958 = vpack.c.b16 %v951, %v950
      %v959 = vpack.c.b16 %v953, %v952
      %v960 = vpack.c.b16 %v955, %v954
      %v961 = vpack.c.b16 %v957, %v956
      %v982 = vunpack.c.l.b16 %v934
      %v983 = vunpack.c.l.b16 %v935
      %v984 = vunpack.c.l.b16 %v936
      %v985 = vunpack.c.l.b16 %v937
      %v986 = vunpack.c.l.b16 %v938
      %v987 = vunpack.c.l.b16 %v939
      %v988 = vunpack.c.l.b16 %v940
      %v989 = vunpack.c.l.b16 %v941
      %v990 = vunpack.c.l.b16 %v942
      %v991 = vunpack.c.l.b16 %v943
      %v992 = vunpack.c.l.b16 %v944
      %v993 = vunpack.c.l.b16 %v945
      %v994 = vunpack.c.l.b16 %v946
      %v995 = vunpack.c.l.b16 %v947
      %v996 = vunpack.c.l.b16 %v948
      %v997 = vunpack.c.l.b16 %v949
      %v998 = vpack.c.b16 %v983, %v982
      %v999 = vpack.c.b16 %v985, %v984
      %v1000 = vpack.c.b16 %v987, %v986
      %v1001 = vpack.c.b16 %v989, %v988
      %v1002 = vpack.c.b16 %v991, %v990
      %v1003 = vpack.c.b16 %v993, %v992
      %v1004 = vpack.c.b16 %v995, %v994
      %v1005 = vpack.c.b16 %v997, %v996
      %1014 = vmatprep.subr.bf16.mxu0 0
      %1015 = vmatpush1.bf16.msra.mxu0 %v998
      %1016 = vmatprep.subr.bf16.mxu0 0
      %1017 = vmatpush1.bf16.msra.mxu0 %v999
      %1018 = vmatprep.subr.bf16.mxu0 0
      %1019 = vmatpush1.bf16.msra.mxu0 %v1000
      %1020 = vmatprep.subr.bf16.mxu0 0
      %1021 = vmatpush1.bf16.msra.mxu0 %v1001
      %1022 = vmatprep.subr.bf16.mxu0 0
      %1023 = vmatpush1.bf16.msra.mxu0 %v1002
      %1024 = vmatprep.subr.bf16.mxu0 0
      %1025 = vmatpush1.bf16.msra.mxu0 %v1003
      %1026 = vmatprep.subr.bf16.mxu0 0
      %1027 = vmatpush1.bf16.msra.mxu0 %v1004
      %1028 = vmatprep.subr.bf16.mxu0 0
      %1029 = vmatpush1.bf16.msra.mxu0 %v1005
      %1030 = vmatprep.subr.bf16.mxu0 0
      %1031 = vmatpush1.bf16.msra.mxu0 0
      %1032 = vmatprep.subr.bf16.mxu0 0
      %1033 = vmatpush1.bf16.msra.mxu0 0
      %1034 = vmatprep.subr.bf16.mxu0 0
      %1035 = vmatpush1.bf16.msra.mxu0 0
      %1036 = vmatprep.subr.bf16.mxu0 0
      %1037 = vmatpush1.bf16.msra.mxu0 0
      %1038 = vmatprep.subr.bf16.mxu0 0
      %1039 = vmatpush1.bf16.msra.mxu0 0
      %1040 = vmatprep.subr.bf16.mxu0 0
      %1041 = vmatpush1.bf16.msra.mxu0 0
      %1042 = vmatprep.subr.bf16.mxu0 0
      %1043 = vmatpush1.bf16.msra.mxu0 0
      %1044 = vmatprep.subr.bf16.mxu0 0
      %1045 = vmatpush1.bf16.msra.mxu0 0
      %1046 = vmatprep.mubr.bf16.mxu0 0
      %1047 = vmatmul.mubr.bf16.gmra.mrb[0].mxu0 %v958
      %v1048 = vpop.f32.mrb[0].mxu0
      %v1049 = vadd.f32 0.0, %v1048
      %v1050 = vpop.f32.mrb[0].mxu0
      %v1051 = vpop.f32.mrb[0].mxu0
      %v1052 = vadd.f32 0.0, %v1051
      %v1053 = vpop.f32.mrb[0].mxu0
      %1054 = vmatprep.mubr.bf16.mxu0 0
      %1055 = vmatmul.mubr.bf16.gmra.mrb[0].mxu0 %v959
      %v1056 = vpop.f32.mrb[0].mxu0
      %v1057 = vadd.f32 0.0, %v1056
      %v1058 = vpop.f32.mrb[0].mxu0
      %v1059 = vpop.f32.mrb[0].mxu0
      %v1060 = vadd.f32 0.0, %v1059
      %v1061 = vpop.f32.mrb[0].mxu0
      %1062 = vmatprep.mubr.bf16.mxu0 0
      %1063 = vmatmul.mubr.bf16.gmra.mrb[0].mxu0 %v960
      %v1064 = vpop.f32.mrb[0].mxu0
      %v1065 = vadd.f32 0.0, %v1064
      %v1066 = vpop.f32.mrb[0].mxu0
      %v1067 = vpop.f32.mrb[0].mxu0
      %v1068 = vadd.f32 0.0, %v1067
      %v1069 = vpop.f32.mrb[0].mxu0
      %1070 = vmatprep.mubr.bf16.mxu0 0
      %1071 = vmatmul.mubr.bf16.gmra.mrb[0].mxu0 %v961
      %v1072 = vpop.f32.mrb[0].mxu0
      %v1073 = vadd.f32 0.0, %v1072
      %v1074 = vpop.f32.mrb[0].mxu0
      %v1075 = vpop.f32.mrb[0].mxu0
      %v1076 = vadd.f32 0.0, %v1075
      %v1077 = vpop.f32.mrb[0].mxu0
      %1078 = vdwg.mxu0
      %v1079 = vadd.f32 %v844, %v1049
      %v1080 = vadd.f32 %v847, %v1052
      %v1081 = vadd.f32 %v852, %v1057
      %v1082 = vadd.f32 %v855, %v1060
      %v1083 = vadd.f32 %v860, %v1065
      %v1084 = vadd.f32 %v863, %v1068
      %v1085 = vadd.f32 %v868, %v1073
      %v1086 = vadd.f32 %v871, %v1076
      %v1087 = vld [vmem:[%s389] sm:$0xf]
      %v1088 = vld [vmem:[%s389 + $0x8] sm:$0xf]
      %v1089 = vld [vmem:[%s389 + $0x10] sm:$0xf]
      %v1090 = vld [vmem:[%s389 + $0x18] sm:$0xf]
      %v1091 = vld [vmem:[%s389 + $0x20] sm:$0xf]
      %v1092 = vld [vmem:[%s389 + $0x28] sm:$0xf]
      %v1093 = vld [vmem:[%s389 + $0x30] sm:$0xf]
      %v1094 = vld [vmem:[%s389 + $0x38] sm:$0xf]
      %s1095 = scalar_lea.vmem %s2, 192
      %v1096 = vld [vmem:[%s1095] sm:$0xf]
      %v1097 = vld [vmem:[%s1095 + $0x4] sm:$0xf]
      %v1098 = vld [vmem:[%s1095 + $0x8] sm:$0xf]
      %v1099 = vld [vmem:[%s1095 + $0xc] sm:$0xf]
      %v1100 = vld [vmem:[%s1095 + $0x10] sm:$0xf]
      %v1101 = vld [vmem:[%s1095 + $0x14] sm:$0xf]
      %v1102 = vld [vmem:[%s1095 + $0x18] sm:$0xf]
      %v1103 = vld [vmem:[%s1095 + $0x1c] sm:$0xf]
      %v1104 = vld [vmem:[%s1095 + $0x20] sm:$0xf]
      %v1105 = vld [vmem:[%s1095 + $0x24] sm:$0xf]
      %v1106 = vld [vmem:[%s1095 + $0x28] sm:$0xf]
      %v1107 = vld [vmem:[%s1095 + $0x2c] sm:$0xf]
      %v1108 = vld [vmem:[%s1095 + $0x30] sm:$0xf]
      %v1109 = vld [vmem:[%s1095 + $0x34] sm:$0xf]
      %v1110 = vld [vmem:[%s1095 + $0x38] sm:$0xf]
      %v1111 = vld [vmem:[%s1095 + $0x3c] sm:$0xf]
      %v1120 = vunpack.c.l.b16 %v1087
      %v1121 = vunpack.c.l.b16 %v1088
      %v1122 = vunpack.c.l.b16 %v1089
      %v1123 = vunpack.c.l.b16 %v1090
      %v1124 = vunpack.c.l.b16 %v1091
      %v1125 = vunpack.c.l.b16 %v1092
      %v1126 = vunpack.c.l.b16 %v1093
      %v1127 = vunpack.c.l.b16 %v1094
      %v1128 = vpack.c.b16 %v1121, %v1120
      %v1129 = vpack.c.b16 %v1123, %v1122
      %v1130 = vpack.c.b16 %v1125, %v1124
      %v1131 = vpack.c.b16 %v1127, %v1126
      %v1152 = vunpack.c.l.b16 %v1096
      %v1153 = vunpack.c.l.b16 %v1097
      %v1154 = vunpack.c.l.b16 %v1098
      %v1155 = vunpack.c.l.b16 %v1099
      %v1156 = vunpack.c.l.b16 %v1100
      %v1157 = vunpack.c.l.b16 %v1101
      %v1158 = vunpack.c.l.b16 %v1102
      %v1159 = vunpack.c.l.b16 %v1103
      %v1160 = vunpack.c.l.b16 %v1104
      %v1161 = vunpack.c.l.b16 %v1105
      %v1162 = vunpack.c.l.b16 %v1106
      %v1163 = vunpack.c.l.b16 %v1107
      %v1164 = vunpack.c.l.b16 %v1108
      %v1165 = vunpack.c.l.b16 %v1109
      %v1166 = vunpack.c.l.b16 %v1110
      %v1167 = vunpack.c.l.b16 %v1111
      %v1168 = vpack.c.b16 %v1153, %v1152
      %v1169 = vpack.c.b16 %v1155, %v1154
      %v1170 = vpack.c.b16 %v1157, %v1156
      %v1171 = vpack.c.b16 %v1159, %v1158
      %v1172 = vpack.c.b16 %v1161, %v1160
      %v1173 = vpack.c.b16 %v1163, %v1162
      %v1174 = vpack.c.b16 %v1165, %v1164
      %v1175 = vpack.c.b16 %v1167, %v1166
      %1184 = vmatprep.subr.bf16.mxu0 0
      %1185 = vmatpush1.bf16.msra.mxu0 %v1168
      %1186 = vmatprep.subr.bf16.mxu0 0
      %1187 = vmatpush1.bf16.msra.mxu0 %v1169
      %1188 = vmatprep.subr.bf16.mxu0 0
      %1189 = vmatpush1.bf16.msra.mxu0 %v1170
      %1190 = vmatprep.subr.bf16.mxu0 0
      %1191 = vmatpush1.bf16.msra.mxu0 %v1171
      %1192 = vmatprep.subr.bf16.mxu0 0
      %1193 = vmatpush1.bf16.msra.mxu0 %v1172
      %1194 = vmatprep.subr.bf16.mxu0 0
      %1195 = vmatpush1.bf16.msra.mxu0 %v1173
      %1196 = vmatprep.subr.bf16.mxu0 0
      %1197 = vmatpush1.bf16.msra.mxu0 %v1174
      %1198 = vmatprep.subr.bf16.mxu0 0
      %1199 = vmatpush1.bf16.msra.mxu0 %v1175
      %1200 = vmatprep.subr.bf16.mxu0 0
      %1201 = vmatpush1.bf16.msra.mxu0 0
      %1202 = vmatprep.subr.bf16.mxu0 0
      %1203 = vmatpush1.bf16.msra.mxu0 0
      %1204 = vmatprep.subr.bf16.mxu0 0
      %1205 = vmatpush1.bf16.msra.mxu0 0
      %1206 = vmatprep.subr.bf16.mxu0 0
      %1207 = vmatpush1.bf16.msra.mxu0 0
      %1208 = vmatprep.subr.bf16.mxu0 0
      %1209 = vmatpush1.bf16.msra.mxu0 0
      %1210 = vmatprep.subr.bf16.mxu0 0
      %1211 = vmatpush1.bf16.msra.mxu0 0
      %1212 = vmatprep.subr.bf16.mxu0 0
      %1213 = vmatpush1.bf16.msra.mxu0 0
      %1214 = vmatprep.subr.bf16.mxu0 0
      %1215 = vmatpush1.bf16.msra.mxu0 0
      %1216 = vmatprep.mubr.bf16.mxu0 0
      %1217 = vmatmul.mubr.bf16.gmra.mrb[0].mxu0 %v1128
      %v1218 = vpop.f32.mrb[0].mxu0
      %v1219 = vadd.f32 0.0, %v1218
      %v1220 = vpop.f32.mrb[0].mxu0
      %v1221 = vpop.f32.mrb[0].mxu0
      %v1222 = vadd.f32 0.0, %v1221
      %v1223 = vpop.f32.mrb[0].mxu0
      %1224 = vmatprep.mubr.bf16.mxu0 0
      %1225 = vmatmul.mubr.bf16.gmra.mrb[0].mxu0 %v1129
      %v1226 = vpop.f32.mrb[0].mxu0
      %v1227 = vadd.f32 0.0, %v1226
      %v1228 = vpop.f32.mrb[0].mxu0
      %v1229 = vpop.f32.mrb[0].mxu0
      %v1230 = vadd.f32 0.0, %v1229
      %v1231 = vpop.f32.mrb[0].mxu0
      %1232 = vmatprep.mubr.bf16.mxu0 0
      %1233 = vmatmul.mubr.bf16.gmra.mrb[0].mxu0 %v1130
      %v1234 = vpop.f32.mrb[0].mxu0
      %v1235 = vadd.f32 0.0, %v1234
      %v1236 = vpop.f32.mrb[0].mxu0
      %v1237 = vpop.f32.mrb[0].mxu0
      %v1238 = vadd.f32 0.0, %v1237
      %v1239 = vpop.f32.mrb[0].mxu0
      %1240 = vmatprep.mubr.bf16.mxu0 0
      %1241 = vmatmul.mubr.bf16.gmra.mrb[0].mxu0 %v1131
      %v1242 = vpop.f32.mrb[0].mxu0
      %v1243 = vadd.f32 0.0, %v1242
      %v1244 = vpop.f32.mrb[0].mxu0
      %v1245 = vpop.f32.mrb[0].mxu0
      %v1246 = vadd.f32 0.0, %v1245
      %v1247 = vpop.f32.mrb[0].mxu0
      %1248 = vdwg.mxu0
      %v1249 = vadd.f32 %v1079, %v1219
      %v1250 = vadd.f32 %v1080, %v1222
      %v1251 = vadd.f32 %v1081, %v1227
      %v1252 = vadd.f32 %v1082, %v1230
      %v1253 = vadd.f32 %v1083, %v1235
      %v1254 = vadd.f32 %v1084, %v1238
      %v1255 = vadd.f32 %v1085, %v1243
      %v1256 = vadd.f32 %v1086, %v1246
      %v1257 = vld [vmem:[%s389] sm:$0xf]
      %v1258 = vld [vmem:[%s389 + $0x4] sm:$0x1]
      %v1259 = vld [vmem:[%s389 + $0x8] sm:$0xf]
      %v1260 = vld [vmem:[%s389 + $0xc] sm:$0x1]
      %v1261 = vld [vmem:[%s389 + $0x10] sm:$0xf]
      %v1262 = vld [vmem:[%s389 + $0x14] sm:$0x1]
      %v1263 = vld [vmem:[%s389 + $0x18] sm:$0xf]
      %v1264 = vld [vmem:[%s389 + $0x1c] sm:$0x1]
      %v1265 = vld [vmem:[%s389 + $0x20] sm:$0xf]
      %v1266 = vld [vmem:[%s389 + $0x24] sm:$0x1]
      %v1267 = vld [vmem:[%s389 + $0x28] sm:$0xf]
      %v1268 = vld [vmem:[%s389 + $0x2c] sm:$0x1]
      %v1269 = vld [vmem:[%s389 + $0x30] sm:$0xf]
      %v1270 = vld [vmem:[%s389 + $0x34] sm:$0x1]
      %v1271 = vld [vmem:[%s389 + $0x38] sm:$0xf]
      %v1272 = vld [vmem:[%s389 + $0x3c] sm:$0x1]
      %v1274 = vshrl.u32 %v1257, 16
      %v1276 = vrot.slane %v1274, 4
      %v1277 = vshll.u32 %v1257, 16
      %v1279 = vrot.slane %v1277, 5
      %v1280 = vor.u32 %v1276, %v1279
      %v1281 = vrot.slane %v1280, 4
      %v1283 = vshll.u32 %v1258, 16
      %v1285 = vrot.slane %v1283, 5
      %v1286 = vsel %vm478, %v1281, %v1285
      %v1288 = vshrl.u32 %v1259, 16
      %v1290 = vrot.slane %v1288, 4
      %v1291 = vshll.u32 %v1259, 16
      %v1293 = vrot.slane %v1291, 5
      %v1294 = vor.u32 %v1290, %v1293
      %v1295 = vrot.slane %v1294, 4
      %v1297 = vshll.u32 %v1260, 16
      %v1299 = vrot.slane %v1297, 5
      %v1300 = vsel %vm478, %v1295, %v1299
      %v1302 = vshrl.u32 %v1261, 16
      %v1304 = vrot.slane %v1302, 4
      %v1305 = vshll.u32 %v1261, 16
      %v1307 = vrot.slane %v1305, 5
      %v1308 = vor.u32 %v1304, %v1307
      %v1309 = vrot.slane %v1308, 4
      %v1311 = vshll.u32 %v1262, 16
      %v1313 = vrot.slane %v1311, 5
      %v1314 = vsel %vm478, %v1309, %v1313
      %v1316 = vshrl.u32 %v1263, 16
      %v1318 = vrot.slane %v1316, 4
      %v1319 = vshll.u32 %v1263, 16
      %v1321 = vrot.slane %v1319, 5
      %v1322 = vor.u32 %v1318, %v1321
      %v1323 = vrot.slane %v1322, 4
      %v1325 = vshll.u32 %v1264, 16
      %v1327 = vrot.slane %v1325, 5
      %v1328 = vsel %vm478, %v1323, %v1327
      %v1330 = vshrl.u32 %v1265, 16
      %v1332 = vrot.slane %v1330, 4
      %v1333 = vshll.u32 %v1265, 16
      %v1335 = vrot.slane %v1333, 5
      %v1336 = vor.u32 %v1332, %v1335
      %v1337 = vrot.slane %v1336, 4
      %v1339 = vshll.u32 %v1266, 16
      %v1341 = vrot.slane %v1339, 5
      %v1342 = vsel %vm478, %v1337, %v1341
      %v1344 = vshrl.u32 %v1267, 16
      %v1346 = vrot.slane %v1344, 4
      %v1347 = vshll.u32 %v1267, 16
      %v1349 = vrot.slane %v1347, 5
      %v1350 = vor.u32 %v1346, %v1349
      %v1351 = vrot.slane %v1350, 4
      %v1353 = vshll.u32 %v1268, 16
      %v1355 = vrot.slane %v1353, 5
      %v1356 = vsel %vm478, %v1351, %v1355
      %v1358 = vshrl.u32 %v1269, 16
      %v1360 = vrot.slane %v1358, 4
      %v1361 = vshll.u32 %v1269, 16
      %v1363 = vrot.slane %v1361, 5
      %v1364 = vor.u32 %v1360, %v1363
      %v1365 = vrot.slane %v1364, 4
      %v1367 = vshll.u32 %v1270, 16
      %v1369 = vrot.slane %v1367, 5
      %v1370 = vsel %vm478, %v1365, %v1369
      %v1372 = vshrl.u32 %v1271, 16
      %v1374 = vrot.slane %v1372, 4
      %v1375 = vshll.u32 %v1271, 16
      %v1377 = vrot.slane %v1375, 5
      %v1378 = vor.u32 %v1374, %v1377
      %v1379 = vrot.slane %v1378, 4
      %v1381 = vshll.u32 %v1272, 16
      %v1383 = vrot.slane %v1381, 5
      %v1384 = vsel %vm478, %v1379, %v1383
      %s1385 = scalar_lea.vmem %s2, 256
      %v1386 = vld [vmem:[%s1385] sm:$0xf]
      %v1387 = vld [vmem:[%s1385 + $0x4] sm:$0xf]
      %v1388 = vld [vmem:[%s1385 + $0x8] sm:$0xf]
      %v1389 = vld [vmem:[%s1385 + $0xc] sm:$0xf]
      %v1390 = vld [vmem:[%s1385 + $0x10] sm:$0xf]
      %v1391 = vld [vmem:[%s1385 + $0x14] sm:$0xf]
      %v1392 = vld [vmem:[%s1385 + $0x18] sm:$0xf]
      %v1393 = vld [vmem:[%s1385 + $0x1c] sm:$0xf]
      %v1394 = vld [vmem:[%s1385 + $0x20] sm:$0xf]
      %v1395 = vld [vmem:[%s1385 + $0x24] sm:$0xf]
      %v1396 = vld [vmem:[%s1385 + $0x28] sm:$0xf]
      %v1397 = vld [vmem:[%s1385 + $0x2c] sm:$0xf]
      %v1398 = vld [vmem:[%s1385 + $0x30] sm:$0xf]
      %v1399 = vld [vmem:[%s1385 + $0x34] sm:$0xf]
      %v1400 = vld [vmem:[%s1385 + $0x38] sm:$0xf]
      %v1401 = vld [vmem:[%s1385 + $0x3c] sm:$0xf]
      %v1402 = vunpack.c.l.b16 %v1286
      %v1403 = vunpack.c.l.b16 %v1300
      %v1404 = vunpack.c.l.b16 %v1314
      %v1405 = vunpack.c.l.b16 %v1328
      %v1406 = vunpack.c.l.b16 %v1342
      %v1407 = vunpack.c.l.b16 %v1356
      %v1408 = vunpack.c.l.b16 %v1370
      %v1409 = vunpack.c.l.b16 %v1384
      %v1410 = vpack.c.b16 %v1403, %v1402
      %v1411 = vpack.c.b16 %v1405, %v1404
      %v1412 = vpack.c.b16 %v1407, %v1406
      %v1413 = vpack.c.b16 %v1409, %v1408
      %v1434 = vunpack.c.l.b16 %v1386
      %v1435 = vunpack.c.l.b16 %v1387
      %v1436 = vunpack.c.l.b16 %v1388
      %v1437 = vunpack.c.l.b16 %v1389
      %v1438 = vunpack.c.l.b16 %v1390
      %v1439 = vunpack.c.l.b16 %v1391
      %v1440 = vunpack.c.l.b16 %v1392
      %v1441 = vunpack.c.l.b16 %v1393
      %v1442 = vunpack.c.l.b16 %v1394
      %v1443 = vunpack.c.l.b16 %v1395
      %v1444 = vunpack.c.l.b16 %v1396
      %v1445 = vunpack.c.l.b16 %v1397
      %v1446 = vunpack.c.l.b16 %v1398
      %v1447 = vunpack.c.l.b16 %v1399
      %v1448 = vunpack.c.l.b16 %v1400
      %v1449 = vunpack.c.l.b16 %v1401
      %v1450 = vpack.c.b16 %v1435, %v1434
      %v1451 = vpack.c.b16 %v1437, %v1436
      %v1452 = vpack.c.b16 %v1439, %v1438
      %v1453 = vpack.c.b16 %v1441, %v1440
      %v1454 = vpack.c.b16 %v1443, %v1442
      %v1455 = vpack.c.b16 %v1445, %v1444
      %v1456 = vpack.c.b16 %v1447, %v1446
      %v1457 = vpack.c.b16 %v1449, %v1448
      %1466 = vmatprep.subr.bf16.mxu0 0
      %1467 = vmatpush1.bf16.msra.mxu0 %v1450
      %1468 = vmatprep.subr.bf16.mxu0 0
      %1469 = vmatpush1.bf16.msra.mxu0 %v1451
      %1470 = vmatprep.subr.bf16.mxu0 0
      %1471 = vmatpush1.bf16.msra.mxu0 %v1452
      %1472 = vmatprep.subr.bf16.mxu0 0
      %1473 = vmatpush1.bf16.msra.mxu0 %v1453
      %1474 = vmatprep.subr.bf16.mxu0 0
      %1475 = vmatpush1.bf16.msra.mxu0 %v1454
      %1476 = vmatprep.subr.bf16.mxu0 0
      %1477 = vmatpush1.bf16.msra.mxu0 %v1455
      %1478 = vmatprep.subr.bf16.mxu0 0
      %1479 = vmatpush1.bf16.msra.mxu0 %v1456
      %1480 = vmatprep.subr.bf16.mxu0 0
      %1481 = vmatpush1.bf16.msra.mxu0 %v1457
      %1482 = vmatprep.subr.bf16.mxu0 0
      %1483 = vmatpush1.bf16.msra.mxu0 0
      %1484 = vmatprep.subr.bf16.mxu0 0
      %1485 = vmatpush1.bf16.msra.mxu0 0
      %1486 = vmatprep.subr.bf16.mxu0 0
      %1487 = vmatpush1.bf16.msra.mxu0 0
      %1488 = vmatprep.subr.bf16.mxu0 0
      %1489 = vmatpush1.bf16.msra.mxu0 0
      %1490 = vmatprep.subr.bf16.mxu0 0
      %1491 = vmatpush1.bf16.msra.mxu0 0
      %1492 = vmatprep.subr.bf16.mxu0 0
      %1493 = vmatpush1.bf16.msra.mxu0 0
      %1494 = vmatprep.subr.bf16.mxu0 0
      %1495 = vmatpush1.bf16.msra.mxu0 0
      %1496 = vmatprep.subr.bf16.mxu0 0
      %1497 = vmatpush1.bf16.msra.mxu0 0
      %1498 = vmatprep.mubr.bf16.mxu0 0
      %1499 = vmatmul.mubr.bf16.gmra.mrb[0].mxu0 %v1410
      %v1500 = vpop.f32.mrb[0].mxu0
      %v1501 = vadd.f32 0.0, %v1500
      %v1502 = vpop.f32.mrb[0].mxu0
      %v1503 = vpop.f32.mrb[0].mxu0
      %v1504 = vadd.f32 0.0, %v1503
      %v1505 = vpop.f32.mrb[0].mxu0
      %1506 = vmatprep.mubr.bf16.mxu0 0
      %1507 = vmatmul.mubr.bf16.gmra.mrb[0].mxu0 %v1411
      %v1508 = vpop.f32.mrb[0].mxu0
      %v1509 = vadd.f32 0.0, %v1508
      %v1510 = vpop.f32.mrb[0].mxu0
      %v1511 = vpop.f32.mrb[0].mxu0
      %v1512 = vadd.f32 0.0, %v1511
      %v1513 = vpop.f32.mrb[0].mxu0
      %1514 = vmatprep.mubr.bf16.mxu0 0
      %1515 = vmatmul.mubr.bf16.gmra.mrb[0].mxu0 %v1412
      %v1516 = vpop.f32.mrb[0].mxu0
      %v1517 = vadd.f32 0.0, %v1516
      %v1518 = vpop.f32.mrb[0].mxu0
      %v1519 = vpop.f32.mrb[0].mxu0
      %v1520 = vadd.f32 0.0, %v1519
      %v1521 = vpop.f32.mrb[0].mxu0
      %1522 = vmatprep.mubr.bf16.mxu0 0
      %1523 = vmatmul.mubr.bf16.gmra.mrb[0].mxu0 %v1413
      %v1524 = vpop.f32.mrb[0].mxu0
      %v1525 = vadd.f32 0.0, %v1524
      %v1526 = vpop.f32.mrb[0].mxu0
      %v1527 = vpop.f32.mrb[0].mxu0
      %v1528 = vadd.f32 0.0, %v1527
      %v1529 = vpop.f32.mrb[0].mxu0
      %1530 = vdwg.mxu0
      %v1531 = vadd.f32 %v1249, %v1501
      %v1532 = vadd.f32 %v1250, %v1504
      %v1533 = vadd.f32 %v1251, %v1509
      %v1534 = vadd.f32 %v1252, %v1512
      %v1535 = vadd.f32 %v1253, %v1517
      %v1536 = vadd.f32 %v1254, %v1520
      %v1537 = vadd.f32 %v1255, %v1525
      %v1538 = vadd.f32 %v1256, %v1528
      %v1539 = vld [vmem:[%s389] sm:$0xe]
      %v1540 = vld [vmem:[%s389 + $0x8] sm:$0xe]
      %v1541 = vld [vmem:[%s389 + $0x10] sm:$0xe]
      %v1542 = vld [vmem:[%s389 + $0x18] sm:$0xe]
      %v1543 = vld [vmem:[%s389 + $0x20] sm:$0xe]
      %v1544 = vld [vmem:[%s389 + $0x28] sm:$0xe]
      %v1545 = vld [vmem:[%s389 + $0x30] sm:$0xe]
      %v1546 = vld [vmem:[%s389 + $0x38] sm:$0xe]
      %v1563 = vrot.slane %v1539, 5
      %v1564 = vrot.slane %v1563, 4
      %v1565 = vrot.slane %v1258, 5
      %v1566 = vsel %vm900, %v1564, %v1565
      %v1567 = vrot.slane %v1540, 5
      %v1568 = vrot.slane %v1567, 4
      %v1569 = vrot.slane %v1260, 5
      %v1570 = vsel %vm900, %v1568, %v1569
      %v1571 = vrot.slane %v1541, 5
      %v1572 = vrot.slane %v1571, 4
      %v1573 = vrot.slane %v1262, 5
      %v1574 = vsel %vm900, %v1572, %v1573
      %v1575 = vrot.slane %v1542, 5
      %v1576 = vrot.slane %v1575, 4
      %v1577 = vrot.slane %v1264, 5
      %v1578 = vsel %vm900, %v1576, %v1577
      %v1579 = vrot.slane %v1543, 5
      %v1580 = vrot.slane %v1579, 4
      %v1581 = vrot.slane %v1266, 5
      %v1582 = vsel %vm900, %v1580, %v1581
      %v1583 = vrot.slane %v1544, 5
      %v1584 = vrot.slane %v1583, 4
      %v1585 = vrot.slane %v1268, 5
      %v1586 = vsel %vm900, %v1584, %v1585
      %v1587 = vrot.slane %v1545, 5
      %v1588 = vrot.slane %v1587, 4
      %v1589 = vrot.slane %v1270, 5
      %v1590 = vsel %vm900, %v1588, %v1589
      %v1591 = vrot.slane %v1546, 5
      %v1592 = vrot.slane %v1591, 4
      %v1593 = vrot.slane %v1272, 5
      %v1594 = vsel %vm900, %v1592, %v1593
      %s1595 = scalar_lea.vmem %s2, 320
      %v1596 = vld [vmem:[%s1595] sm:$0xf]
      %v1597 = vld [vmem:[%s1595 + $0x4] sm:$0xf]
      %v1598 = vld [vmem:[%s1595 + $0x8] sm:$0xf]
      %v1599 = vld [vmem:[%s1595 + $0xc] sm:$0xf]
      %v1600 = vld [vmem:[%s1595 + $0x10] sm:$0xf]
      %v1601 = vld [vmem:[%s1595 + $0x14] sm:$0xf]
      %v1602 = vld [vmem:[%s1595 + $0x18] sm:$0xf]
      %v1603 = vld [vmem:[%s1595 + $0x1c] sm:$0xf]
      %v1604 = vld [vmem:[%s1595 + $0x20] sm:$0xf]
      %v1605 = vld [vmem:[%s1595 + $0x24] sm:$0xf]
      %v1606 = vld [vmem:[%s1595 + $0x28] sm:$0xf]
      %v1607 = vld [vmem:[%s1595 + $0x2c] sm:$0xf]
      %v1608 = vld [vmem:[%s1595 + $0x30] sm:$0xf]
      %v1609 = vld [vmem:[%s1595 + $0x34] sm:$0xf]
      %v1610 = vld [vmem:[%s1595 + $0x38] sm:$0xf]
      %v1611 = vld [vmem:[%s1595 + $0x3c] sm:$0xf]
      %v1612 = vunpack.c.l.b16 %v1566
      %v1613 = vunpack.c.l.b16 %v1570
      %v1614 = vunpack.c.l.b16 %v1574
      %v1615 = vunpack.c.l.b16 %v1578
      %v1616 = vunpack.c.l.b16 %v1582
      %v1617 = vunpack.c.l.b16 %v1586
      %v1618 = vunpack.c.l.b16 %v1590
      %v1619 = vunpack.c.l.b16 %v1594
      %v1620 = vpack.c.b16 %v1613, %v1612
      %v1621 = vpack.c.b16 %v1615, %v1614
      %v1622 = vpack.c.b16 %v1617, %v1616
      %v1623 = vpack.c.b16 %v1619, %v1618
      %v1644 = vunpack.c.l.b16 %v1596
      %v1645 = vunpack.c.l.b16 %v1597
      %v1646 = vunpack.c.l.b16 %v1598
      %v1647 = vunpack.c.l.b16 %v1599
      %v1648 = vunpack.c.l.b16 %v1600
      %v1649 = vunpack.c.l.b16 %v1601
      %v1650 = vunpack.c.l.b16 %v1602
      %v1651 = vunpack.c.l.b16 %v1603
      %v1652 = vunpack.c.l.b16 %v1604
      %v1653 = vunpack.c.l.b16 %v1605
      %v1654 = vunpack.c.l.b16 %v1606
      %v1655 = vunpack.c.l.b16 %v1607
      %v1656 = vunpack.c.l.b16 %v1608
      %v1657 = vunpack.c.l.b16 %v1609
      %v1658 = vunpack.c.l.b16 %v1610
      %v1659 = vunpack.c.l.b16 %v1611
      %v1660 = vpack.c.b16 %v1645, %v1644
      %v1661 = vpack.c.b16 %v1647, %v1646
      %v1662 = vpack.c.b16 %v1649, %v1648
      %v1663 = vpack.c.b16 %v1651, %v1650
      %v1664 = vpack.c.b16 %v1653, %v1652
      %v1665 = vpack.c.b16 %v1655, %v1654
      %v1666 = vpack.c.b16 %v1657, %v1656
      %v1667 = vpack.c.b16 %v1659, %v1658
      %1676 = vmatprep.subr.bf16.mxu0 0
      %1677 = vmatpush1.bf16.msra.mxu0 %v1660
      %1678 = vmatprep.subr.bf16.mxu0 0
      %1679 = vmatpush1.bf16.msra.mxu0 %v1661
      %1680 = vmatprep.subr.bf16.mxu0 0
      %1681 = vmatpush1.bf16.msra.mxu0 %v1662
      %1682 = vmatprep.subr.bf16.mxu0 0
      %1683 = vmatpush1.bf16.msra.mxu0 %v1663
      %1684 = vmatprep.subr.bf16.mxu0 0
      %1685 = vmatpush1.bf16.msra.mxu0 %v1664
      %1686 = vmatprep.subr.bf16.mxu0 0
      %1687 = vmatpush1.bf16.msra.mxu0 %v1665
      %1688 = vmatprep.subr.bf16.mxu0 0
      %1689 = vmatpush1.bf16.msra.mxu0 %v1666
      %1690 = vmatprep.subr.bf16.mxu0 0
      %1691 = vmatpush1.bf16.msra.mxu0 %v1667
      %1692 = vmatprep.subr.bf16.mxu0 0
      %1693 = vmatpush1.bf16.msra.mxu0 0
      %1694 = vmatprep.subr.bf16.mxu0 0
      %1695 = vmatpush1.bf16.msra.mxu0 0
      %1696 = vmatprep.subr.bf16.mxu0 0
      %1697 = vmatpush1.bf16.msra.mxu0 0
      %1698 = vmatprep.subr.bf16.mxu0 0
      %1699 = vmatpush1.bf16.msra.mxu0 0
      %1700 = vmatprep.subr.bf16.mxu0 0
      %1701 = vmatpush1.bf16.msra.mxu0 0
      %1702 = vmatprep.subr.bf16.mxu0 0
      %1703 = vmatpush1.bf16.msra.mxu0 0
      %1704 = vmatprep.subr.bf16.mxu0 0
      %1705 = vmatpush1.bf16.msra.mxu0 0
      %1706 = vmatprep.subr.bf16.mxu0 0
      %1707 = vmatpush1.bf16.msra.mxu0 0
      %1708 = vmatprep.mubr.bf16.mxu0 0
      %1709 = vmatmul.mubr.bf16.gmra.mrb[0].mxu0 %v1620
      %v1710 = vpop.f32.mrb[0].mxu0
      %v1711 = vadd.f32 0.0, %v1710
      %v1712 = vpop.f32.mrb[0].mxu0
      %v1713 = vpop.f32.mrb[0].mxu0
      %v1714 = vadd.f32 0.0, %v1713
      %v1715 = vpop.f32.mrb[0].mxu0
      %1716 = vmatprep.mubr.bf16.mxu0 0
      %1717 = vmatmul.mubr.bf16.gmra.mrb[0].mxu0 %v1621
      %v1718 = vpop.f32.mrb[0].mxu0
      %v1719 = vadd.f32 0.0, %v1718
      %v1720 = vpop.f32.mrb[0].mxu0
      %v1721 = vpop.f32.mrb[0].mxu0
      %v1722 = vadd.f32 0.0, %v1721
      %v1723 = vpop.f32.mrb[0].mxu0
      %1724 = vmatprep.mubr.bf16.mxu0 0
      %1725 = vmatmul.mubr.bf16.gmra.mrb[0].mxu0 %v1622
      %v1726 = vpop.f32.mrb[0].mxu0
      %v1727 = vadd.f32 0.0, %v1726
      %v1728 = vpop.f32.mrb[0].mxu0
      %v1729 = vpop.f32.mrb[0].mxu0
      %v1730 = vadd.f32 0.0, %v1729
      %v1731 = vpop.f32.mrb[0].mxu0
      %1732 = vmatprep.mubr.bf16.mxu0 0
      %1733 = vmatmul.mubr.bf16.gmra.mrb[0].mxu0 %v1623
      %v1734 = vpop.f32.mrb[0].mxu0
      %v1735 = vadd.f32 0.0, %v1734
      %v1736 = vpop.f32.mrb[0].mxu0
      %v1737 = vpop.f32.mrb[0].mxu0
      %v1738 = vadd.f32 0.0, %v1737
      %v1739 = vpop.f32.mrb[0].mxu0
      %1740 = vdwg.mxu0
      %v1741 = vadd.f32 %v1531, %v1711
      %v1742 = vadd.f32 %v1532, %v1714
      %v1743 = vadd.f32 %v1533, %v1719
      %v1744 = vadd.f32 %v1534, %v1722
      %v1745 = vadd.f32 %v1535, %v1727
      %v1746 = vadd.f32 %v1536, %v1730
      %v1747 = vadd.f32 %v1537, %v1735
      %v1748 = vadd.f32 %v1538, %v1738
      %s1749 = scalar_lea.vmem [#allocation2], 16
      %v1750 = vld [vmem:[%s1749] sm:$0xf]
      %v1751 = vld [vmem:[%s1749 + $0x8] sm:$0xf]
      %v1752 = vld [vmem:[%s1749 + $0x10] sm:$0xf]
      %v1753 = vld [vmem:[%s1749 + $0x18] sm:$0xf]
      %v1754 = vld [vmem:[%s1749 + $0x20] sm:$0xf]
      %v1755 = vld [vmem:[%s1749 + $0x28] sm:$0xf]
      %v1756 = vld [vmem:[%s1749 + $0x30] sm:$0xf]
      %v1757 = vld [vmem:[%s1749 + $0x38] sm:$0xf]
      %s1758 = scalar_lea.vmem %s2, 384
      %v1759 = vld [vmem:[%s1758] sm:$0xf]
      %v1760 = vld [vmem:[%s1758 + $0x4] sm:$0xf]
      %v1761 = vld [vmem:[%s1758 + $0x8] sm:$0xf]
      %v1762 = vld [vmem:[%s1758 + $0xc] sm:$0xf]
      %v1763 = vld [vmem:[%s1758 + $0x10] sm:$0xf]
      %v1764 = vld [vmem:[%s1758 + $0x14] sm:$0xf]
      %v1765 = vld [vmem:[%s1758 + $0x18] sm:$0xf]
      %v1766 = vld [vmem:[%s1758 + $0x1c] sm:$0xf]
      %v1767 = vld [vmem:[%s1758 + $0x20] sm:$0xf]
      %v1768 = vld [vmem:[%s1758 + $0x24] sm:$0xf]
      %v1769 = vld [vmem:[%s1758 + $0x28] sm:$0xf]
      %v1770 = vld [vmem:[%s1758 + $0x2c] sm:$0xf]
      %v1771 = vld [vmem:[%s1758 + $0x30] sm:$0xf]
      %v1772 = vld [vmem:[%s1758 + $0x34] sm:$0xf]
      %v1773 = vld [vmem:[%s1758 + $0x38] sm:$0xf]
      %v1774 = vld [vmem:[%s1758 + $0x3c] sm:$0xf]
      %v1783 = vunpack.c.l.b16 %v1750
      %v1784 = vunpack.c.l.b16 %v1751
      %v1785 = vunpack.c.l.b16 %v1752
      %v1786 = vunpack.c.l.b16 %v1753
      %v1787 = vunpack.c.l.b16 %v1754
      %v1788 = vunpack.c.l.b16 %v1755
      %v1789 = vunpack.c.l.b16 %v1756
      %v1790 = vunpack.c.l.b16 %v1757
      %v1791 = vpack.c.b16 %v1784, %v1783
      %v1792 = vpack.c.b16 %v1786, %v1785
      %v1793 = vpack.c.b16 %v1788, %v1787
      %v1794 = vpack.c.b16 %v1790, %v1789
      %v1815 = vunpack.c.l.b16 %v1759
      %v1816 = vunpack.c.l.b16 %v1760
      %v1817 = vunpack.c.l.b16 %v1761
      %v1818 = vunpack.c.l.b16 %v1762
      %v1819 = vunpack.c.l.b16 %v1763
      %v1820 = vunpack.c.l.b16 %v1764
      %v1821 = vunpack.c.l.b16 %v1765
      %v1822 = vunpack.c.l.b16 %v1766
      %v1823 = vunpack.c.l.b16 %v1767
      %v1824 = vunpack.c.l.b16 %v1768
      %v1825 = vunpack.c.l.b16 %v1769
      %v1826 = vunpack.c.l.b16 %v1770
      %v1827 = vunpack.c.l.b16 %v1771
      %v1828 = vunpack.c.l.b16 %v1772
      %v1829 = vunpack.c.l.b16 %v1773
      %v1830 = vunpack.c.l.b16 %v1774
      %v1831 = vpack.c.b16 %v1816, %v1815
      %v1832 = vpack.c.b16 %v1818, %v1817
      %v1833 = vpack.c.b16 %v1820, %v1819
      %v1834 = vpack.c.b16 %v1822, %v1821
      %v1835 = vpack.c.b16 %v1824, %v1823
      %v1836 = vpack.c.b16 %v1826, %v1825
      %v1837 = vpack.c.b16 %v1828, %v1827
      %v1838 = vpack.c.b16 %v1830, %v1829
      %1847 = vmatprep.subr.bf16.mxu0 0
      %1848 = vmatpush1.bf16.msra.mxu0 %v1831
      %1849 = vmatprep.subr.bf16.mxu0 0
      %1850 = vmatpush1.bf16.msra.mxu0 %v1832
      %1851 = vmatprep.subr.bf16.mxu0 0
      %1852 = vmatpush1.bf16.msra.mxu0 %v1833
      %1853 = vmatprep.subr.bf16.mxu0 0
      %1854 = vmatpush1.bf16.msra.mxu0 %v1834
      %1855 = vmatprep.subr.bf16.mxu0 0
      %1856 = vmatpush1.bf16.msra.mxu0 %v1835
      %1857 = vmatprep.subr.bf16.mxu0 0
      %1858 = vmatpush1.bf16.msra.mxu0 %v1836
      %1859 = vmatprep.subr.bf16.mxu0 0
      %1860 = vmatpush1.bf16.msra.mxu0 %v1837
      %1861 = vmatprep.subr.bf16.mxu0 0
      %1862 = vmatpush1.bf16.msra.mxu0 %v1838
      %1863 = vmatprep.subr.bf16.mxu0 0
      %1864 = vmatpush1.bf16.msra.mxu0 0
      %1865 = vmatprep.subr.bf16.mxu0 0
      %1866 = vmatpush1.bf16.msra.mxu0 0
      %1867 = vmatprep.subr.bf16.mxu0 0
      %1868 = vmatpush1.bf16.msra.mxu0 0
      %1869 = vmatprep.subr.bf16.mxu0 0
      %1870 = vmatpush1.bf16.msra.mxu0 0
      %1871 = vmatprep.subr.bf16.mxu0 0
      %1872 = vmatpush1.bf16.msra.mxu0 0
      %1873 = vmatprep.subr.bf16.mxu0 0
      %1874 = vmatpush1.bf16.msra.mxu0 0
      %1875 = vmatprep.subr.bf16.mxu0 0
      %1876 = vmatpush1.bf16.msra.mxu0 0
      %1877 = vmatprep.subr.bf16.mxu0 0
      %1878 = vmatpush1.bf16.msra.mxu0 0
      %1879 = vmatprep.mubr.bf16.mxu0 0
      %1880 = vmatmul.mubr.bf16.gmra.mrb[0].mxu0 %v1791
      %v1881 = vpop.f32.mrb[0].mxu0
      %v1882 = vadd.f32 0.0, %v1881
      %v1883 = vpop.f32.mrb[0].mxu0
      %v1884 = vpop.f32.mrb[0].mxu0
      %v1885 = vadd.f32 0.0, %v1884
      %v1886 = vpop.f32.mrb[0].mxu0
      %1887 = vmatprep.mubr.bf16.mxu0 0
      %1888 = vmatmul.mubr.bf16.gmra.mrb[0].mxu0 %v1792
      %v1889 = vpop.f32.mrb[0].mxu0
      %v1890 = vadd.f32 0.0, %v1889
      %v1891 = vpop.f32.mrb[0].mxu0
      %v1892 = vpop.f32.mrb[0].mxu0
      %v1893 = vadd.f32 0.0, %v1892
      %v1894 = vpop.f32.mrb[0].mxu0
      %1895 = vmatprep.mubr.bf16.mxu0 0
      %1896 = vmatmul.mubr.bf16.gmra.mrb[0].mxu0 %v1793
      %v1897 = vpop.f32.mrb[0].mxu0
      %v1898 = vadd.f32 0.0, %v1897
      %v1899 = vpop.f32.mrb[0].mxu0
      %v1900 = vpop.f32.mrb[0].mxu0
      %v1901 = vadd.f32 0.0, %v1900
      %v1902 = vpop.f32.mrb[0].mxu0
      %1903 = vmatprep.mubr.bf16.mxu0 0
      %1904 = vmatmul.mubr.bf16.gmra.mrb[0].mxu0 %v1794
      %v1905 = vpop.f32.mrb[0].mxu0
      %v1906 = vadd.f32 0.0, %v1905
      %v1907 = vpop.f32.mrb[0].mxu0
      %v1908 = vpop.f32.mrb[0].mxu0
      %v1909 = vadd.f32 0.0, %v1908
      %v1910 = vpop.f32.mrb[0].mxu0
      %1911 = vdwg.mxu0
      %v1912 = vadd.f32 %v1741, %v1882
      %v1913 = vadd.f32 %v1742, %v1885
      %v1914 = vadd.f32 %v1743, %v1890
      %v1915 = vadd.f32 %v1744, %v1893
      %v1916 = vadd.f32 %v1745, %v1898
      %v1917 = vadd.f32 %v1746, %v1901
      %v1918 = vadd.f32 %v1747, %v1906
      %v1919 = vadd.f32 %v1748, %v1909
      %v1920 = vld [vmem:[%s1749] sm:$0xf]
      %v1921 = vld [vmem:[%s1749 + $0x4] sm:$0x1]
      %v1922 = vld [vmem:[%s1749 + $0x8] sm:$0xf]
      %v1923 = vld [vmem:[%s1749 + $0xc] sm:$0x1]
      %v1924 = vld [vmem:[%s1749 + $0x10] sm:$0xf]
      %v1925 = vld [vmem:[%s1749 + $0x14] sm:$0x1]
      %v1926 = vld [vmem:[%s1749 + $0x18] sm:$0xf]
      %v1927 = vld [vmem:[%s1749 + $0x1c] sm:$0x1]
      %v1928 = vld [vmem:[%s1749 + $0x20] sm:$0xf]
      %v1929 = vld [vmem:[%s1749 + $0x24] sm:$0x1]
      %v1930 = vld [vmem:[%s1749 + $0x28] sm:$0xf]
      %v1931 = vld [vmem:[%s1749 + $0x2c] sm:$0x1]
      %v1932 = vld [vmem:[%s1749 + $0x30] sm:$0xf]
      %v1933 = vld [vmem:[%s1749 + $0x34] sm:$0x1]
      %v1934 = vld [vmem:[%s1749 + $0x38] sm:$0xf]
      %v1935 = vld [vmem:[%s1749 + $0x3c] sm:$0x1]
      %v1937 = vshrl.u32 %v1920, 16
      %v1939 = vrot.slane %v1937, 4
      %v1940 = vshll.u32 %v1920, 16
      %v1942 = vrot.slane %v1940, 5
      %v1943 = vor.u32 %v1939, %v1942
      %v1944 = vrot.slane %v1943, 4
      %v1946 = vshll.u32 %v1921, 16
      %v1948 = vrot.slane %v1946, 5
      %v1949 = vsel %vm478, %v1944, %v1948
      %v1951 = vshrl.u32 %v1922, 16
      %v1953 = vrot.slane %v1951, 4
      %v1954 = vshll.u32 %v1922, 16
      %v1956 = vrot.slane %v1954, 5
      %v1957 = vor.u32 %v1953, %v1956
      %v1958 = vrot.slane %v1957, 4
      %v1960 = vshll.u32 %v1923, 16
      %v1962 = vrot.slane %v1960, 5
      %v1963 = vsel %vm478, %v1958, %v1962
      %v1965 = vshrl.u32 %v1924, 16
      %v1967 = vrot.slane %v1965, 4
      %v1968 = vshll.u32 %v1924, 16
      %v1970 = vrot.slane %v1968, 5
      %v1971 = vor.u32 %v1967, %v1970
      %v1972 = vrot.slane %v1971, 4
      %v1974 = vshll.u32 %v1925, 16
      %v1976 = vrot.slane %v1974, 5
      %v1977 = vsel %vm478, %v1972, %v1976
      %v1979 = vshrl.u32 %v1926, 16
      %v1981 = vrot.slane %v1979, 4
      %v1982 = vshll.u32 %v1926, 16
      %v1984 = vrot.slane %v1982, 5
      %v1985 = vor.u32 %v1981, %v1984
      %v1986 = vrot.slane %v1985, 4
      %v1988 = vshll.u32 %v1927, 16
      %v1990 = vrot.slane %v1988, 5
      %v1991 = vsel %vm478, %v1986, %v1990
      %v1993 = vshrl.u32 %v1928, 16
      %v1995 = vrot.slane %v1993, 4
      %v1996 = vshll.u32 %v1928, 16
      %v1998 = vrot.slane %v1996, 5
      %v1999 = vor.u32 %v1995, %v1998
      %v2000 = vrot.slane %v1999, 4
      %v2002 = vshll.u32 %v1929, 16
      %v2004 = vrot.slane %v2002, 5
      %v2005 = vsel %vm478, %v2000, %v2004
      %v2007 = vshrl.u32 %v1930, 16
      %v2009 = vrot.slane %v2007, 4
      %v2010 = vshll.u32 %v1930, 16
      %v2012 = vrot.slane %v2010, 5
      %v2013 = vor.u32 %v2009, %v2012
      %v2014 = vrot.slane %v2013, 4
      %v2016 = vshll.u32 %v1931, 16
      %v2018 = vrot.slane %v2016, 5
      %v2019 = vsel %vm478, %v2014, %v2018
      %v2021 = vshrl.u32 %v1932, 16
      %v2023 = vrot.slane %v2021, 4
      %v2024 = vshll.u32 %v1932, 16
      %v2026 = vrot.slane %v2024, 5
      %v2027 = vor.u32 %v2023, %v2026
      %v2028 = vrot.slane %v2027, 4
      %v2030 = vshll.u32 %v1933, 16
      %v2032 = vrot.slane %v2030, 5
      %v2033 = vsel %vm478, %v2028, %v2032
      %v2035 = vshrl.u32 %v1934, 16
      %v2037 = vrot.slane %v2035, 4
      %v2038 = vshll.u32 %v1934, 16
      %v2040 = vrot.slane %v2038, 5
      %v2041 = vor.u32 %v2037, %v2040
      %v2042 = vrot.slane %v2041, 4
      %v2044 = vshll.u32 %v1935, 16
      %v2046 = vrot.slane %v2044, 5
      %v2047 = vsel %vm478, %v2042, %v2046
      %s2048 = scalar_lea.vmem %s2, 448
      %v2049 = vld [vmem:[%s2048] sm:$0xf]
      %v2050 = vld [vmem:[%s2048 + $0x4] sm:$0xf]
      %v2051 = vld [vmem:[%s2048 + $0x8] sm:$0xf]
      %v2052 = vld [vmem:[%s2048 + $0xc] sm:$0xf]
      %v2053 = vld [vmem:[%s2048 + $0x10] sm:$0xf]
      %v2054 = vld [vmem:[%s2048 + $0x14] sm:$0xf]
      %v2055 = vld [vmem:[%s2048 + $0x18] sm:$0xf]
      %v2056 = vld [vmem:[%s2048 + $0x1c] sm:$0xf]
      %v2057 = vld [vmem:[%s2048 + $0x20] sm:$0xf]
      %v2058 = vld [vmem:[%s2048 + $0x24] sm:$0xf]
      %v2059 = vld [vmem:[%s2048 + $0x28] sm:$0xf]
      %v2060 = vld [vmem:[%s2048 + $0x2c] sm:$0xf]
      %v2061 = vld [vmem:[%s2048 + $0x30] sm:$0xf]
      %v2062 = vld [vmem:[%s2048 + $0x34] sm:$0xf]
      %v2063 = vld [vmem:[%s2048 + $0x38] sm:$0xf]
      %v2064 = vld [vmem:[%s2048 + $0x3c] sm:$0xf]
      %v2065 = vunpack.c.l.b16 %v1949
      %v2066 = vunpack.c.l.b16 %v1963
      %v2067 = vunpack.c.l.b16 %v1977
      %v2068 = vunpack.c.l.b16 %v1991
      %v2069 = vunpack.c.l.b16 %v2005
      %v2070 = vunpack.c.l.b16 %v2019
      %v2071 = vunpack.c.l.b16 %v2033
      %v2072 = vunpack.c.l.b16 %v2047
      %v2073 = vpack.c.b16 %v2066, %v2065
      %v2074 = vpack.c.b16 %v2068, %v2067
      %v2075 = vpack.c.b16 %v2070, %v2069
      %v2076 = vpack.c.b16 %v2072, %v2071
      %v2097 = vunpack.c.l.b16 %v2049
      %v2098 = vunpack.c.l.b16 %v2050
      %v2099 = vunpack.c.l.b16 %v2051
      %v2100 = vunpack.c.l.b16 %v2052
      %v2101 = vunpack.c.l.b16 %v2053
      %v2102 = vunpack.c.l.b16 %v2054
      %v2103 = vunpack.c.l.b16 %v2055
      %v2104 = vunpack.c.l.b16 %v2056
      %v2105 = vunpack.c.l.b16 %v2057
      %v2106 = vunpack.c.l.b16 %v2058
      %v2107 = vunpack.c.l.b16 %v2059
      %v2108 = vunpack.c.l.b16 %v2060
      %v2109 = vunpack.c.l.b16 %v2061
      %v2110 = vunpack.c.l.b16 %v2062
      %v2111 = vunpack.c.l.b16 %v2063
      %v2112 = vunpack.c.l.b16 %v2064
      %v2113 = vpack.c.b16 %v2098, %v2097
      %v2114 = vpack.c.b16 %v2100, %v2099
      %v2115 = vpack.c.b16 %v2102, %v2101
      %v2116 = vpack.c.b16 %v2104, %v2103
      %v2117 = vpack.c.b16 %v2106, %v2105
      %v2118 = vpack.c.b16 %v2108, %v2107
      %v2119 = vpack.c.b16 %v2110, %v2109
      %v2120 = vpack.c.b16 %v2112, %v2111
      %2129 = vmatprep.subr.bf16.mxu0 0
      %2130 = vmatpush1.bf16.msra.mxu0 %v2113
      %2131 = vmatprep.subr.bf16.mxu0 0
      %2132 = vmatpush1.bf16.msra.mxu0 %v2114
      %2133 = vmatprep.subr.bf16.mxu0 0
      %2134 = vmatpush1.bf16.msra.mxu0 %v2115
      %2135 = vmatprep.subr.bf16.mxu0 0
      %2136 = vmatpush1.bf16.msra.mxu0 %v2116
      %2137 = vmatprep.subr.bf16.mxu0 0
      %2138 = vmatpush1.bf16.msra.mxu0 %v2117
      %2139 = vmatprep.subr.bf16.mxu0 0
      %2140 = vmatpush1.bf16.msra.mxu0 %v2118
      %2141 = vmatprep.subr.bf16.mxu0 0
      %2142 = vmatpush1.bf16.msra.mxu0 %v2119
      %2143 = vmatprep.subr.bf16.mxu0 0
      %2144 = vmatpush1.bf16.msra.mxu0 %v2120
      %2145 = vmatprep.subr.bf16.mxu0 0
      %2146 = vmatpush1.bf16.msra.mxu0 0
      %2147 = vmatprep.subr.bf16.mxu0 0
      %2148 = vmatpush1.bf16.msra.mxu0 0
      %2149 = vmatprep.subr.bf16.mxu0 0
      %2150 = vmatpush1.bf16.msra.mxu0 0
      %2151 = vmatprep.subr.bf16.mxu0 0
      %2152 = vmatpush1.bf16.msra.mxu0 0
      %2153 = vmatprep.subr.bf16.mxu0 0
      %2154 = vmatpush1.bf16.msra.mxu0 0
      %2155 = vmatprep.subr.bf16.mxu0 0
      %2156 = vmatpush1.bf16.msra.mxu0 0
      %2157 = vmatprep.subr.bf16.mxu0 0
      %2158 = vmatpush1.bf16.msra.mxu0 0
      %2159 = vmatprep.subr.bf16.mxu0 0
      %2160 = vmatpush1.bf16.msra.mxu0 0
      %2161 = vmatprep.mubr.bf16.mxu0 0
      %2162 = vmatmul.mubr.bf16.gmra.mrb[0].mxu0 %v2073
      %v2163 = vpop.f32.mrb[0].mxu0
      %v2164 = vadd.f32 0.0, %v2163
      %v2165 = vpop.f32.mrb[0].mxu0
      %v2166 = vpop.f32.mrb[0].mxu0
      %v2167 = vadd.f32 0.0, %v2166
      %v2168 = vpop.f32.mrb[0].mxu0
      %2169 = vmatprep.mubr.bf16.mxu0 0
      %2170 = vmatmul.mubr.bf16.gmra.mrb[0].mxu0 %v2074
      %v2171 = vpop.f32.mrb[0].mxu0
      %v2172 = vadd.f32 0.0, %v2171
      %v2173 = vpop.f32.mrb[0].mxu0
      %v2174 = vpop.f32.mrb[0].mxu0
      %v2175 = vadd.f32 0.0, %v2174
      %v2176 = vpop.f32.mrb[0].mxu0
      %2177 = vmatprep.mubr.bf16.mxu0 0
      %2178 = vmatmul.mubr.bf16.gmra.mrb[0].mxu0 %v2075
      %v2179 = vpop.f32.mrb[0].mxu0
      %v2180 = vadd.f32 0.0, %v2179
      %v2181 = vpop.f32.mrb[0].mxu0
      %v2182 = vpop.f32.mrb[0].mxu0
      %v2183 = vadd.f32 0.0, %v2182
      %v2184 = vpop.f32.mrb[0].mxu0
      %2185 = vmatprep.mubr.bf16.mxu0 0
      %2186 = vmatmul.mubr.bf16.gmra.mrb[0].mxu0 %v2076
      %v2187 = vpop.f32.mrb[0].mxu0
      %v2188 = vadd.f32 0.0, %v2187
      %v2189 = vpop.f32.mrb[0].mxu0
      %v2190 = vpop.f32.mrb[0].mxu0
      %v2191 = vadd.f32 0.0, %v2190
      %v2192 = vpop.f32.mrb[0].mxu0
      %2193 = vdwg.mxu0
      %v2194 = vadd.f32 %v1912, %v2164
      %v2195 = vadd.f32 %v1913, %v2167
      %v2196 = vadd.f32 %v1914, %v2172
      %v2197 = vadd.f32 %v1915, %v2175
      %v2198 = vadd.f32 %v1916, %v2180
      %v2199 = vadd.f32 %v1917, %v2183
      %v2200 = vadd.f32 %v1918, %v2188
      %v2201 = vadd.f32 %v1919, %v2191
      %v2202 = vld [vmem:[%s1749] sm:$0xe]
      %v2203 = vld [vmem:[%s1749 + $0x8] sm:$0xe]
      %v2204 = vld [vmem:[%s1749 + $0x10] sm:$0xe]
      %v2205 = vld [vmem:[%s1749 + $0x18] sm:$0xe]
      %v2206 = vld [vmem:[%s1749 + $0x20] sm:$0xe]
      %v2207 = vld [vmem:[%s1749 + $0x28] sm:$0xe]
      %v2208 = vld [vmem:[%s1749 + $0x30] sm:$0xe]
      %v2209 = vld [vmem:[%s1749 + $0x38] sm:$0xe]
      %v2226 = vrot.slane %v2202, 5
      %v2227 = vrot.slane %v2226, 4
      %v2228 = vrot.slane %v1921, 5
      %v2229 = vsel %vm900, %v2227, %v2228
      %v2230 = vrot.slane %v2203, 5
      %v2231 = vrot.slane %v2230, 4
      %v2232 = vrot.slane %v1923, 5
      %v2233 = vsel %vm900, %v2231, %v2232
      %v2234 = vrot.slane %v2204, 5
      %v2235 = vrot.slane %v2234, 4
      %v2236 = vrot.slane %v1925, 5
      %v2237 = vsel %vm900, %v2235, %v2236
      %v2238 = vrot.slane %v2205, 5
      %v2239 = vrot.slane %v2238, 4
      %v2240 = vrot.slane %v1927, 5
      %v2241 = vsel %vm900, %v2239, %v2240
      %v2242 = vrot.slane %v2206, 5
      %v2243 = vrot.slane %v2242, 4
      %v2244 = vrot.slane %v1929, 5
      %v2245 = vsel %vm900, %v2243, %v2244
      %v2246 = vrot.slane %v2207, 5
      %v2247 = vrot.slane %v2246, 4
      %v2248 = vrot.slane %v1931, 5
      %v2249 = vsel %vm900, %v2247, %v2248
      %v2250 = vrot.slane %v2208, 5
      %v2251 = vrot.slane %v2250, 4
      %v2252 = vrot.slane %v1933, 5
      %v2253 = vsel %vm900, %v2251, %v2252
      %v2254 = vrot.slane %v2209, 5
      %v2255 = vrot.slane %v2254, 4
      %v2256 = vrot.slane %v1935, 5
      %v2257 = vsel %vm900, %v2255, %v2256
      %s2258 = scalar_lea.vmem %s2, 512
      %v2259 = vld [vmem:[%s2258] sm:$0xf]
      %v2260 = vld [vmem:[%s2258 + $0x4] sm:$0xf]
      %v2261 = vld [vmem:[%s2258 + $0x8] sm:$0xf]
      %v2262 = vld [vmem:[%s2258 + $0xc] sm:$0xf]
      %v2263 = vld [vmem:[%s2258 + $0x10] sm:$0xf]
      %v2264 = vld [vmem:[%s2258 + $0x14] sm:$0xf]
      %v2265 = vld [vmem:[%s2258 + $0x18] sm:$0xf]
      %v2266 = vld [vmem:[%s2258 + $0x1c] sm:$0xf]
      %v2267 = vld [vmem:[%s2258 + $0x20] sm:$0xf]
      %v2268 = vld [vmem:[%s2258 + $0x24] sm:$0xf]
      %v2269 = vld [vmem:[%s2258 + $0x28] sm:$0xf]
      %v2270 = vld [vmem:[%s2258 + $0x2c] sm:$0xf]
      %v2271 = vld [vmem:[%s2258 + $0x30] sm:$0xf]
      %v2272 = vld [vmem:[%s2258 + $0x34] sm:$0xf]
      %v2273 = vld [vmem:[%s2258 + $0x38] sm:$0xf]
      %v2274 = vld [vmem:[%s2258 + $0x3c] sm:$0xf]
      %v2275 = vunpack.c.l.b16 %v2229
      %v2276 = vunpack.c.l.b16 %v2233
      %v2277 = vunpack.c.l.b16 %v2237
      %v2278 = vunpack.c.l.b16 %v2241
      %v2279 = vunpack.c.l.b16 %v2245
      %v2280 = vunpack.c.l.b16 %v2249
      %v2281 = vunpack.c.l.b16 %v2253
      %v2282 = vunpack.c.l.b16 %v2257
      %v2283 = vpack.c.b16 %v2276, %v2275
      %v2284 = vpack.c.b16 %v2278, %v2277
      %v2285 = vpack.c.b16 %v2280, %v2279
      %v2286 = vpack.c.b16 %v2282, %v2281
      %v2307 = vunpack.c.l.b16 %v2259
      %v2308 = vunpack.c.l.b16 %v2260
      %v2309 = vunpack.c.l.b16 %v2261
      %v2310 = vunpack.c.l.b16 %v2262
      %v2311 = vunpack.c.l.b16 %v2263
      %v2312 = vunpack.c.l.b16 %v2264
      %v2313 = vunpack.c.l.b16 %v2265
      %v2314 = vunpack.c.l.b16 %v2266
      %v2315 = vunpack.c.l.b16 %v2267
      %v2316 = vunpack.c.l.b16 %v2268
      %v2317 = vunpack.c.l.b16 %v2269
      %v2318 = vunpack.c.l.b16 %v2270
      %v2319 = vunpack.c.l.b16 %v2271
      %v2320 = vunpack.c.l.b16 %v2272
      %v2321 = vunpack.c.l.b16 %v2273
      %v2322 = vunpack.c.l.b16 %v2274
      %v2323 = vpack.c.b16 %v2308, %v2307
      %v2324 = vpack.c.b16 %v2310, %v2309
      %v2325 = vpack.c.b16 %v2312, %v2311
      %v2326 = vpack.c.b16 %v2314, %v2313
      %v2327 = vpack.c.b16 %v2316, %v2315
      %v2328 = vpack.c.b16 %v2318, %v2317
      %v2329 = vpack.c.b16 %v2320, %v2319
      %v2330 = vpack.c.b16 %v2322, %v2321
      %2339 = vmatprep.subr.bf16.mxu0 0
      %2340 = vmatpush1.bf16.msra.mxu0 %v2323
      %2341 = vmatprep.subr.bf16.mxu0 0
      %2342 = vmatpush1.bf16.msra.mxu0 %v2324
      %2343 = vmatprep.subr.bf16.mxu0 0
      %2344 = vmatpush1.bf16.msra.mxu0 %v2325
      %2345 = vmatprep.subr.bf16.mxu0 0
      %2346 = vmatpush1.bf16.msra.mxu0 %v2326
      %2347 = vmatprep.subr.bf16.mxu0 0
      %2348 = vmatpush1.bf16.msra.mxu0 %v2327
      %2349 = vmatprep.subr.bf16.mxu0 0
      %2350 = vmatpush1.bf16.msra.mxu0 %v2328
      %2351 = vmatprep.subr.bf16.mxu0 0
      %2352 = vmatpush1.bf16.msra.mxu0 %v2329
      %2353 = vmatprep.subr.bf16.mxu0 0
      %2354 = vmatpush1.bf16.msra.mxu0 %v2330
      %2355 = vmatprep.subr.bf16.mxu0 0
      %2356 = vmatpush1.bf16.msra.mxu0 0
      %2357 = vmatprep.subr.bf16.mxu0 0
      %2358 = vmatpush1.bf16.msra.mxu0 0
      %2359 = vmatprep.subr.bf16.mxu0 0
      %2360 = vmatpush1.bf16.msra.mxu0 0
      %2361 = vmatprep.subr.bf16.mxu0 0
      %2362 = vmatpush1.bf16.msra.mxu0 0
      %2363 = vmatprep.subr.bf16.mxu0 0
      %2364 = vmatpush1.bf16.msra.mxu0 0
      %2365 = vmatprep.subr.bf16.mxu0 0
      %2366 = vmatpush1.bf16.msra.mxu0 0
      %2367 = vmatprep.subr.bf16.mxu0 0
      %2368 = vmatpush1.bf16.msra.mxu0 0
      %2369 = vmatprep.subr.bf16.mxu0 0
      %2370 = vmatpush1.bf16.msra.mxu0 0
      %2371 = vmatprep.mubr.bf16.mxu0 0
      %2372 = vmatmul.mubr.bf16.gmra.mrb[0].mxu0 %v2283
      %v2373 = vpop.f32.mrb[0].mxu0
      %v2374 = vadd.f32 0.0, %v2373
      %v2375 = vpop.f32.mrb[0].mxu0
      %v2376 = vpop.f32.mrb[0].mxu0
      %v2377 = vadd.f32 0.0, %v2376
      %v2378 = vpop.f32.mrb[0].mxu0
      %2379 = vmatprep.mubr.bf16.mxu0 0
      %2380 = vmatmul.mubr.bf16.gmra.mrb[0].mxu0 %v2284
      %v2381 = vpop.f32.mrb[0].mxu0
      %v2382 = vadd.f32 0.0, %v2381
      %v2383 = vpop.f32.mrb[0].mxu0
      %v2384 = vpop.f32.mrb[0].mxu0
      %v2385 = vadd.f32 0.0, %v2384
      %v2386 = vpop.f32.mrb[0].mxu0
      %2387 = vmatprep.mubr.bf16.mxu0 0
      %2388 = vmatmul.mubr.bf16.gmra.mrb[0].mxu0 %v2285
      %v2389 = vpop.f32.mrb[0].mxu0
      %v2390 = vadd.f32 0.0, %v2389
      %v2391 = vpop.f32.mrb[0].mxu0
      %v2392 = vpop.f32.mrb[0].mxu0
      %v2393 = vadd.f32 0.0, %v2392
      %v2394 = vpop.f32.mrb[0].mxu0
      %2395 = vmatprep.mubr.bf16.mxu0 0
      %2396 = vmatmul.mubr.bf16.gmra.mrb[0].mxu0 %v2286
      %v2397 = vpop.f32.mrb[0].mxu0
      %v2398 = vadd.f32 0.0, %v2397
      %v2399 = vpop.f32.mrb[0].mxu0
      %v2400 = vpop.f32.mrb[0].mxu0
      %v2401 = vadd.f32 0.0, %v2400
      %v2402 = vpop.f32.mrb[0].mxu0
      %2403 = vdwg.mxu0
      %v2404 = vadd.f32 %v2194, %v2374
      %v2405 = vadd.f32 %v2195, %v2377
      %v2406 = vadd.f32 %v2196, %v2382
      %v2407 = vadd.f32 %v2197, %v2385
      %v2408 = vadd.f32 %v2198, %v2390
      %v2409 = vadd.f32 %v2199, %v2393
      %v2410 = vadd.f32 %v2200, %v2398
      %v2411 = vadd.f32 %v2201, %v2401
      %2412 = vst [vmem:[%s204] sm:$0xff] %v2404
      %2413 = vst [vmem:[%s204 + $0x8] sm:$0xff] %v2405
      %2414 = vst [vmem:[%s204 + $0x10] sm:$0xff] %v2406
      %2415 = vst [vmem:[%s204 + $0x18] sm:$0xff] %v2407
      %2416 = vst [vmem:[%s204 + $0x20] sm:$0xff] %v2408
      %2417 = vst [vmem:[%s204 + $0x28] sm:$0xff] %v2409
      %2418 = vst [vmem:[%s204 + $0x30] sm:$0xff] %v2410
      %2419 = vst [vmem:[%s204 + $0x38] sm:$0xff] %v2411
      %v2420 = vadd.f32 %v2404, %v2405
      %v2421 = vadd.f32 %v2420, %v2406
      %v2422 = vadd.f32 %v2421, %v2407
      %v2423 = vadd.f32 %v2422, %v2408
      %v2424 = vadd.f32 %v2423, %v2409
      %v2425 = vadd.f32 %v2424, %v2410
      %v2426 = vadd.f32 %v2425, %v2411
      %v2427 = vrot.slane %v2426, 4
      %v2428 = vadd.f32 %v2426, %v2427
      %v2429 = vrot.slane %v2428, 2
      %v2430 = vadd.f32 %v2428, %v2429
      %v2431 = vrot.slane %v2430, 1
      %v2432 = vadd.f32 %v2430, %v2431
      %v2433 = vmul.f32 %v2404, %v2404
      %v2434 = vmul.f32 %v2405, %v2405
      %v2435 = vmul.f32 %v2406, %v2406
      %v2436 = vmul.f32 %v2407, %v2407
      %v2437 = vmul.f32 %v2408, %v2408
      %v2438 = vmul.f32 %v2409, %v2409
      %v2439 = vmul.f32 %v2410, %v2410
      %v2440 = vmul.f32 %v2411, %v2411
      %v2441 = vadd.f32 %v2433, %v2434
      %v2442 = vadd.f32 %v2441, %v2435
      %v2443 = vadd.f32 %v2442, %v2436
      %v2444 = vadd.f32 %v2443, %v2437
      %v2445 = vadd.f32 %v2444, %v2438
      %v2446 = vadd.f32 %v2445, %v2439
      %v2447 = vadd.f32 %v2446, %v2440
      %v2448 = vrot.slane %v2447, 4
      %v2449 = vadd.f32 %v2447, %v2448
      %v2450 = vrot.slane %v2449, 2
      %v2451 = vadd.f32 %v2449, %v2450
      %v2452 = vrot.slane %v2451, 1
      %v2453 = vadd.f32 %v2451, %v2452
      %vm2454 = vcmask 1040384
      %v2455 = vsel %vm2454, %v2432, %v2453
      %2456 = vst [vmem:[%s208] sm:$0x3] %v2455
      %p2457 = scmp.lt.s32.totalorder %s16, 1
      %s2458 = scalar_select %p2457, %s16, 1
      %s2459 = smul.addr %s2458, 8
      %s2460 = smul.addr %s2459, 8
      %s2461 = scalar_lea.vmem %s3, %s2460
      %p2462 = scmp.lt.s32.totalorder %s16, 1
      %s2463 = scalar_select %p2462, %s16, 1
      %s2464 = smul.addr %s2463, 2
      %s2465 = scalar_lea.vmem %s4, %s2464
      // Predicated region
      $region33: #{down_module.4} parent=31 // pred_check
        %p2466 = pneg %p102
      $region34: #{down_module.4} parent=31 // pred_check_branch
        %2468 = sbr.rel (%p2466) target = $region36
      $region35: #{down_module.4} parent=31 // pred_region
        _
      $region36: #{down_module.4} parent=31 // pred_fallthru
        _
      // Predicated region
      $region37: #{down_module.4} parent=31 // pred_check
        %p2469 = pneg %p128
      $region38: #{down_module.4} parent=31 // pred_check_branch
        %2471 = sbr.rel (%p2469) target = $region40
      $region39: #{down_module.4} parent=31 // pred_region
        _
      $region40: #{down_module.4} parent=31 // pred_fallthru
        _
    $region32: #{down_module.4} parent=5 // pred_fallthru
      _
    %p2472 = scmp.le.s32.totalorder 2, %s11
    // Predicated region
    $region41: #{down_module.4} parent=5 // pred_check
      %p2473 = pneg %p2472
    $region42: #{down_module.4} parent=5 // pred_check_branch
      %2475 = sbr.rel (%p2473) target = $region44
    $region43: #{down_module.4} parent=5 // pred_region
      %s2476 = ssub.s32 %s11, 2
      // Predicated region
      $region45: #{down_module.4} parent=43 // pred_check
        %p2477 = pneg %p108
      $region46: #{down_module.4} parent=43 // pred_check_branch
        %2479 = sbr.rel (%p2477) target = $region48
      $region47: #{down_module.4} parent=43 // pred_region
        %p2480 = scmp.lt.s32.totalorder %s17, 1
        %s2481 = scalar_select %p2480, %s17, 1
        %s2482 = smul.addr %s2481, 8
        %s2483 = smul.addr %s2482, 8
        %s2484 = scalar_lea.vmem %s3, %s2483
      $region48: #{down_module.4} parent=43 // pred_fallthru
        _
      // Predicated region
      $region49: #{down_module.4} parent=43 // pred_check
        %p2485 = pneg %p134
      $region50: #{down_module.4} parent=43 // pred_check_branch
        %2487 = sbr.rel (%p2485) target = $region52
      $region51: #{down_module.4} parent=43 // pred_region
        %p2488 = scmp.lt.s32.totalorder %s17, 1
        %s2489 = scalar_select %p2488, %s17, 1
        %s2490 = smul.addr %s2489, 2
        %s2491 = scalar_lea.vmem %s4, %s2490
      $region52: #{down_module.4} parent=43 // pred_fallthru
        _
    $region44: #{down_module.4} parent=5 // pred_fallthru
      _
  $region6: #{down_module.4} parent=0 // loop_footer
    %s15 = sadd.s32 1, %s11
  $region7: #{down_module.4} parent=0 // loop_footer_branch
    %10 = sbr.rel target = $region3
  $region8: #{down_module.4} parent=0 // loop_exit
    _

</llo_original>
